<compile_context>
chip_gen: v7x
topology: tpu7x:2x2x1
jax: 0.10.0
libtpu: 0.0.40
codegen_flags: <defaults>
</compile_context>

<pallas_src>
import functools

import jax
import jax.numpy as jnp
from jax import lax
from jax.experimental import pallas as pl
from jax.experimental.pallas import tpu as pltpu


def _basic_block_kernel(x_ref, m_ref, w1_ref, b1_ref, w2_ref, b2_ref,
                        o_ref, pbuf1, pbuf2,
                        *, NB, H, W, Cin, Cout, HALO, compute_dtype):
    HW = H * W
    GAP = W + 1                 # zero gap between images (covers the dy=+-1 halo)
    STRIDE = HW + GAP           # per-image pitch inside the padded buffer
    SPAN = NB * STRIDE          # matmul lane width (all NB images at once)

    # ---- re-zero halo / gap columns every grid step (megacore-safe) ----
    zpad1 = jnp.zeros((Cin, GAP), compute_dtype)
    zpad2 = jnp.zeros((Cout, GAP), compute_dtype)
    pbuf1[:, HALO - GAP:HALO] = zpad1                    # halo before image 0
    pbuf2[:, HALO - GAP:HALO] = zpad2
    pbuf1[:, HALO + SPAN:HALO + SPAN + GAP] = zpad1      # pad read by +shift slabs
    pbuf2[:, HALO + SPAN:HALO + SPAN + GAP] = zpad2
    for i in range(NB):                                  # trailing gap of each image
        g0 = HALO + i * STRIDE + HW
        pbuf1[:, g0:g0 + GAP] = zpad1
    # (pbuf2's in-span gaps are zeroed by the interior mask below.)

    # ---- place the NB input images into the gapped layout (1x data volume) ----
    for i in range(NB):
        off = HALO + i * STRIDE
        pbuf1[:, off:off + HW] = x_ref[i].astype(compute_dtype)

    masks = m_ref[...]                    # (3, SPAN) {0,1} in compute_dtype
    mask_l = masks[0:1, :]                # source column x-1 exists
    mask_r = masks[1:2, :]                # source column x+1 exists
    mask_in = masks[2:3, :]               # real-image (non-gap) columns

    def conv3x3(pbuf, w_ref):
        # 9 accumulated matmuls on lane-shifted slabs; no patch materialized.
        acc = None
        for dy in range(3):
            for dx in range(3):
                s = (dy - 1) * W + (dx - 1)
                slab = pbuf[:, HALO + s:HALO + s + SPAN]          # (C, SPAN)
                if dx == 0:
                    slab = slab * mask_l
                elif dx == 2:
                    slab = slab * mask_r
                contrib = jnp.dot(w_ref[dy * 3 + dx], slab,
                                  preferred_element_type=jnp.float32)
                acc = contrib if acc is None else acc + contrib
        return acc                                                # (Cout, SPAN) f32

    # ---- conv1 (+ folded bn1 scale) + bn1 bias + relu ----
    out1 = jnp.maximum(conv3x3(pbuf1, w1_ref) + b1_ref[...], 0.0)
    # single dense store of conv1 activations into conv2's padded buffer;
    # the interior mask zeroes the gap columns between images.
    pbuf2[:, HALO:HALO + SPAN] = out1.astype(compute_dtype) * mask_in

    # ---- conv2 (+ folded bn2 scale) + bn2 bias ----
    out2 = conv3x3(pbuf2, w2_ref) + b2_ref[...]

    # ---- residual add + relu, per-image lane-dense stores ----
    for i in range(NB):
        off = i * STRIDE
        res = x_ref[i].astype(jnp.float32)
        o_ref[i] = jnp.maximum(out2[:, off:off + HW] + res, 0.0).astype(o_ref.dtype)


def basic_block_pallas(x_nchw, w1, gamma1, beta1, mean1, var1,
                       w2, gamma2, beta2, mean2, var2, eps=1e-5,
                       images_per_step=None,
                       compute_dtype=jnp.bfloat16,
                       io_dtype=jnp.bfloat16,
                       vmem_limit_bytes=None):
    """x_nchw: (N, C, H, W) (PyTorch layout). Returns (N, C, H, W) in io_dtype.

    compute_dtype: MXU operand dtype (bf16 recommended on v5e/v6e/v7x;
    accumulation stays f32). io_dtype: activation dtype at the HBM boundary.
    Use compute_dtype=io_dtype=jnp.float32 for a tight numerical match.
    """
    N, Cin, H, W = x_nchw.shape
    Cout = w1.shape[0]
    assert Cin == Cout, "stride=1 / no-downsample BasicBlock requires Cin == Cout"
    HW = H * W
    GAP = W + 1
    STRIDE = HW + GAP
    HALO = max(128, ((GAP + 127) // 128) * 128)      # lane-aligned left halo >= W+1

    io_bytes = jnp.dtype(io_dtype).itemsize
    cd_bytes = jnp.dtype(compute_dtype).itemsize

    def vmem_need(nb):
        span = nb * STRIDE
        pbw = HALO + span + GAP
        blocks = 2 * nb * (Cin + Cout) * HW * io_bytes        # double-buffered in/out
        scratch = (Cin + Cout) * pbw * cd_bytes               # padded buffers
        temps = 3 * Cout * span * 4                           # f32 acc/out1/out2 temps
        consts = (9 * Cout * (Cin + Cout) + 3 * span) * cd_bytes + 2 * Cout * 4
        return blocks + scratch + temps + consts

    try:
        vmem_cap = int(pltpu.get_tpu_info().vmem_capacity_bytes)
    except Exception:
        vmem_cap = 64 * 1024 * 1024          # v7x per-TensorCore budget (worst case)

    if images_per_step is not None:
        NB = max(1, min(images_per_step, N))
    else:
        NB = min(N, 8)
        if N >= 2:
            NB = min(NB, max(1, N // 2))     # grid >= 2 steps: both v7x cores busy
        budget = int(vmem_cap * 0.5)
        while NB > 1 and vmem_need(NB) > budget:
            NB -= 1
    while N % NB:
        NB -= 1

    SPAN = NB * STRIDE
    PBW = ((HALO + SPAN + GAP + 127) // 128) * 128

    if vmem_limit_bytes is None:
        vmem_limit_bytes = int(min(int(vmem_cap * 0.9),
                                   max(32 * 1024 * 1024, 2 * vmem_need(NB))))

    # ---- fold eval-mode BN scale into conv weights; keep per-channel bias ----
    inv1 = gamma1 / jnp.sqrt(var1 + eps)
    inv2 = gamma2 / jnp.sqrt(var2 + eps)
    b1 = (beta1 - mean1 * inv1).reshape(Cout, 1).astype(jnp.float32)
    b2 = (beta2 - mean2 * inv2).reshape(Cout, 1).astype(jnp.float32)
    # (Cout,Cin,3,3)*scale -> (3,3,Cout,Cin) -> (9,Cout,Cin): tap-major layout.
    w1m = jnp.transpose(w1 * inv1[:, None, None, None], (2, 3, 0, 1)) \
             .reshape(9, Cout, Cin).astype(compute_dtype)
    w2m = jnp.transpose(w2 * inv2[:, None, None, None], (2, 3, 0, 1)) \
             .reshape(9, Cout, Cout).astype(compute_dtype)

    # NCHW -> (N, C, H*W): channels on sublanes, pixels on lanes (free reshape).
    x = x_nchw.reshape(N, Cin, HW).astype(io_dtype)

    # Column-edge / interior masks over the gapped NB-image span, indexed by
    # the OUTPUT column (same indexing as the conv accumulator).
    col = jnp.arange(SPAN, dtype=jnp.int32)
    p = col % STRIDE                      # position within one image pitch
    xcoord = p % W
    in_img = p < HW
    masks = jnp.stack([(xcoord >= 1) & in_img,          # dx=-1 tap valid
                       (xcoord <= W - 2) & in_img,      # dx=+1 tap valid
                       in_img],                         # interior (non-gap) column
                      axis=0).astype(compute_dtype)     # (3, SPAN)

    kernel = functools.partial(_basic_block_kernel, NB=NB, H=H, W=W,
                               Cin=Cin, Cout=Cout, HALO=HALO,
                               compute_dtype=compute_dtype)

    flops = 2 * 9 * Cout * (Cin + Cout) * N * HW          # two 3x3 convs
    bytes_accessed = (N * Cin * HW + N * Cout * HW) * io_bytes \
        + (9 * Cout * (Cin + Cout) + 3 * SPAN) * cd_bytes + 2 * Cout * 4

    out = pl.pallas_call(
        kernel,
        out_shape=jax.ShapeDtypeStruct((N, Cout, HW), io_dtype),
        grid_spec=pltpu.PrefetchScalarGridSpec(
            num_scalar_prefetch=0,
            grid=(N // NB,),
            in_specs=[
                pl.BlockSpec((NB, Cin, HW), lambda n: (n, 0, 0)),    # x / residual
                pl.BlockSpec((3, SPAN), lambda n: (0, 0)),           # edge masks
                pl.BlockSpec((9, Cout, Cin), lambda n: (0, 0, 0)),   # w1 (bn1 folded)
                pl.BlockSpec((Cout, 1), lambda n: (0, 0)),           # bn1 bias
                pl.BlockSpec((9, Cout, Cout), lambda n: (0, 0, 0)),  # w2 (bn2 folded)
                pl.BlockSpec((Cout, 1), lambda n: (0, 0)),           # bn2 bias
            ],
            out_specs=pl.BlockSpec((NB, Cout, HW), lambda n: (n, 0, 0)),
            scratch_shapes=[
                pltpu.VMEM((Cin, PBW), compute_dtype),    # padded x
                pltpu.VMEM((Cout, PBW), compute_dtype),   # padded conv1 activations
            ],
        ),
        compiler_params=pltpu.CompilerParams(
            dimension_semantics=("parallel",),
            vmem_limit_bytes=int(vmem_limit_bytes),
        ),
        cost_estimate=pl.CostEstimate(flops=int(flops), transcendentals=0,
                                      bytes_accessed=int(bytes_accessed)),
    )(x, masks, w1m, b1, w2m, b2)

    return out.reshape(N, Cout, H, W)


# ---------------- pure-JAX reference for correctness check ----------------
def _reference(x_nchw, w1, gamma1, beta1, mean1, var1,
               w2, gamma2, beta2, mean2, var2, eps=1e-5):
    def conv(x, w):
        return lax.conv_general_dilated(
            x, w, window_strides=(1, 1), padding=((1, 1), (1, 1)),
            dimension_numbers=("NCHW", "OIHW", "NCHW"))

    def bn(x, g, b, m, v):
        g = g.reshape(1, -1, 1, 1); b = b.reshape(1, -1, 1, 1)
        m = m.reshape(1, -1, 1, 1); v = v.reshape(1, -1, 1, 1)
        return (x - m) / jnp.sqrt(v + eps) * g + b

    out = jnp.maximum(bn(conv(x_nchw, w1), gamma1, beta1, mean1, var1), 0.0)
    out = bn(conv(out, w2), gamma2, beta2, mean2, var2)
    return jnp.maximum(out + x_nchw, 0.0)


if __name__ == "__main__":
    key = jax.random.PRNGKey(0)
    N, C, H, W = 2, 8, 16, 16          # inplanes = planes = 8, stride = 1
    ks = jax.random.split(key, 12)

    x = jax.random.normal(ks[0], (N, C, H, W), jnp.float32)

    # conv weights (PyTorch layout Cout, Cin, 3, 3), kaiming-ish scale
    w1 = jax.random.normal(ks[1], (C, C, 3, 3), jnp.float32) * (2.0 / (9 * C)) ** 0.5
    w2 = jax.random.normal(ks[2], (C, C, 3, 3), jnp.float32) * (2.0 / (9 * C)) ** 0.5

    # BN params / running stats (deterministic, eval-mode semantics)
    gamma1 = 1.0 + 0.1 * jax.random.normal(ks[3], (C,), jnp.float32)
    beta1  = 0.1 * jax.random.normal(ks[4], (C,), jnp.float32)
    mean1  = 0.1 * jax.random.normal(ks[5], (C,), jnp.float32)
    var1   = jnp.abs(jax.random.normal(ks[6], (C,), jnp.float32)) * 0.5 + 0.5
    gamma2 = 1.0 + 0.1 * jax.random.normal(ks[7], (C,), jnp.float32)
    beta2  = 0.1 * jax.random.normal(ks[8], (C,), jnp.float32)
    mean2  = 0.1 * jax.random.normal(ks[9], (C,), jnp.float32)
    var2   = jnp.abs(jax.random.normal(ks[10], (C,), jnp.float32)) * 0.5 + 0.5

    ref = _reference(x, w1, gamma1, beta1, mean1, var1,
                     w2, gamma2, beta2, mean2, var2)

    # 1) exact path: f32 operands + f32 IO must match the reference tightly.
    out_f32 = basic_block_pallas(x, w1, gamma1, beta1, mean1, var1,
                                 w2, gamma2, beta2, mean2, var2,
                                 compute_dtype=jnp.float32, io_dtype=jnp.float32)
    out_f32 = jax.block_until_ready(out_f32)
    assert out_f32.shape == (N, C, H, W)
    assert jnp.allclose(out_f32, ref, atol=1e-3, rtol=1e-3), \
        f"f32 path max abs err {jnp.max(jnp.abs(out_f32 - ref))}"

    # 2) fast path (defaults): bf16 MXU operands + bf16 HBM activations with
    #    f32 accumulation -> loose tolerance against the f32 reference.
    out_bf16 = basic_block_pallas(x, w1, gamma1, beta1, mean1, var1,
                                  w2, gamma2, beta2, mean2, var2)
    out_bf16 = jax.block_until_ready(out_bf16).astype(jnp.float32)
    assert out_bf16.shape == (N, C, H, W)
    assert jnp.allclose(out_bf16, ref, atol=0.15, rtol=0.05), \
        f"bf16 path max abs err {jnp.max(jnp.abs(out_bf16 - ref))}"

    print("KERNEL_OK")
</pallas_src>

<mosaic_0001>
module attributes {stable_mosaic.version = 11 : i64} {
  func.func @_basic_block_kernel(%arg0: i32, %arg1: memref<1x8x256xf32, #tpu.memory_space<vmem>>, %arg2: memref<3x273xf32, #tpu.memory_space<vmem>>, %arg3: memref<9x8x8xf32, #tpu.memory_space<vmem>>, %arg4: memref<8x1xf32, #tpu.memory_space<vmem>>, %arg5: memref<9x8x8xf32, #tpu.memory_space<vmem>>, %arg6: memref<8x1xf32, #tpu.memory_space<vmem>>, %arg7: memref<1x8x256xf32, #tpu.memory_space<vmem>>, %arg8: memref<8x512xf32, #tpu.memory_space<vmem>>, %arg9: memref<8x512xf32, #tpu.memory_space<vmem>>) attributes {dimension_semantics = [#tpu.dimension_semantics<parallel>], iteration_bounds = array<i64: 2>, scalar_prefetch = 0 : i64, scratch_operands = 2 : i64, tpu.core_type = #tpu.core_type<tc>, window_params = [{transform_indices = @transform_0, window_bounds = array<i64: 1, 8, 256>}, {pipeline_mode = #tpu.pipeline_mode<synchronous>, transform_indices = @transform_1, window_bounds = array<i64: 3, 273>}, {pipeline_mode = #tpu.pipeline_mode<synchronous>, transform_indices = @transform_2, window_bounds = array<i64: 9, 8, 8>}, {pipeline_mode = #tpu.pipeline_mode<synchronous>, transform_indices = @transform_3, window_bounds = array<i64: 8, 1>}, {pipeline_mode = #tpu.pipeline_mode<synchronous>, transform_indices = @transform_4, window_bounds = array<i64: 9, 8, 8>}, {pipeline_mode = #tpu.pipeline_mode<synchronous>, transform_indices = @transform_5, window_bounds = array<i64: 8, 1>}, {transform_indices = @transform_6, window_bounds = array<i64: 1, 8, 256>}]} {
    %cst = arith.constant 0.000000e+00 : f32
    %0 = vector.broadcast %cst : f32 to vector<8x17xf32>
    %cst_0 = arith.constant 0.000000e+00 : f32
    %1 = vector.broadcast %cst_0 : f32 to vector<8x17xf32>
    %c0 = arith.constant 0 : index
    %c111 = arith.constant 111 : index
    %2 = vector.load %arg8[%c0, %c111] : memref<8x512xf32, #tpu.memory_space<vmem>>, vector<8x17xf32>
    tpu.vector_store %arg8[%c0, %c111], %0 {strides = array<i32>} : memref<8x512xf32, #tpu.memory_space<vmem>>, vector<8x17xf32>,
    %c0_1 = arith.constant 0 : index
    %c111_2 = arith.constant 111 : index
    %3 = vector.load %arg9[%c0_1, %c111_2] : memref<8x512xf32, #tpu.memory_space<vmem>>, vector<8x17xf32>
    tpu.vector_store %arg9[%c0_1, %c111_2], %1 {strides = array<i32>} : memref<8x512xf32, #tpu.memory_space<vmem>>, vector<8x17xf32>,
    %c0_3 = arith.constant 0 : index
    %c401 = arith.constant 401 : index
    %4 = vector.load %arg8[%c0_3, %c401] : memref<8x512xf32, #tpu.memory_space<vmem>>, vector<8x17xf32>
    tpu.vector_store %arg8[%c0_3, %c401], %0 {strides = array<i32>} : memref<8x512xf32, #tpu.memory_space<vmem>>, vector<8x17xf32>,
    %c0_4 = arith.constant 0 : index
    %c401_5 = arith.constant 401 : index
    %5 = vector.load %arg9[%c0_4, %c401_5] : memref<8x512xf32, #tpu.memory_space<vmem>>, vector<8x17xf32>
    tpu.vector_store %arg9[%c0_4, %c401_5], %1 {strides = array<i32>} : memref<8x512xf32, #tpu.memory_space<vmem>>, vector<8x17xf32>,
    %c0_6 = arith.constant 0 : index
    %c384 = arith.constant 384 : index
    %6 = vector.load %arg8[%c0_6, %c384] : memref<8x512xf32, #tpu.memory_space<vmem>>, vector<8x17xf32>
    tpu.vector_store %arg8[%c0_6, %c384], %0 {strides = array<i32>} : memref<8x512xf32, #tpu.memory_space<vmem>>, vector<8x17xf32>,
    %c0_7 = arith.constant 0 : index
    %c0_8 = arith.constant 0 : index
    %c0_9 = arith.constant 0 : index
    %7 = vector.load %arg1[%c0_7, %c0_8, %c0_9] : memref<1x8x256xf32, #tpu.memory_space<vmem>>, vector<1x8x256xf32>
    %8 = vector.shape_cast %7 : vector<1x8x256xf32> to vector<8x256xf32>
    %c0_10 = arith.constant 0 : index
    %c128 = arith.constant 128 : index
    %9 = vector.load %arg8[%c0_10, %c128] : memref<8x512xf32, #tpu.memory_space<vmem>>, vector<8x256xf32>
    tpu.vector_store %arg8[%c0_10, %c128], %8 {strides = array<i32>} : memref<8x512xf32, #tpu.memory_space<vmem>>, vector<8x256xf32>,
    %c0_11 = arith.constant 0 : index
    %c0_12 = arith.constant 0 : index
    %10 = vector.load %arg2[%c0_11, %c0_12] : memref<3x273xf32, #tpu.memory_space<vmem>>, vector<3x273xf32>
    %11 = vector.extract_strided_slice %10 {offsets = [0, 0], sizes = [1, 273], strides = [1, 1]} : vector<3x273xf32> to vector<1x273xf32>
    %12 = vector.extract_strided_slice %10 {offsets = [1, 0], sizes = [1, 273], strides = [1, 1]} : vector<3x273xf32> to vector<1x273xf32>
    %13 = vector.extract_strided_slice %10 {offsets = [2, 0], sizes = [1, 273], strides = [1, 1]} : vector<3x273xf32> to vector<1x273xf32>
    %c0_13 = arith.constant 0 : index
    %c111_14 = arith.constant 111 : index
    %14 = vector.load %arg8[%c0_13, %c111_14] : memref<8x512xf32, #tpu.memory_space<vmem>>, vector<8x273xf32>
    %15 = vector.broadcast %11 : vector<1x273xf32> to vector<8x273xf32>
    %16 = arith.mulf %14, %15 : vector<8x273xf32>
    %c0_15 = arith.constant 0 : index
    %c0_16 = arith.constant 0 : index
    %c0_17 = arith.constant 0 : index
    %17 = vector.load %arg3[%c0_15, %c0_16, %c0_17] : memref<9x8x8xf32, #tpu.memory_space<vmem>>, vector<1x8x8xf32>
    %18 = vector.shape_cast %17 : vector<1x8x8xf32> to vector<8x8xf32>
    %cst_18 = arith.constant dense<0.000000e+00> : vector<8x273xf32>
    %19 = tpu.matmul %18, %16, %cst_18 {dimension_numbers = #tpu.dot_dimension_numbers<[1], [0], [0], [1], [0, 0, 1, 1], [], []>} : vector<8x8xf32>, vector<8x273xf32>, vector<8x273xf32> -> vector<8x273xf32>
    %c0_19 = arith.constant 0 : index
    %c112 = arith.constant 112 : index
    %20 = vector.load %arg8[%c0_19, %c112] : memref<8x512xf32, #tpu.memory_space<vmem>>, vector<8x273xf32>
    %c1 = arith.constant 1 : index
    %c0_20 = arith.constant 0 : index
    %c0_21 = arith.constant 0 : index
    %21 = vector.load %arg3[%c1, %c0_20, %c0_21] : memref<9x8x8xf32, #tpu.memory_space<vmem>>, vector<1x8x8xf32>
    %22 = vector.shape_cast %21 : vector<1x8x8xf32> to vector<8x8xf32>
    %cst_22 = arith.constant dense<0.000000e+00> : vector<8x273xf32>
    %23 = tpu.matmul %22, %20, %cst_22 {dimension_numbers = #tpu.dot_dimension_numbers<[1], [0], [0], [1], [0, 0, 1, 1], [], []>} : vector<8x8xf32>, vector<8x273xf32>, vector<8x273xf32> -> vector<8x273xf32>
    %24 = arith.addf %19, %23 : vector<8x273xf32>
    %c0_23 = arith.constant 0 : index
    %c113 = arith.constant 113 : index
    %25 = vector.load %arg8[%c0_23, %c113] : memref<8x512xf32, #tpu.memory_space<vmem>>, vector<8x273xf32>
    %26 = vector.broadcast %12 : vector<1x273xf32> to vector<8x273xf32>
    %27 = arith.mulf %25, %26 : vector<8x273xf32>
    %c2 = arith.constant 2 : index
    %c0_24 = arith.constant 0 : index
    %c0_25 = arith.constant 0 : index
    %28 = vector.load %arg3[%c2, %c0_24, %c0_25] : memref<9x8x8xf32, #tpu.memory_space<vmem>>, vector<1x8x8xf32>
    %29 = vector.shape_cast %28 : vector<1x8x8xf32> to vector<8x8xf32>
    %cst_26 = arith.constant dense<0.000000e+00> : vector<8x273xf32>
    %30 = tpu.matmul %29, %27, %cst_26 {dimension_numbers = #tpu.dot_dimension_numbers<[1], [0], [0], [1], [0, 0, 1, 1], [], []>} : vector<8x8xf32>, vector<8x273xf32>, vector<8x273xf32> -> vector<8x273xf32>
    %31 = arith.addf %24, %30 : vector<8x273xf32>
    %c0_27 = arith.constant 0 : index
    %c127 = arith.constant 127 : index
    %32 = vector.load %arg8[%c0_27, %c127] : memref<8x512xf32, #tpu.memory_space<vmem>>, vector<8x273xf32>
    %33 = vector.broadcast %11 : vector<1x273xf32> to vector<8x273xf32>
    %34 = arith.mulf %32, %33 : vector<8x273xf32>
    %c3 = arith.constant 3 : index
    %c0_28 = arith.constant 0 : index
    %c0_29 = arith.constant 0 : index
    %35 = vector.load %arg3[%c3, %c0_28, %c0_29] : memref<9x8x8xf32, #tpu.memory_space<vmem>>, vector<1x8x8xf32>
    %36 = vector.shape_cast %35 : vector<1x8x8xf32> to vector<8x8xf32>
    %cst_30 = arith.constant dense<0.000000e+00> : vector<8x273xf32>
    %37 = tpu.matmul %36, %34, %cst_30 {dimension_numbers = #tpu.dot_dimension_numbers<[1], [0], [0], [1], [0, 0, 1, 1], [], []>} : vector<8x8xf32>, vector<8x273xf32>, vector<8x273xf32> -> vector<8x273xf32>
    %38 = arith.addf %31, %37 : vector<8x273xf32>
    %c0_31 = arith.constant 0 : index
    %c128_32 = arith.constant 128 : index
    %39 = vector.load %arg8[%c0_31, %c128_32] : memref<8x512xf32, #tpu.memory_space<vmem>>, vector<8x273xf32>
    %c4 = arith.constant 4 : index
    %c0_33 = arith.constant 0 : index
    %c0_34 = arith.constant 0 : index
    %40 = vector.load %arg3[%c4, %c0_33, %c0_34] : memref<9x8x8xf32, #tpu.memory_space<vmem>>, vector<1x8x8xf32>
    %41 = vector.shape_cast %40 : vector<1x8x8xf32> to vector<8x8xf32>
    %cst_35 = arith.constant dense<0.000000e+00> : vector<8x273xf32>
    %42 = tpu.matmul %41, %39, %cst_35 {dimension_numbers = #tpu.dot_dimension_numbers<[1], [0], [0], [1], [0, 0, 1, 1], [], []>} : vector<8x8xf32>, vector<8x273xf32>, vector<8x273xf32> -> vector<8x273xf32>
    %43 = arith.addf %38, %42 : vector<8x273xf32>
    %c0_36 = arith.constant 0 : index
    %c129 = arith.constant 129 : index
    %44 = vector.load %arg8[%c0_36, %c129] : memref<8x512xf32, #tpu.memory_space<vmem>>, vector<8x273xf32>
    %45 = vector.broadcast %12 : vector<1x273xf32> to vector<8x273xf32>
    %46 = arith.mulf %44, %45 : vector<8x273xf32>
    %c5 = arith.constant 5 : index
    %c0_37 = arith.constant 0 : index
    %c0_38 = arith.constant 0 : index
    %47 = vector.load %arg3[%c5, %c0_37, %c0_38] : memref<9x8x8xf32, #tpu.memory_space<vmem>>, vector<1x8x8xf32>
    %48 = vector.shape_cast %47 : vector<1x8x8xf32> to vector<8x8xf32>
    %cst_39 = arith.constant dense<0.000000e+00> : vector<8x273xf32>
    %49 = tpu.matmul %48, %46, %cst_39 {dimension_numbers = #tpu.dot_dimension_numbers<[1], [0], [0], [1], [0, 0, 1, 1], [], []>} : vector<8x8xf32>, vector<8x273xf32>, vector<8x273xf32> -> vector<8x273xf32>
    %50 = arith.addf %43, %49 : vector<8x273xf32>
    %c0_40 = arith.constant 0 : index
    %c143 = arith.constant 143 : index
    %51 = vector.load %arg8[%c0_40, %c143] : memref<8x512xf32, #tpu.memory_space<vmem>>, vector<8x273xf32>
    %52 = vector.broadcast %11 : vector<1x273xf32> to vector<8x273xf32>
    %53 = arith.mulf %51, %52 : vector<8x273xf32>
    %c6 = arith.constant 6 : index
    %c0_41 = arith.constant 0 : index
    %c0_42 = arith.constant 0 : index
    %54 = vector.load %arg3[%c6, %c0_41, %c0_42] : memref<9x8x8xf32, #tpu.memory_space<vmem>>, vector<1x8x8xf32>
    %55 = vector.shape_cast %54 : vector<1x8x8xf32> to vector<8x8xf32>
    %cst_43 = arith.constant dense<0.000000e+00> : vector<8x273xf32>
    %56 = tpu.matmul %55, %53, %cst_43 {dimension_numbers = #tpu.dot_dimension_numbers<[1], [0], [0], [1], [0, 0, 1, 1], [], []>} : vector<8x8xf32>, vector<8x273xf32>, vector<8x273xf32> -> vector<8x273xf32>
    %57 = arith.addf %50, %56 : vector<8x273xf32>
    %c0_44 = arith.constant 0 : index
    %c144 = arith.constant 144 : index
    %58 = vector.load %arg8[%c0_44, %c144] : memref<8x512xf32, #tpu.memory_space<vmem>>, vector<8x273xf32>
    %c7 = arith.constant 7 : index
    %c0_45 = arith.constant 0 : index
    %c0_46 = arith.constant 0 : index
    %59 = vector.load %arg3[%c7, %c0_45, %c0_46] : memref<9x8x8xf32, #tpu.memory_space<vmem>>, vector<1x8x8xf32>
    %60 = vector.shape_cast %59 : vector<1x8x8xf32> to vector<8x8xf32>
    %cst_47 = arith.constant dense<0.000000e+00> : vector<8x273xf32>
    %61 = tpu.matmul %60, %58, %cst_47 {dimension_numbers = #tpu.dot_dimension_numbers<[1], [0], [0], [1], [0, 0, 1, 1], [], []>} : vector<8x8xf32>, vector<8x273xf32>, vector<8x273xf32> -> vector<8x273xf32>
    %62 = arith.addf %57, %61 : vector<8x273xf32>
    %c0_48 = arith.constant 0 : index
    %c145 = arith.constant 145 : index
    %63 = vector.load %arg8[%c0_48, %c145] : memref<8x512xf32, #tpu.memory_space<vmem>>, vector<8x273xf32>
    %64 = vector.broadcast %12 : vector<1x273xf32> to vector<8x273xf32>
    %65 = arith.mulf %63, %64 : vector<8x273xf32>
    %c8 = arith.constant 8 : index
    %c0_49 = arith.constant 0 : index
    %c0_50 = arith.constant 0 : index
    %66 = vector.load %arg3[%c8, %c0_49, %c0_50] : memref<9x8x8xf32, #tpu.memory_space<vmem>>, vector<1x8x8xf32>
    %67 = vector.shape_cast %66 : vector<1x8x8xf32> to vector<8x8xf32>
    %cst_51 = arith.constant dense<0.000000e+00> : vector<8x273xf32>
    %68 = tpu.matmul %67, %65, %cst_51 {dimension_numbers = #tpu.dot_dimension_numbers<[1], [0], [0], [1], [0, 0, 1, 1], [], []>} : vector<8x8xf32>, vector<8x273xf32>, vector<8x273xf32> -> vector<8x273xf32>
    %69 = arith.addf %62, %68 : vector<8x273xf32>
    %c0_52 = arith.constant 0 : index
    %c0_53 = arith.constant 0 : index
    %70 = vector.load %arg4[%c0_52, %c0_53] : memref<8x1xf32, #tpu.memory_space<vmem>>, vector<8x1xf32>
    %71 = vector.broadcast %70 : vector<8x1xf32> to vector<8x273xf32>
    %72 = arith.addf %69, %71 : vector<8x273xf32>
    %cst_54 = arith.constant 0.000000e+00 : f32
    %73 = vector.broadcast %cst_54 : f32 to vector<8x273xf32>
    %74 = arith.maximumf %72, %73 : vector<8x273xf32>
    %75 = vector.broadcast %13 : vector<1x273xf32> to vector<8x273xf32>
    %76 = arith.mulf %74, %75 : vector<8x273xf32>
    %c0_55 = arith.constant 0 : index
    %c128_56 = arith.constant 128 : index
    %77 = vector.load %arg9[%c0_55, %c128_56] : memref<8x512xf32, #tpu.memory_space<vmem>>, vector<8x273xf32>
    tpu.vector_store %arg9[%c0_55, %c128_56], %76 {strides = array<i32>} : memref<8x512xf32, #tpu.memory_space<vmem>>, vector<8x273xf32>,
    %c0_57 = arith.constant 0 : index
    %c111_58 = arith.constant 111 : index
    %78 = vector.load %arg9[%c0_57, %c111_58] : memref<8x512xf32, #tpu.memory_space<vmem>>, vector<8x273xf32>
    %79 = vector.broadcast %11 : vector<1x273xf32> to vector<8x273xf32>
    %80 = arith.mulf %78, %79 : vector<8x273xf32>
    %c0_59 = arith.constant 0 : index
    %c0_60 = arith.constant 0 : index
    %c0_61 = arith.constant 0 : index
    %81 = vector.load %arg5[%c0_59, %c0_60, %c0_61] : memref<9x8x8xf32, #tpu.memory_space<vmem>>, vector<1x8x8xf32>
    %82 = vector.shape_cast %81 : vector<1x8x8xf32> to vector<8x8xf32>
    %cst_62 = arith.constant dense<0.000000e+00> : vector<8x273xf32>
    %83 = tpu.matmul %82, %80, %cst_62 {dimension_numbers = #tpu.dot_dimension_numbers<[1], [0], [0], [1], [0, 0, 1, 1], [], []>} : vector<8x8xf32>, vector<8x273xf32>, vector<8x273xf32> -> vector<8x273xf32>
    %c0_63 = arith.constant 0 : index
    %c112_64 = arith.constant 112 : index
    %84 = vector.load %arg9[%c0_63, %c112_64] : memref<8x512xf32, #tpu.memory_space<vmem>>, vector<8x273xf32>
    %c1_65 = arith.constant 1 : index
    %c0_66 = arith.constant 0 : index
    %c0_67 = arith.constant 0 : index
    %85 = vector.load %arg5[%c1_65, %c0_66, %c0_67] : memref<9x8x8xf32, #tpu.memory_space<vmem>>, vector<1x8x8xf32>
    %86 = vector.shape_cast %85 : vector<1x8x8xf32> to vector<8x8xf32>
    %cst_68 = arith.constant dense<0.000000e+00> : vector<8x273xf32>
    %87 = tpu.matmul %86, %84, %cst_68 {dimension_numbers = #tpu.dot_dimension_numbers<[1], [0], [0], [1], [0, 0, 1, 1], [], []>} : vector<8x8xf32>, vector<8x273xf32>, vector<8x273xf32> -> vector<8x273xf32>
    %88 = arith.addf %83, %87 : vector<8x273xf32>
    %c0_69 = arith.constant 0 : index
    %c113_70 = arith.constant 113 : index
    %89 = vector.load %arg9[%c0_69, %c113_70] : memref<8x512xf32, #tpu.memory_space<vmem>>, vector<8x273xf32>
    %90 = vector.broadcast %12 : vector<1x273xf32> to vector<8x273xf32>
    %91 = arith.mulf %89, %90 : vector<8x273xf32>
    %c2_71 = arith.constant 2 : index
    %c0_72 = arith.constant 0 : index
    %c0_73 = arith.constant 0 : index
    %92 = vector.load %arg5[%c2_71, %c0_72, %c0_73] : memref<9x8x8xf32, #tpu.memory_space<vmem>>, vector<1x8x8xf32>
    %93 = vector.shape_cast %92 : vector<1x8x8xf32> to vector<8x8xf32>
    %cst_74 = arith.constant dense<0.000000e+00> : vector<8x273xf32>
    %94 = tpu.matmul %93, %91, %cst_74 {dimension_numbers = #tpu.dot_dimension_numbers<[1], [0], [0], [1], [0, 0, 1, 1], [], []>} : vector<8x8xf32>, vector<8x273xf32>, vector<8x273xf32> -> vector<8x273xf32>
    %95 = arith.addf %88, %94 : vector<8x273xf32>
    %c0_75 = arith.constant 0 : index
    %c127_76 = arith.constant 127 : index
    %96 = vector.load %arg9[%c0_75, %c127_76] : memref<8x512xf32, #tpu.memory_space<vmem>>, vector<8x273xf32>
    %97 = vector.broadcast %11 : vector<1x273xf32> to vector<8x273xf32>
    %98 = arith.mulf %96, %97 : vector<8x273xf32>
    %c3_77 = arith.constant 3 : index
    %c0_78 = arith.constant 0 : index
    %c0_79 = arith.constant 0 : index
    %99 = vector.load %arg5[%c3_77, %c0_78, %c0_79] : memref<9x8x8xf32, #tpu.memory_space<vmem>>, vector<1x8x8xf32>
    %100 = vector.shape_cast %99 : vector<1x8x8xf32> to vector<8x8xf32>
    %cst_80 = arith.constant dense<0.000000e+00> : vector<8x273xf32>
    %101 = tpu.matmul %100, %98, %cst_80 {dimension_numbers = #tpu.dot_dimension_numbers<[1], [0], [0], [1], [0, 0, 1, 1], [], []>} : vector<8x8xf32>, vector<8x273xf32>, vector<8x273xf32> -> vector<8x273xf32>
    %102 = arith.addf %95, %101 : vector<8x273xf32>
    %c0_81 = arith.constant 0 : index
    %c128_82 = arith.constant 128 : index
    %103 = vector.load %arg9[%c0_81, %c128_82] : memref<8x512xf32, #tpu.memory_space<vmem>>, vector<8x273xf32>
    %c4_83 = arith.constant 4 : index
    %c0_84 = arith.constant 0 : index
    %c0_85 = arith.constant 0 : index
    %104 = vector.load %arg5[%c4_83, %c0_84, %c0_85] : memref<9x8x8xf32, #tpu.memory_space<vmem>>, vector<1x8x8xf32>
    %105 = vector.shape_cast %104 : vector<1x8x8xf32> to vector<8x8xf32>
    %cst_86 = arith.constant dense<0.000000e+00> : vector<8x273xf32>
    %106 = tpu.matmul %105, %103, %cst_86 {dimension_numbers = #tpu.dot_dimension_numbers<[1], [0], [0], [1], [0, 0, 1, 1], [], []>} : vector<8x8xf32>, vector<8x273xf32>, vector<8x273xf32> -> vector<8x273xf32>
    %107 = arith.addf %102, %106 : vector<8x273xf32>
    %c0_87 = arith.constant 0 : index
    %c129_88 = arith.constant 129 : index
    %108 = vector.load %arg9[%c0_87, %c129_88] : memref<8x512xf32, #tpu.memory_space<vmem>>, vector<8x273xf32>
    %109 = vector.broadcast %12 : vector<1x273xf32> to vector<8x273xf32>
    %110 = arith.mulf %108, %109 : vector<8x273xf32>
    %c5_89 = arith.constant 5 : index
    %c0_90 = arith.constant 0 : index
    %c0_91 = arith.constant 0 : index
    %111 = vector.load %arg5[%c5_89, %c0_90, %c0_91] : memref<9x8x8xf32, #tpu.memory_space<vmem>>, vector<1x8x8xf32>
    %112 = vector.shape_cast %111 : vector<1x8x8xf32> to vector<8x8xf32>
    %cst_92 = arith.constant dense<0.000000e+00> : vector<8x273xf32>
    %113 = tpu.matmul %112, %110, %cst_92 {dimension_numbers = #tpu.dot_dimension_numbers<[1], [0], [0], [1], [0, 0, 1, 1], [], []>} : vector<8x8xf32>, vector<8x273xf32>, vector<8x273xf32> -> vector<8x273xf32>
    %114 = arith.addf %107, %113 : vector<8x273xf32>
    %c0_93 = arith.constant 0 : index
    %c143_94 = arith.constant 143 : index
    %115 = vector.load %arg9[%c0_93, %c143_94] : memref<8x512xf32, #tpu.memory_space<vmem>>, vector<8x273xf32>
    %116 = vector.broadcast %11 : vector<1x273xf32> to vector<8x273xf32>
    %117 = arith.mulf %115, %116 : vector<8x273xf32>
    %c6_95 = arith.constant 6 : index
    %c0_96 = arith.constant 0 : index
    %c0_97 = arith.constant 0 : index
    %118 = vector.load %arg5[%c6_95, %c0_96, %c0_97] : memref<9x8x8xf32, #tpu.memory_space<vmem>>, vector<1x8x8xf32>
    %119 = vector.shape_cast %118 : vector<1x8x8xf32> to vector<8x8xf32>
    %cst_98 = arith.constant dense<0.000000e+00> : vector<8x273xf32>
    %120 = tpu.matmul %119, %117, %cst_98 {dimension_numbers = #tpu.dot_dimension_numbers<[1], [0], [0], [1], [0, 0, 1, 1], [], []>} : vector<8x8xf32>, vector<8x273xf32>, vector<8x273xf32> -> vector<8x273xf32>
    %121 = arith.addf %114, %120 : vector<8x273xf32>
    %c0_99 = arith.constant 0 : index
    %c144_100 = arith.constant 144 : index
    %122 = vector.load %arg9[%c0_99, %c144_100] : memref<8x512xf32, #tpu.memory_space<vmem>>, vector<8x273xf32>
    %c7_101 = arith.constant 7 : index
    %c0_102 = arith.constant 0 : index
    %c0_103 = arith.constant 0 : index
    %123 = vector.load %arg5[%c7_101, %c0_102, %c0_103] : memref<9x8x8xf32, #tpu.memory_space<vmem>>, vector<1x8x8xf32>
    %124 = vector.shape_cast %123 : vector<1x8x8xf32> to vector<8x8xf32>
    %cst_104 = arith.constant dense<0.000000e+00> : vector<8x273xf32>
    %125 = tpu.matmul %124, %122, %cst_104 {dimension_numbers = #tpu.dot_dimension_numbers<[1], [0], [0], [1], [0, 0, 1, 1], [], []>} : vector<8x8xf32>, vector<8x273xf32>, vector<8x273xf32> -> vector<8x273xf32>
    %126 = arith.addf %121, %125 : vector<8x273xf32>
    %c0_105 = arith.constant 0 : index
    %c145_106 = arith.constant 145 : index
    %127 = vector.load %arg9[%c0_105, %c145_106] : memref<8x512xf32, #tpu.memory_space<vmem>>, vector<8x273xf32>
    %128 = vector.broadcast %12 : vector<1x273xf32> to vector<8x273xf32>
    %129 = arith.mulf %127, %128 : vector<8x273xf32>
    %c8_107 = arith.constant 8 : index
    %c0_108 = arith.constant 0 : index
    %c0_109 = arith.constant 0 : index
    %130 = vector.load %arg5[%c8_107, %c0_108, %c0_109] : memref<9x8x8xf32, #tpu.memory_space<vmem>>, vector<1x8x8xf32>
    %131 = vector.shape_cast %130 : vector<1x8x8xf32> to vector<8x8xf32>
    %cst_110 = arith.constant dense<0.000000e+00> : vector<8x273xf32>
    %132 = tpu.matmul %131, %129, %cst_110 {dimension_numbers = #tpu.dot_dimension_numbers<[1], [0], [0], [1], [0, 0, 1, 1], [], []>} : vector<8x8xf32>, vector<8x273xf32>, vector<8x273xf32> -> vector<8x273xf32>
    %133 = arith.addf %126, %132 : vector<8x273xf32>
    %c0_111 = arith.constant 0 : index
    %c0_112 = arith.constant 0 : index
    %134 = vector.load %arg6[%c0_111, %c0_112] : memref<8x1xf32, #tpu.memory_space<vmem>>, vector<8x1xf32>
    %135 = vector.broadcast %134 : vector<8x1xf32> to vector<8x273xf32>
    %136 = arith.addf %133, %135 : vector<8x273xf32>
    %c0_113 = arith.constant 0 : index
    %c0_114 = arith.constant 0 : index
    %c0_115 = arith.constant 0 : index
    %137 = vector.load %arg1[%c0_113, %c0_114, %c0_115] : memref<1x8x256xf32, #tpu.memory_space<vmem>>, vector<1x8x256xf32>
    %138 = vector.shape_cast %137 : vector<1x8x256xf32> to vector<8x256xf32>
    %139 = vector.extract_strided_slice %136 {offsets = [0, 0], sizes = [8, 256], strides = [1, 1]} : vector<8x273xf32> to vector<8x256xf32>
    %140 = arith.addf %139, %138 : vector<8x256xf32>
    %cst_116 = arith.constant 0.000000e+00 : f32
    %141 = vector.broadcast %cst_116 : f32 to vector<8x256xf32>
    %142 = arith.maximumf %140, %141 : vector<8x256xf32>
    %c0_117 = arith.constant 0 : index
    %c0_118 = arith.constant 0 : index
    %c0_119 = arith.constant 0 : index
    %143 = vector.load %arg7[%c0_117, %c0_118, %c0_119] : memref<1x8x256xf32, #tpu.memory_space<vmem>>, vector<1x8x256xf32>
    %144 = vector.shape_cast %143 : vector<1x8x256xf32> to vector<8x256xf32>
    %145 = vector.shape_cast %142 : vector<8x256xf32> to vector<1x8x256xf32>
    tpu.vector_store %arg7[%c0_117, %c0_118, %c0_119], %145 {strides = array<i32>} : memref<1x8x256xf32, #tpu.memory_space<vmem>>, vector<1x8x256xf32>,
    return
  }
  func.func @transform_0(%arg0: i32) -> (i32, i32, i32) {
    %c0_i32 = arith.constant 0 : i32
    %c0_i32_0 = arith.constant 0 : i32
    %c0_i32_1 = arith.constant 0 : i32
    return %arg0, %c0_i32, %c0_i32_0 : i32, i32, i32
  }
  func.func @transform_1(%arg0: i32) -> (i32, i32) {
    %c0_i32 = arith.constant 0 : i32
    %c0_i32_0 = arith.constant 0 : i32
    %c0_i32_1 = arith.constant 0 : i32
    return %c0_i32, %c0_i32_0 : i32, i32
  }
  func.func @transform_2(%arg0: i32) -> (i32, i32, i32) {
    %c0_i32 = arith.constant 0 : i32
    %c0_i32_0 = arith.constant 0 : i32
    %c0_i32_1 = arith.constant 0 : i32
    %c0_i32_2 = arith.constant 0 : i32
    return %c0_i32, %c0_i32_0, %c0_i32_1 : i32, i32, i32
  }
  func.func @transform_3(%arg0: i32) -> (i32, i32) {
    %c0_i32 = arith.constant 0 : i32
    %c0_i32_0 = arith.constant 0 : i32
    %c0_i32_1 = arith.constant 0 : i32
    return %c0_i32, %c0_i32_0 : i32, i32
  }
  func.func @transform_4(%arg0: i32) -> (i32, i32, i32) {
    %c0_i32 = arith.constant 0 : i32
    %c0_i32_0 = arith.constant 0 : i32
    %c0_i32_1 = arith.constant 0 : i32
    %c0_i32_2 = arith.constant 0 : i32
    return %c0_i32, %c0_i32_0, %c0_i32_1 : i32, i32, i32
  }
  func.func @transform_5(%arg0: i32) -> (i32, i32) {
    %c0_i32 = arith.constant 0 : i32
    %c0_i32_0 = arith.constant 0 : i32
    %c0_i32_1 = arith.constant 0 : i32
    return %c0_i32, %c0_i32_0 : i32, i32
  }
  func.func @transform_6(%arg0: i32) -> (i32, i32, i32) {
    %c0_i32 = arith.constant 0 : i32
    %c0_i32_0 = arith.constant 0 : i32
    %c0_i32_1 = arith.constant 0 : i32
    return %arg0, %c0_i32, %c0_i32_0 : i32, i32, i32
  }
}

</mosaic_0001>

<llo_original>
// kernel: tpu_custom_call.1
$region0: #{tpu_custom_call.1}
  #allocation0 [shape = 'u32[]', space=smem, size = 0x4, offset = 0x4, fixed_abs, tag = 'smem constant byte address 0x4 - core index']
  #allocation1 [shape = 'u32[144,128]{1,0:T(1,128)}', space=vmem, size = 0x12000, scoped, tag = 'internal scratch']
  #allocation2 [shape = 'f32[8,512]{1,0:T(8,128)}', space=vmem, size = 0x4000, scoped, tag = 'scratch operand']
  #allocation3 [shape = 'f32[8,512]{1,0:T(8,128)}', space=vmem, size = 0x4000, scoped, tag = 'scratch operand']
  %s0 = inlined_call_operand.vmem [shape: f32[2,8,256], index: 0, kind: input, shape index: {}]
  %s1 = inlined_call_operand.vmem [shape: f32[3,273], index: 1, kind: input, shape index: {}]
  %s2 = inlined_call_operand.vmem [shape: f32[9,8,8], index: 2, kind: input, shape index: {}]
  %s3 = inlined_call_operand.vmem [shape: f32[8,1], index: 3, kind: input, shape index: {}]
  %s4 = inlined_call_operand.vmem [shape: f32[9,8,8], index: 4, kind: input, shape index: {}]
  %s5 = inlined_call_operand.vmem [shape: f32[8,1], index: 5, kind: input, shape index: {}]
  %s6 = inlined_call_operand.hbm [shape: f32[2,8,256], index: 6, kind: output, shape index: {}]
  %s7 = sld [smem:[#allocation0]]
  $region57: #{tpu_custom_call.1} parent=0
    _
  %s9 = ssub.s32 1, %s7
  %s10 = scalar_select 0, %s9, %s7
  $region1: #{tpu_custom_call.1} parent=0
    #allocation4 [shape = 'u8[16384]{0}', space=vmem, size = 0x4000, scoped, tag = 'output window, operand 0']
    #allocation5 [shape = 's32[2]{0}', space=sflag, size = 0x8, scoped, tag = 'scoped memory for tpu_custom_call.1']
    %11 = vsyncpa [#allocation5], 0
    %s12 = scalar_lea.sflag [#allocation5], 1
    %13 = vsyncpa %s12, 0
    loop: start=0, step=1, limit=4
    $region2: #{tpu_custom_call.1} parent=1 // loop_pre_header
      _
    $region3: #{tpu_custom_call.1} parent=1 // loop_header
      %s15 = sphi 0, %s19
      %p16 = scmp.ge.s32.totalorder %s15, 4
      %s25 = sphi 0, %s27
      %s28 = sphi 0, %s25
      %s29 = sphi 0, %s28
      %s45 = sphi 0, %s29
      %s49 = sphi 0, %s49
      %s51 = sphi 0, %s49
      %s52 = sphi 0, %s51
      %s66 = sphi 0, %s52
      %s70 = sphi 0, %s70
      %s72 = sphi 0, %s70
      %s73 = sphi 0, %s72
      %s87 = sphi 0, %s73
      %s91 = sphi 0, %s91
      %s93 = sphi 0, %s91
      %s94 = sphi 0, %s93
      %s108 = sphi 0, %s94
      %s112 = sphi 0, %s112
      %s114 = sphi 0, %s112
      %s115 = sphi 0, %s114
      %s129 = sphi 0, %s115
      %s133 = sphi 0, %s133
      %s135 = sphi 0, %s133
      %s136 = sphi 0, %s135
      %s150 = sphi 0, %s136
      %s156 = sphi 0, %s158
      %s159 = sphi 0, %s156
      %s160 = sphi 0, %s159
      %s176 = sphi 0, %s160
    $region4: #{tpu_custom_call.1} parent=1 // loop_header_branch
      %18 = sbr.rel (%p16) target = $region8
    $region5: #{tpu_custom_call.1} parent=1 // loop_body
      %s20 = ssub.s32 %s15, 1
      %s21 = ssub.s32 %s15, 2
      %s22 = sadd.s32 %s15, 1
      %s23 = ssub.s32 %s15, %s22
      %p24 = scmp.eq.s32.totalorder %s23, 0
      %s26 = sadd.s32 %s25, 1
      %s27 = scalar_select %p24, %s25, %s26
      %p30 = pneg %p24
      %p31 = scmp.eq.s32.totalorder %s15, 1
      %p32 = por %p30, %p31
      %p33 = scmp.ne.s32.totalorder %s25, %s28
      %p34 = scmp.eq.s32.totalorder %s15, 0
      %p35 = por %p33, %p34
      %p36 = scmp.ne.s32.totalorder %s25, %s28
      %p37 = scmp.eq.s32.totalorder %s20, 1
      %p38 = por %p36, %p37
      %p39 = scmp.ne.s32.totalorder %s28, %s29
      %p40 = scmp.eq.s32.totalorder %s20, 0
      %p41 = por %p39, %p40
      %p42 = scmp.ne.s32.totalorder %s28, %s29
      %p43 = scmp.eq.s32.totalorder %s21, 1
      %p44 = por %p42, %p43
      %p46 = scmp.ne.s32.totalorder %s29, %s45
      %p47 = scmp.eq.s32.totalorder %s21, 0
      %p48 = por %p46, %p47
      %s50 = sadd.s32 %s49, 1
      %p53 = scmp.eq.s32.totalorder %s15, 1
      %p54 = scmp.ne.s32.totalorder %s49, %s51
      %p55 = scmp.eq.s32.totalorder %s15, 0
      %p56 = por %p54, %p55
      %p57 = scmp.ne.s32.totalorder %s49, %s51
      %p58 = scmp.eq.s32.totalorder %s20, 1
      %p59 = por %p57, %p58
      %p60 = scmp.ne.s32.totalorder %s51, %s52
      %p61 = scmp.eq.s32.totalorder %s20, 0
      %p62 = por %p60, %p61
      %p63 = scmp.ne.s32.totalorder %s51, %s52
      %p64 = scmp.eq.s32.totalorder %s21, 1
      %p65 = por %p63, %p64
      %p67 = scmp.ne.s32.totalorder %s52, %s66
      %p68 = scmp.eq.s32.totalorder %s21, 0
      %p69 = por %p67, %p68
      %s71 = sadd.s32 %s70, 1
      %p74 = scmp.eq.s32.totalorder %s15, 1
      %p75 = scmp.ne.s32.totalorder %s70, %s72
      %p76 = scmp.eq.s32.totalorder %s15, 0
      %p77 = por %p75, %p76
      %p78 = scmp.ne.s32.totalorder %s70, %s72
      %p79 = scmp.eq.s32.totalorder %s20, 1
      %p80 = por %p78, %p79
      %p81 = scmp.ne.s32.totalorder %s72, %s73
      %p82 = scmp.eq.s32.totalorder %s20, 0
      %p83 = por %p81, %p82
      %p84 = scmp.ne.s32.totalorder %s72, %s73
      %p85 = scmp.eq.s32.totalorder %s21, 1
      %p86 = por %p84, %p85
      %p88 = scmp.ne.s32.totalorder %s73, %s87
      %p89 = scmp.eq.s32.totalorder %s21, 0
      %p90 = por %p88, %p89
      %s92 = sadd.s32 %s91, 1
      %p95 = scmp.eq.s32.totalorder %s15, 1
      %p96 = scmp.ne.s32.totalorder %s91, %s93
      %p97 = scmp.eq.s32.totalorder %s15, 0
      %p98 = por %p96, %p97
      %p99 = scmp.ne.s32.totalorder %s91, %s93
      %p100 = scmp.eq.s32.totalorder %s20, 1
      %p101 = por %p99, %p100
      %p102 = scmp.ne.s32.totalorder %s93, %s94
      %p103 = scmp.eq.s32.totalorder %s20, 0
      %p104 = por %p102, %p103
      %p105 = scmp.ne.s32.totalorder %s93, %s94
      %p106 = scmp.eq.s32.totalorder %s21, 1
      %p107 = por %p105, %p106
      %p109 = scmp.ne.s32.totalorder %s94, %s108
      %p110 = scmp.eq.s32.totalorder %s21, 0
      %p111 = por %p109, %p110
      %s113 = sadd.s32 %s112, 1
      %p116 = scmp.eq.s32.totalorder %s15, 1
      %p117 = scmp.ne.s32.totalorder %s112, %s114
      %p118 = scmp.eq.s32.totalorder %s15, 0
      %p119 = por %p117, %p118
      %p120 = scmp.ne.s32.totalorder %s112, %s114
      %p121 = scmp.eq.s32.totalorder %s20, 1
      %p122 = por %p120, %p121
      %p123 = scmp.ne.s32.totalorder %s114, %s115
      %p124 = scmp.eq.s32.totalorder %s20, 0
      %p125 = por %p123, %p124
      %p126 = scmp.ne.s32.totalorder %s114, %s115
      %p127 = scmp.eq.s32.totalorder %s21, 1
      %p128 = por %p126, %p127
      %p130 = scmp.ne.s32.totalorder %s115, %s129
      %p131 = scmp.eq.s32.totalorder %s21, 0
      %p132 = por %p130, %p131
      %s134 = sadd.s32 %s133, 1
      %p137 = scmp.eq.s32.totalorder %s15, 1
      %p138 = scmp.ne.s32.totalorder %s133, %s135
      %p139 = scmp.eq.s32.totalorder %s15, 0
      %p140 = por %p138, %p139
      %p141 = scmp.ne.s32.totalorder %s133, %s135
      %p142 = scmp.eq.s32.totalorder %s20, 1
      %p143 = por %p141, %p142
      %p144 = scmp.ne.s32.totalorder %s135, %s136
      %p145 = scmp.eq.s32.totalorder %s20, 0
      %p146 = por %p144, %p145
      %p147 = scmp.ne.s32.totalorder %s135, %s136
      %p148 = scmp.eq.s32.totalorder %s21, 1
      %p149 = por %p147, %p148
      %p151 = scmp.ne.s32.totalorder %s136, %s150
      %p152 = scmp.eq.s32.totalorder %s21, 0
      %p153 = por %p151, %p152
      %s154 = ssub.s32 %s15, %s22
      %p155 = scmp.eq.s32.totalorder %s154, 0
      %s157 = sadd.s32 %s156, 1
      %s158 = scalar_select %p155, %s156, %s157
      %p161 = pneg %p155
      %p162 = scmp.eq.s32.totalorder %s15, 1
      %p163 = por %p161, %p162
      %p164 = scmp.ne.s32.totalorder %s156, %s159
      %p165 = scmp.eq.s32.totalorder %s15, 0
      %p166 = por %p164, %p165
      %p167 = scmp.ne.s32.totalorder %s156, %s159
      %p168 = scmp.eq.s32.totalorder %s20, 1
      %p169 = por %p167, %p168
      %p170 = scmp.ne.s32.totalorder %s159, %s160
      %p171 = scmp.eq.s32.totalorder %s20, 0
      %p172 = por %p170, %p171
      %p173 = scmp.ne.s32.totalorder %s159, %s160
      %p174 = scmp.eq.s32.totalorder %s21, 1
      %p175 = por %p173, %p174
      %p177 = scmp.ne.s32.totalorder %s160, %s176
      %p178 = scmp.eq.s32.totalorder %s21, 0
      %p179 = por %p177, %p178
      %p180 = scmp.le.s32.totalorder 1, %s15
      %p181 = scmp.lt.s32.totalorder %s15, 3
      %p182 = pnand %p180, %p181
      %p183 = pneg %p182
      // Predicated region
      $region9: #{tpu_custom_call.1} parent=5 // pred_check
        _
      $region10: #{tpu_custom_call.1} parent=5 // pred_check_branch
        %185 = sbr.rel (%p182) target = $region12
      $region11: #{tpu_custom_call.1} parent=5 // pred_region
        %s186 = ssub.s32 %s15, 1
        // Predicated region
        $region13: #{tpu_custom_call.1} parent=11 // pred_check
          %p187 = pneg %p62
        $region14: #{tpu_custom_call.1} parent=11 // pred_check_branch
          %189 = sbr.rel (%p187) target = $region16
        $region15: #{tpu_custom_call.1} parent=11 // pred_region
          _
        $region16: #{tpu_custom_call.1} parent=11 // pred_fallthru
          _
        // Predicated region
        $region17: #{tpu_custom_call.1} parent=11 // pred_check
          %p190 = pneg %p83
        $region18: #{tpu_custom_call.1} parent=11 // pred_check_branch
          %192 = sbr.rel (%p190) target = $region20
        $region19: #{tpu_custom_call.1} parent=11 // pred_region
          _
        $region20: #{tpu_custom_call.1} parent=11 // pred_fallthru
          _
        // Predicated region
        $region21: #{tpu_custom_call.1} parent=11 // pred_check
          %p193 = pneg %p104
        $region22: #{tpu_custom_call.1} parent=11 // pred_check_branch
          %195 = sbr.rel (%p193) target = $region24
        $region23: #{tpu_custom_call.1} parent=11 // pred_region
          _
        $region24: #{tpu_custom_call.1} parent=11 // pred_fallthru
          _
        // Predicated region
        $region25: #{tpu_custom_call.1} parent=11 // pred_check
          %p196 = pneg %p125
        $region26: #{tpu_custom_call.1} parent=11 // pred_check_branch
          %198 = sbr.rel (%p196) target = $region28
        $region27: #{tpu_custom_call.1} parent=11 // pred_region
          _
        $region28: #{tpu_custom_call.1} parent=11 // pred_fallthru
          _
        // Predicated region
        $region29: #{tpu_custom_call.1} parent=11 // pred_check
          %p199 = pneg %p146
        $region30: #{tpu_custom_call.1} parent=11 // pred_check_branch
          %201 = sbr.rel (%p199) target = $region32
        $region31: #{tpu_custom_call.1} parent=11 // pred_region
          _
        $region32: #{tpu_custom_call.1} parent=11 // pred_fallthru
          _
      $region12: #{tpu_custom_call.1} parent=5 // pred_fallthru
        _
      %p202 = scmp.lt.s32.totalorder %s15, 2
      // Predicated region
      $region33: #{tpu_custom_call.1} parent=5 // pred_check
        %p203 = pneg %p202
      $region34: #{tpu_custom_call.1} parent=5 // pred_check_branch
        %205 = sbr.rel (%p203) target = $region36
      $region35: #{tpu_custom_call.1} parent=5 // pred_region
        // Predicated region
        $region37: #{tpu_custom_call.1} parent=35 // pred_check
          %p206 = pneg %p35
        $region38: #{tpu_custom_call.1} parent=35 // pred_check_branch
          %208 = sbr.rel (%p206) target = $region40
        $region39: #{tpu_custom_call.1} parent=35 // pred_region
          %p209 = scmp.lt.s32.totalorder %s15, 1
          %s210 = scalar_select %p209, %s15, 1
          %s211 = smul.addr %s210, 2
          %s212 = smul.addr %s211, 8
          %s213 = scalar_lea.vmem %s0, %s212
        $region40: #{tpu_custom_call.1} parent=35 // pred_fallthru
          _
      $region36: #{tpu_custom_call.1} parent=5 // pred_fallthru
        _
      %p214 = scmp.le.s32.totalorder 1, %s15
      %p215 = scmp.lt.s32.totalorder %s15, 3
      %p216 = pnand %p214, %p215
      %p217 = pneg %p216
      // Predicated region
      $region41: #{tpu_custom_call.1} parent=5 // pred_check
        _
      $region42: #{tpu_custom_call.1} parent=5 // pred_check_branch
        %219 = sbr.rel (%p216) target = $region44
      $region43: #{tpu_custom_call.1} parent=5 // pred_region
        %s220 = ssub.s32 %s15, 1
        %p221 = scmp.lt.s32.totalorder %s20, 1
        %s222 = scalar_select %p221, %s20, 1
        %s223 = smul.addr %s222, 2
        %s224 = smul.addr %s223, 8
        %s225 = scalar_lea.vmem %s0, %s224
        %p226 = pneg %p41
        %p227 = pneg %p38
        %p228 = pneg %p62
        %p229 = pneg %p59
        %p230 = pneg %p83
        %p231 = pneg %p80
        %p232 = pneg %p104
        %p233 = pneg %p101
        %p234 = pneg %p125
        %p235 = pneg %p122
        %p236 = pneg %p146
        %p237 = pneg %p143
        %p238 = pneg %p172
        %p239 = pneg %p169
        %s240 = sand.u32 %s159, 1
        %s241 = scalar_lea.sflag [#allocation5], %s240
        %s242 = sand.u32 %s159, 1
        %s243 = smul.addr %s242, 16
        %s244 = scalar_lea.vmem [#allocation4], %s243
        %p245 = scmp.lt.s32.totalorder %s20, 1
        %s246 = scalar_select %p245, %s20, 1
        %s247 = smul.addr %s246, 2
        %s248 = smul.addr %s247, 8
        %s249 = scalar_lea.vmem %s0, %s248
        %vm250 = vcmask 1048440
        %251 = vst.msk [vmem:[#allocation2] sm:$0xff] %vm250, 0.0
        %252 = vst.msk [vmem:[#allocation3] sm:$0xff] %vm250, 0.0
        %vm253 = vcmask 277640
        %254 = vst.msk [vmem:[#allocation2 + $0x18] sm:$0xff] %vm253, 0.0
        %255 = vst.msk [vmem:[#allocation3 + $0x18] sm:$0xff] %vm253, 0.0
        %vm256 = vcmask 138240
        %257 = vst.msk [vmem:[#allocation2 + $0x18] sm:$0xff] %vm256, 0.0
        %v258 = vld [vmem:[%s249] sm:$0xff]
        %v259 = vld [vmem:[%s249 + $0x8] sm:$0xff]
        %260 = vst [vmem:[#allocation2 + $0x8] sm:$0xff] %v258
        %261 = vst [vmem:[#allocation2 + $0x10] sm:$0xff] %v259
        %v262 = vld [vmem:[%s1] sm:$0x77]
        %v263 = vld [vmem:[%s1 + $0x8] sm:$0x7]
        %v264 = vld [vmem:[#allocation2] sm:$0xff]
        %v265 = vld [vmem:[#allocation2 + $0x8] sm:$0xff]
        %v266 = vld [vmem:[#allocation2 + $0x10] sm:$0xff]
        %v269 = vlaneseq
        %v270 = vshrl.u32 %v269, 7
        %v271 = vsub.s32 0, %v270
        %v272 = vrot.slane %v262, %v271
        %v273 = vlaneseq
        %v274 = vshrl.u32 %v273, 7
        %v275 = vsub.s32 4, %v274
        %v276 = vrot.slane %v262, %v275
        %v277 = vlaneseq
        %v278 = vshrl.u32 %v277, 7
        %v279 = vsub.s32 0, %v278
        %v280 = vrot.slane %v263, %v279
        %v284 = vlaneseq
        %v285 = vshrl.u32 %v284, 7
        %v286 = vsub.s32 0, %v285
        %v287 = vrot.slane %v272, %v286
        %v288 = vlaneseq
        %v289 = vshrl.u32 %v288, 7
        %v290 = vsub.s32 0, %v289
        %v291 = vrot.slane %v276, %v290
        %v292 = vlaneseq
        %v293 = vshrl.u32 %v292, 7
        %v294 = vsub.s32 0, %v293
        %v295 = vrot.slane %v280, %v294
        %299 = vrot.lane.b32.xlu0 %v287, 111
        %v300 = vpop.permute.xlu0 %299
        %301 = vrot.lane.b32.xlu0 %v291, 111
        %v302 = vpop.permute.xlu0 %301
        %303 = vrot.lane.b32.xlu0 %v295, 111
        %v304 = vpop.permute.xlu0 %303
        %vm305 = vcmask 908288
        %v306 = vsel %vm305, %v300, %v302
        %v307 = vsel %vm305, %v302, %v304
        %v311 = vmul.f32 %v264, %v300
        %v312 = vmul.f32 %v265, %v306
        %v313 = vmul.f32 %v266, %v307
        %v314 = vld [vmem:[%s2] sm:$0xff]
        %v315 = vld [vmem:[#allocation2] sm:$0xff]
        %v316 = vld [vmem:[#allocation2 + $0x8] sm:$0xff]
        %v317 = vld [vmem:[#allocation2 + $0x10] sm:$0xff]
        %v318 = vld [vmem:[#allocation2 + $0x18] sm:$0xff]
        %s319 = scalar_lea.vmem %s2, 8
        %v320 = vld [vmem:[%s319] sm:$0xff]
        %325 = vrot.lane.b32.xlu0 %v315, 16
        %v326 = vpop.permute.xlu0 %325
        %327 = vrot.lane.b32.xlu0 %v316, 16
        %v328 = vpop.permute.xlu0 %327
        %329 = vrot.lane.b32.xlu0 %v317, 16
        %v330 = vpop.permute.xlu0 %329
        %331 = vrot.lane.b32.xlu0 %v318, 16
        %v332 = vpop.permute.xlu0 %331
        %vm333 = vcmask 130048
        %v334 = vsel %vm333, %v326, %v328
        %v335 = vsel %vm333, %v328, %v330
        %v336 = vsel %vm333, %v330, %v332
        %vm340 = vcmask 64512
        %v342 = vsel %vm340, %v320, 0
        %344 = vmatprep.subr.mxu0 %v335
        %345 = vmatpush1.msra.mxu0 %v334
        %346 = vmatprep.subr.mxu0 0.0
        %347 = vmatpush1.msra.mxu0 0.0
        %348 = vmatprep.subr.mxu0 0.0
        %349 = vmatpush1.msra.mxu0 0.0
        %350 = vmatprep.subr.mxu0 0.0
        %351 = vmatpush1.msra.mxu0 0.0
        %352 = vmatprep.subr.mxu0 0.0
        %353 = vmatpush1.msra.mxu0 0.0
        %354 = vmatprep.subr.mxu0 0.0
        %355 = vmatpush1.msra.mxu0 0.0
        %356 = vmatprep.subr.mxu0 0.0
        %357 = vmatpush1.msra.mxu0 0.0
        %358 = vmatprep.subr.mxu0 0.0
        %359 = vmatpush1.msra.mxu0 0.0
        %360 = vmatprep.subr.mxu0 0.0
        %361 = vmatpush1.msra.mxu0 0.0
        %362 = vmatprep.subr.mxu0 0.0
        %363 = vmatpush1.msra.mxu0 0.0
        %364 = vmatprep.subr.mxu0 0.0
        %365 = vmatpush1.msra.mxu0 0.0
        %366 = vmatprep.subr.mxu0 0.0
        %367 = vmatpush1.msra.mxu0 0.0
        %368 = vmatprep.subr.mxu0 0.0
        %369 = vmatpush1.msra.mxu0 0.0
        %370 = vmatprep.subr.mxu0 0.0
        %371 = vmatpush1.msra.mxu0 0.0
        %372 = vmatprep.subr.mxu0 0.0
        %373 = vmatpush1.msra.mxu0 0.0
        %374 = vmatprep.subr.mxu0 0.0
        %375 = vmatpush1.msra.mxu0 0.0
        %376 = vmatprep.subr.mxu0 0.0
        %377 = vmatpush1.msra.mxu0 0.0
        %378 = vmatprep.subr.mxu0 0.0
        %379 = vmatpush1.msra.mxu0 0.0
        %380 = vmatprep.subr.mxu0 0.0
        %381 = vmatpush1.msra.mxu0 0.0
        %382 = vmatprep.subr.mxu0 0.0
        %383 = vmatpush1.msra.mxu0 0.0
        %384 = vmatprep.subr.mxu0 0.0
        %385 = vmatpush1.msra.mxu0 0.0
        %386 = vmatprep.subr.mxu0 0.0
        %387 = vmatpush1.msra.mxu0 0.0
        %388 = vmatprep.subr.mxu0 0.0
        %389 = vmatpush1.msra.mxu0 0.0
        %390 = vmatprep.subr.mxu0 0.0
        %391 = vmatpush1.msra.mxu0 0.0
        %392 = vmatprep.subr.mxu0 0.0
        %393 = vmatpush1.msra.mxu0 0.0
        %394 = vmatprep.subr.mxu0 0.0
        %395 = vmatpush1.msra.mxu0 0.0
        %396 = vmatprep.subr.mxu0 0.0
        %397 = vmatpush1.msra.mxu0 0.0
        %398 = vmatprep.subr.mxu0 0.0
        %399 = vmatpush1.msra.mxu0 0.0
        %400 = vmatprep.subr.mxu0 0.0
        %401 = vmatpush1.msra.mxu0 0.0
        %402 = vmatprep.subr.mxu0 0.0
        %403 = vmatpush1.msra.mxu0 0.0
        %404 = vmatprep.subr.mxu0 0.0
        %405 = vmatpush1.msra.mxu0 0.0
        %406 = vmatprep.subr.mxu0 0.0
        %407 = vmatpush1.msra.mxu0 0.0
        %408 = vmatprep.mubr.f32.mxu0 0.0
        %409 = vmatmul.mubr.f32.gmra.mrb[0].mxu0 %v342
        %v410 = vpop.f32.mrb[0].mxu0
        %v411 = vadd.f32 0.0, %v410
        %v412 = vpop.f32.mrb[0].mxu0
        %v413 = vadd.f32 0.0, %v412
        %414 = vdwg.mxu0
        %415 = vmatprep.subr.mxu0 0.0
        %416 = vmatpush1.msra.mxu0 %v336
        %417 = vmatprep.subr.mxu0 0.0
        %418 = vmatpush1.msra.mxu0 0.0
        %419 = vmatprep.subr.mxu0 0.0
        %420 = vmatpush1.msra.mxu0 0.0
        %421 = vmatprep.subr.mxu0 0.0
        %422 = vmatpush1.msra.mxu0 0.0
        %423 = vmatprep.subr.mxu0 0.0
        %424 = vmatpush1.msra.mxu0 0.0
        %425 = vmatprep.subr.mxu0 0.0
        %426 = vmatpush1.msra.mxu0 0.0
        %427 = vmatprep.subr.mxu0 0.0
        %428 = vmatpush1.msra.mxu0 0.0
        %429 = vmatprep.subr.mxu0 0.0
        %430 = vmatpush1.msra.mxu0 0.0
        %431 = vmatprep.subr.mxu0 0.0
        %432 = vmatpush1.msra.mxu0 0.0
        %433 = vmatprep.subr.mxu0 0.0
        %434 = vmatpush1.msra.mxu0 0.0
        %435 = vmatprep.subr.mxu0 0.0
        %436 = vmatpush1.msra.mxu0 0.0
        %437 = vmatprep.subr.mxu0 0.0
        %438 = vmatpush1.msra.mxu0 0.0
        %439 = vmatprep.subr.mxu0 0.0
        %440 = vmatpush1.msra.mxu0 0.0
        %441 = vmatprep.subr.mxu0 0.0
        %442 = vmatpush1.msra.mxu0 0.0
        %443 = vmatprep.subr.mxu0 0.0
        %444 = vmatpush1.msra.mxu0 0.0
        %445 = vmatprep.subr.mxu0 0.0
        %446 = vmatpush1.msra.mxu0 0.0
        %447 = vmatprep.subr.mxu0 0.0
        %448 = vmatpush1.msra.mxu0 0.0
        %449 = vmatprep.subr.mxu0 0.0
        %450 = vmatpush1.msra.mxu0 0.0
        %451 = vmatprep.subr.mxu0 0.0
        %452 = vmatpush1.msra.mxu0 0.0
        %453 = vmatprep.subr.mxu0 0.0
        %454 = vmatpush1.msra.mxu0 0.0
        %455 = vmatprep.subr.mxu0 0.0
        %456 = vmatpush1.msra.mxu0 0.0
        %457 = vmatprep.subr.mxu0 0.0
        %458 = vmatpush1.msra.mxu0 0.0
        %459 = vmatprep.subr.mxu0 0.0
        %460 = vmatpush1.msra.mxu0 0.0
        %461 = vmatprep.subr.mxu0 0.0
        %462 = vmatpush1.msra.mxu0 0.0
        %463 = vmatprep.subr.mxu0 0.0
        %464 = vmatpush1.msra.mxu0 0.0
        %465 = vmatprep.subr.mxu0 0.0
        %466 = vmatpush1.msra.mxu0 0.0
        %467 = vmatprep.subr.mxu0 0.0
        %468 = vmatpush1.msra.mxu0 0.0
        %469 = vmatprep.subr.mxu0 0.0
        %470 = vmatpush1.msra.mxu0 0.0
        %471 = vmatprep.subr.mxu0 0.0
        %472 = vmatpush1.msra.mxu0 0.0
        %473 = vmatprep.subr.mxu0 0.0
        %474 = vmatpush1.msra.mxu0 0.0
        %475 = vmatprep.subr.mxu0 0.0
        %476 = vmatpush1.msra.mxu0 0.0
        %477 = vmatprep.subr.mxu0 0.0
        %478 = vmatpush1.msra.mxu0 0.0
        %479 = vmatprep.mubr.f32.mxu0 0.0
        %480 = vmatmul.mubr.f32.gmra.mrb[0].mxu0 %v342
        %v481 = vpop.f32.mrb[0].mxu0
        %v482 = vadd.f32 0.0, %v481
        %v483 = vpop.f32.mrb[0].mxu0
        %484 = vdwg.mxu0
        %488 = vrot.lane.b32.xlu0 %v311, 17
        %v489 = vpop.permute.xlu0 %488
        %490 = vrot.lane.b32.xlu0 %v312, 17
        %v491 = vpop.permute.xlu0 %490
        %492 = vrot.lane.b32.xlu0 %v313, 17
        %v493 = vpop.permute.xlu0 %492
        %v494 = vsel %vm256, %v489, %v491
        %v495 = vsel %vm256, %v491, %v493
        %v500 = vsel %vm340, %v314, 0
        %502 = vmatprep.subr.mxu0 %v495
        %503 = vmatpush1.msra.mxu0 %v494
        %504 = vmatprep.subr.mxu0 0.0
        %505 = vmatpush1.msra.mxu0 0.0
        %506 = vmatprep.subr.mxu0 0.0
        %507 = vmatpush1.msra.mxu0 0.0
        %508 = vmatprep.subr.mxu0 0.0
        %509 = vmatpush1.msra.mxu0 0.0
        %510 = vmatprep.subr.mxu0 0.0
        %511 = vmatpush1.msra.mxu0 0.0
        %512 = vmatprep.subr.mxu0 0.0
        %513 = vmatpush1.msra.mxu0 0.0
        %514 = vmatprep.subr.mxu0 0.0
        %515 = vmatpush1.msra.mxu0 0.0
        %516 = vmatprep.subr.mxu0 0.0
        %517 = vmatpush1.msra.mxu0 0.0
        %518 = vmatprep.subr.mxu0 0.0
        %519 = vmatpush1.msra.mxu0 0.0
        %520 = vmatprep.subr.mxu0 0.0
        %521 = vmatpush1.msra.mxu0 0.0
        %522 = vmatprep.subr.mxu0 0.0
        %523 = vmatpush1.msra.mxu0 0.0
        %524 = vmatprep.subr.mxu0 0.0
        %525 = vmatpush1.msra.mxu0 0.0
        %526 = vmatprep.subr.mxu0 0.0
        %527 = vmatpush1.msra.mxu0 0.0
        %528 = vmatprep.subr.mxu0 0.0
        %529 = vmatpush1.msra.mxu0 0.0
        %530 = vmatprep.subr.mxu0 0.0
        %531 = vmatpush1.msra.mxu0 0.0
        %532 = vmatprep.subr.mxu0 0.0
        %533 = vmatpush1.msra.mxu0 0.0
        %534 = vmatprep.subr.mxu0 0.0
        %535 = vmatpush1.msra.mxu0 0.0
        %536 = vmatprep.subr.mxu0 0.0
        %537 = vmatpush1.msra.mxu0 0.0
        %538 = vmatprep.subr.mxu0 0.0
        %539 = vmatpush1.msra.mxu0 0.0
        %540 = vmatprep.subr.mxu0 0.0
        %541 = vmatpush1.msra.mxu0 0.0
        %542 = vmatprep.subr.mxu0 0.0
        %543 = vmatpush1.msra.mxu0 0.0
        %544 = vmatprep.subr.mxu0 0.0
        %545 = vmatpush1.msra.mxu0 0.0
        %546 = vmatprep.subr.mxu0 0.0
        %547 = vmatpush1.msra.mxu0 0.0
        %548 = vmatprep.subr.mxu0 0.0
        %549 = vmatpush1.msra.mxu0 0.0
        %550 = vmatprep.subr.mxu0 0.0
        %551 = vmatpush1.msra.mxu0 0.0
        %552 = vmatprep.subr.mxu0 0.0
        %553 = vmatpush1.msra.mxu0 0.0
        %554 = vmatprep.subr.mxu0 0.0
        %555 = vmatpush1.msra.mxu0 0.0
        %556 = vmatprep.subr.mxu0 0.0
        %557 = vmatpush1.msra.mxu0 0.0
        %558 = vmatprep.subr.mxu0 0.0
        %559 = vmatpush1.msra.mxu0 0.0
        %560 = vmatprep.subr.mxu0 0.0
        %561 = vmatpush1.msra.mxu0 0.0
        %562 = vmatprep.subr.mxu0 0.0
        %563 = vmatpush1.msra.mxu0 0.0
        %564 = vmatprep.subr.mxu0 0.0
        %565 = vmatpush1.msra.mxu0 0.0
        %566 = vmatprep.mubr.f32.mxu0 0.0
        %567 = vmatmul.mubr.f32.gmra.mrb[0].mxu0 %v500
        %v568 = vpop.f32.mrb[0].mxu0
        %v569 = vadd.f32 %v411, %v568
        %v570 = vpop.f32.mrb[0].mxu0
        %v571 = vadd.f32 %v413, %v570
        %572 = vdwg.mxu0
        %573 = vmatprep.subr.mxu0 0.0
        %574 = vmatpush1.msra.mxu0 %v493
        %575 = vmatprep.subr.mxu0 0.0
        %576 = vmatpush1.msra.mxu0 0.0
        %577 = vmatprep.subr.mxu0 0.0
        %578 = vmatpush1.msra.mxu0 0.0
        %579 = vmatprep.subr.mxu0 0.0
        %580 = vmatpush1.msra.mxu0 0.0
        %581 = vmatprep.subr.mxu0 0.0
        %582 = vmatpush1.msra.mxu0 0.0
        %583 = vmatprep.subr.mxu0 0.0
        %584 = vmatpush1.msra.mxu0 0.0
        %585 = vmatprep.subr.mxu0 0.0
        %586 = vmatpush1.msra.mxu0 0.0
        %587 = vmatprep.subr.mxu0 0.0
        %588 = vmatpush1.msra.mxu0 0.0
        %589 = vmatprep.subr.mxu0 0.0
        %590 = vmatpush1.msra.mxu0 0.0
        %591 = vmatprep.subr.mxu0 0.0
        %592 = vmatpush1.msra.mxu0 0.0
        %593 = vmatprep.subr.mxu0 0.0
        %594 = vmatpush1.msra.mxu0 0.0
        %595 = vmatprep.subr.mxu0 0.0
        %596 = vmatpush1.msra.mxu0 0.0
        %597 = vmatprep.subr.mxu0 0.0
        %598 = vmatpush1.msra.mxu0 0.0
        %599 = vmatprep.subr.mxu0 0.0
        %600 = vmatpush1.msra.mxu0 0.0
        %601 = vmatprep.subr.mxu0 0.0
        %602 = vmatpush1.msra.mxu0 0.0
        %603 = vmatprep.subr.mxu0 0.0
        %604 = vmatpush1.msra.mxu0 0.0
        %605 = vmatprep.subr.mxu0 0.0
        %606 = vmatpush1.msra.mxu0 0.0
        %607 = vmatprep.subr.mxu0 0.0
        %608 = vmatpush1.msra.mxu0 0.0
        %609 = vmatprep.subr.mxu0 0.0
        %610 = vmatpush1.msra.mxu0 0.0
        %611 = vmatprep.subr.mxu0 0.0
        %612 = vmatpush1.msra.mxu0 0.0
        %613 = vmatprep.subr.mxu0 0.0
        %614 = vmatpush1.msra.mxu0 0.0
        %615 = vmatprep.subr.mxu0 0.0
        %616 = vmatpush1.msra.mxu0 0.0
        %617 = vmatprep.subr.mxu0 0.0
        %618 = vmatpush1.msra.mxu0 0.0
        %619 = vmatprep.subr.mxu0 0.0
        %620 = vmatpush1.msra.mxu0 0.0
        %621 = vmatprep.subr.mxu0 0.0
        %622 = vmatpush1.msra.mxu0 0.0
        %623 = vmatprep.subr.mxu0 0.0
        %624 = vmatpush1.msra.mxu0 0.0
        %625 = vmatprep.subr.mxu0 0.0
        %626 = vmatpush1.msra.mxu0 0.0
        %627 = vmatprep.subr.mxu0 0.0
        %628 = vmatpush1.msra.mxu0 0.0
        %629 = vmatprep.subr.mxu0 0.0
        %630 = vmatpush1.msra.mxu0 0.0
        %631 = vmatprep.subr.mxu0 0.0
        %632 = vmatpush1.msra.mxu0 0.0
        %633 = vmatprep.subr.mxu0 0.0
        %634 = vmatpush1.msra.mxu0 0.0
        %635 = vmatprep.subr.mxu0 0.0
        %636 = vmatpush1.msra.mxu0 0.0
        %637 = vmatprep.mubr.f32.mxu0 0.0
        %638 = vmatmul.mubr.f32.gmra.mrb[0].mxu0 %v500
        %v639 = vpop.f32.mrb[0].mxu0
        %v640 = vadd.f32 %v482, %v639
        %v641 = vpop.f32.mrb[0].mxu0
        %642 = vdwg.mxu0
        %v643 = vlaneseq
        %v644 = vshrl.u32 %v643, 7
        %v645 = vsub.s32 1, %v644
        %v646 = vrot.slane %v262, %v645
        %v647 = vlaneseq
        %v648 = vshrl.u32 %v647, 7
        %v649 = vsub.s32 5, %v648
        %v650 = vrot.slane %v262, %v649
        %v651 = vlaneseq
        %v652 = vshrl.u32 %v651, 7
        %v653 = vsub.s32 1, %v652
        %v654 = vrot.slane %v263, %v653
        %v658 = vlaneseq
        %v659 = vshrl.u32 %v658, 7
        %v660 = vsub.s32 1, %v659
        %v661 = vrot.slane %v646, %v660
        %v662 = vlaneseq
        %v663 = vshrl.u32 %v662, 7
        %v664 = vsub.s32 1, %v663
        %v665 = vrot.slane %v650, %v664
        %v666 = vlaneseq
        %v667 = vshrl.u32 %v666, 7
        %v668 = vsub.s32 1, %v667
        %v669 = vrot.slane %v654, %v668
        %673 = vrot.lane.b32.xlu0 %v661, 113
        %v674 = vpop.permute.xlu0 %673
        %675 = vrot.lane.b32.xlu0 %v665, 113
        %v676 = vpop.permute.xlu0 %675
        %677 = vrot.lane.b32.xlu0 %v669, 113
        %v678 = vpop.permute.xlu0 %677
        %vm679 = vcmask 924672
        %v680 = vsel %vm679, %v674, %v676
        %v681 = vsel %vm679, %v676, %v678
        %v686 = vmul.f32 %v315, %v674
        %v687 = vmul.f32 %v316, %v680
        %v688 = vmul.f32 %v317, %v681
        %v689 = vmul.f32 %v318, %v678
        %s690 = scalar_lea.vmem %s2, 16
        %v691 = vld [vmem:[%s690] sm:$0xff]
        %696 = vrot.lane.b32.xlu0 %v686, 15
        %v697 = vpop.permute.xlu0 %696
        %698 = vrot.lane.b32.xlu0 %v687, 15
        %v699 = vpop.permute.xlu0 %698
        %700 = vrot.lane.b32.xlu0 %v688, 15
        %v701 = vpop.permute.xlu0 %700
        %702 = vrot.lane.b32.xlu0 %v689, 15
        %v703 = vpop.permute.xlu0 %702
        %vm704 = vcmask 121856
        %v705 = vsel %vm704, %v697, %v699
        %v706 = vsel %vm704, %v699, %v701
        %v707 = vsel %vm704, %v701, %v703
        %v712 = vsel %vm340, %v691, 0
        %714 = vmatprep.subr.mxu0 %v706
        %715 = vmatpush1.msra.mxu0 %v705
        %716 = vmatprep.subr.mxu0 0.0
        %717 = vmatpush1.msra.mxu0 0.0
        %718 = vmatprep.subr.mxu0 0.0
        %719 = vmatpush1.msra.mxu0 0.0
        %720 = vmatprep.subr.mxu0 0.0
        %721 = vmatpush1.msra.mxu0 0.0
        %722 = vmatprep.subr.mxu0 0.0
        %723 = vmatpush1.msra.mxu0 0.0
        %724 = vmatprep.subr.mxu0 0.0
        %725 = vmatpush1.msra.mxu0 0.0
        %726 = vmatprep.subr.mxu0 0.0
        %727 = vmatpush1.msra.mxu0 0.0
        %728 = vmatprep.subr.mxu0 0.0
        %729 = vmatpush1.msra.mxu0 0.0
        %730 = vmatprep.subr.mxu0 0.0
        %731 = vmatpush1.msra.mxu0 0.0
        %732 = vmatprep.subr.mxu0 0.0
        %733 = vmatpush1.msra.mxu0 0.0
        %734 = vmatprep.subr.mxu0 0.0
        %735 = vmatpush1.msra.mxu0 0.0
        %736 = vmatprep.subr.mxu0 0.0
        %737 = vmatpush1.msra.mxu0 0.0
        %738 = vmatprep.subr.mxu0 0.0
        %739 = vmatpush1.msra.mxu0 0.0
        %740 = vmatprep.subr.mxu0 0.0
        %741 = vmatpush1.msra.mxu0 0.0
        %742 = vmatprep.subr.mxu0 0.0
        %743 = vmatpush1.msra.mxu0 0.0
        %744 = vmatprep.subr.mxu0 0.0
        %745 = vmatpush1.msra.mxu0 0.0
        %746 = vmatprep.subr.mxu0 0.0
        %747 = vmatpush1.msra.mxu0 0.0
        %748 = vmatprep.subr.mxu0 0.0
        %749 = vmatpush1.msra.mxu0 0.0
        %750 = vmatprep.subr.mxu0 0.0
        %751 = vmatpush1.msra.mxu0 0.0
        %752 = vmatprep.subr.mxu0 0.0
        %753 = vmatpush1.msra.mxu0 0.0
        %754 = vmatprep.subr.mxu0 0.0
        %755 = vmatpush1.msra.mxu0 0.0
        %756 = vmatprep.subr.mxu0 0.0
        %757 = vmatpush1.msra.mxu0 0.0
        %758 = vmatprep.subr.mxu0 0.0
        %759 = vmatpush1.msra.mxu0 0.0
        %760 = vmatprep.subr.mxu0 0.0
        %761 = vmatpush1.msra.mxu0 0.0
        %762 = vmatprep.subr.mxu0 0.0
        %763 = vmatpush1.msra.mxu0 0.0
        %764 = vmatprep.subr.mxu0 0.0
        %765 = vmatpush1.msra.mxu0 0.0
        %766 = vmatprep.subr.mxu0 0.0
        %767 = vmatpush1.msra.mxu0 0.0
        %768 = vmatprep.subr.mxu0 0.0
        %769 = vmatpush1.msra.mxu0 0.0
        %770 = vmatprep.subr.mxu0 0.0
        %771 = vmatpush1.msra.mxu0 0.0
        %772 = vmatprep.subr.mxu0 0.0
        %773 = vmatpush1.msra.mxu0 0.0
        %774 = vmatprep.subr.mxu0 0.0
        %775 = vmatpush1.msra.mxu0 0.0
        %776 = vmatprep.subr.mxu0 0.0
        %777 = vmatpush1.msra.mxu0 0.0
        %778 = vmatprep.mubr.f32.mxu0 0.0
        %779 = vmatmul.mubr.f32.gmra.mrb[0].mxu0 %v712
        %v780 = vpop.f32.mrb[0].mxu0
        %v781 = vadd.f32 0.0, %v780
        %v782 = vpop.f32.mrb[0].mxu0
        %v783 = vadd.f32 0.0, %v782
        %784 = vdwg.mxu0
        %785 = vmatprep.subr.mxu0 0.0
        %786 = vmatpush1.msra.mxu0 %v707
        %787 = vmatprep.subr.mxu0 0.0
        %788 = vmatpush1.msra.mxu0 0.0
        %789 = vmatprep.subr.mxu0 0.0
        %790 = vmatpush1.msra.mxu0 0.0
        %791 = vmatprep.subr.mxu0 0.0
        %792 = vmatpush1.msra.mxu0 0.0
        %793 = vmatprep.subr.mxu0 0.0
        %794 = vmatpush1.msra.mxu0 0.0
        %795 = vmatprep.subr.mxu0 0.0
        %796 = vmatpush1.msra.mxu0 0.0
        %797 = vmatprep.subr.mxu0 0.0
        %798 = vmatpush1.msra.mxu0 0.0
        %799 = vmatprep.subr.mxu0 0.0
        %800 = vmatpush1.msra.mxu0 0.0
        %801 = vmatprep.subr.mxu0 0.0
        %802 = vmatpush1.msra.mxu0 0.0
        %803 = vmatprep.subr.mxu0 0.0
        %804 = vmatpush1.msra.mxu0 0.0
        %805 = vmatprep.subr.mxu0 0.0
        %806 = vmatpush1.msra.mxu0 0.0
        %807 = vmatprep.subr.mxu0 0.0
        %808 = vmatpush1.msra.mxu0 0.0
        %809 = vmatprep.subr.mxu0 0.0
        %810 = vmatpush1.msra.mxu0 0.0
        %811 = vmatprep.subr.mxu0 0.0
        %812 = vmatpush1.msra.mxu0 0.0
        %813 = vmatprep.subr.mxu0 0.0
        %814 = vmatpush1.msra.mxu0 0.0
        %815 = vmatprep.subr.mxu0 0.0
        %816 = vmatpush1.msra.mxu0 0.0
        %817 = vmatprep.subr.mxu0 0.0
        %818 = vmatpush1.msra.mxu0 0.0
        %819 = vmatprep.subr.mxu0 0.0
        %820 = vmatpush1.msra.mxu0 0.0
        %821 = vmatprep.subr.mxu0 0.0
        %822 = vmatpush1.msra.mxu0 0.0
        %823 = vmatprep.subr.mxu0 0.0
        %824 = vmatpush1.msra.mxu0 0.0
        %825 = vmatprep.subr.mxu0 0.0
        %826 = vmatpush1.msra.mxu0 0.0
        %827 = vmatprep.subr.mxu0 0.0
        %828 = vmatpush1.msra.mxu0 0.0
        %829 = vmatprep.subr.mxu0 0.0
        %830 = vmatpush1.msra.mxu0 0.0
        %831 = vmatprep.subr.mxu0 0.0
        %832 = vmatpush1.msra.mxu0 0.0
        %833 = vmatprep.subr.mxu0 0.0
        %834 = vmatpush1.msra.mxu0 0.0
        %835 = vmatprep.subr.mxu0 0.0
        %836 = vmatpush1.msra.mxu0 0.0
        %837 = vmatprep.subr.mxu0 0.0
        %838 = vmatpush1.msra.mxu0 0.0
        %839 = vmatprep.subr.mxu0 0.0
        %840 = vmatpush1.msra.mxu0 0.0
        %841 = vmatprep.subr.mxu0 0.0
        %842 = vmatpush1.msra.mxu0 0.0
        %843 = vmatprep.subr.mxu0 0.0
        %844 = vmatpush1.msra.mxu0 0.0
        %845 = vmatprep.subr.mxu0 0.0
        %846 = vmatpush1.msra.mxu0 0.0
        %847 = vmatprep.subr.mxu0 0.0
        %848 = vmatpush1.msra.mxu0 0.0
        %849 = vmatprep.mubr.f32.mxu0 0.0
        %850 = vmatmul.mubr.f32.gmra.mrb[0].mxu0 %v712
        %v851 = vpop.f32.mrb[0].mxu0
        %v852 = vadd.f32 0.0, %v851
        %v853 = vpop.f32.mrb[0].mxu0
        %854 = vdwg.mxu0
        %v855 = vadd.f32 %v569, %v781
        %v856 = vadd.f32 %v571, %v783
        %v857 = vadd.f32 %v640, %v852
        %858 = vrot.lane.b32.xlu0 %v287, 127
        %v859 = vpop.permute.xlu0 %858
        %860 = vrot.lane.b32.xlu0 %v291, 127
        %v861 = vpop.permute.xlu0 %860
        %862 = vrot.lane.b32.xlu0 %v295, 127
        %v863 = vpop.permute.xlu0 %862
        %vm864 = vcmask 1039360
        %v865 = vsel %vm864, %v859, %v861
        %v866 = vsel %vm864, %v861, %v863
        %v871 = vmul.f32 %v315, %v859
        %v872 = vmul.f32 %v316, %v865
        %v873 = vmul.f32 %v317, %v866
        %v874 = vmul.f32 %v318, %v863
        %s875 = scalar_lea.vmem %s2, 24
        %v876 = vld [vmem:[%s875] sm:$0xff]
        %881 = vrot.lane.b32.xlu0 %v871, 1
        %v882 = vpop.permute.xlu0 %881
        %883 = vrot.lane.b32.xlu0 %v872, 1
        %v884 = vpop.permute.xlu0 %883
        %885 = vrot.lane.b32.xlu0 %v873, 1
        %v886 = vpop.permute.xlu0 %885
        %887 = vrot.lane.b32.xlu0 %v874, 1
        %v888 = vpop.permute.xlu0 %887
        %vm889 = vcmask 7168
        %v890 = vsel %vm889, %v882, %v884
        %v891 = vsel %vm889, %v884, %v886
        %v892 = vsel %vm889, %v886, %v888
        %v897 = vsel %vm340, %v876, 0
        %899 = vmatprep.subr.mxu0 %v891
        %900 = vmatpush1.msra.mxu0 %v890
        %901 = vmatprep.subr.mxu0 0.0
        %902 = vmatpush1.msra.mxu0 0.0
        %903 = vmatprep.subr.mxu0 0.0
        %904 = vmatpush1.msra.mxu0 0.0
        %905 = vmatprep.subr.mxu0 0.0
        %906 = vmatpush1.msra.mxu0 0.0
        %907 = vmatprep.subr.mxu0 0.0
        %908 = vmatpush1.msra.mxu0 0.0
        %909 = vmatprep.subr.mxu0 0.0
        %910 = vmatpush1.msra.mxu0 0.0
        %911 = vmatprep.subr.mxu0 0.0
        %912 = vmatpush1.msra.mxu0 0.0
        %913 = vmatprep.subr.mxu0 0.0
        %914 = vmatpush1.msra.mxu0 0.0
        %915 = vmatprep.subr.mxu0 0.0
        %916 = vmatpush1.msra.mxu0 0.0
        %917 = vmatprep.subr.mxu0 0.0
        %918 = vmatpush1.msra.mxu0 0.0
        %919 = vmatprep.subr.mxu0 0.0
        %920 = vmatpush1.msra.mxu0 0.0
        %921 = vmatprep.subr.mxu0 0.0
        %922 = vmatpush1.msra.mxu0 0.0
        %923 = vmatprep.subr.mxu0 0.0
        %924 = vmatpush1.msra.mxu0 0.0
        %925 = vmatprep.subr.mxu0 0.0
        %926 = vmatpush1.msra.mxu0 0.0
        %927 = vmatprep.subr.mxu0 0.0
        %928 = vmatpush1.msra.mxu0 0.0
        %929 = vmatprep.subr.mxu0 0.0
        %930 = vmatpush1.msra.mxu0 0.0
        %931 = vmatprep.subr.mxu0 0.0
        %932 = vmatpush1.msra.mxu0 0.0
        %933 = vmatprep.subr.mxu0 0.0
        %934 = vmatpush1.msra.mxu0 0.0
        %935 = vmatprep.subr.mxu0 0.0
        %936 = vmatpush1.msra.mxu0 0.0
        %937 = vmatprep.subr.mxu0 0.0
        %938 = vmatpush1.msra.mxu0 0.0
        %939 = vmatprep.subr.mxu0 0.0
        %940 = vmatpush1.msra.mxu0 0.0
        %941 = vmatprep.subr.mxu0 0.0
        %942 = vmatpush1.msra.mxu0 0.0
        %943 = vmatprep.subr.mxu0 0.0
        %944 = vmatpush1.msra.mxu0 0.0
        %945 = vmatprep.subr.mxu0 0.0
        %946 = vmatpush1.msra.mxu0 0.0
        %947 = vmatprep.subr.mxu0 0.0
        %948 = vmatpush1.msra.mxu0 0.0
        %949 = vmatprep.subr.mxu0 0.0
        %950 = vmatpush1.msra.mxu0 0.0
        %951 = vmatprep.subr.mxu0 0.0
        %952 = vmatpush1.msra.mxu0 0.0
        %953 = vmatprep.subr.mxu0 0.0
        %954 = vmatpush1.msra.mxu0 0.0
        %955 = vmatprep.subr.mxu0 0.0
        %956 = vmatpush1.msra.mxu0 0.0
        %957 = vmatprep.subr.mxu0 0.0
        %958 = vmatpush1.msra.mxu0 0.0
        %959 = vmatprep.subr.mxu0 0.0
        %960 = vmatpush1.msra.mxu0 0.0
        %961 = vmatprep.subr.mxu0 0.0
        %962 = vmatpush1.msra.mxu0 0.0
        %963 = vmatprep.mubr.f32.mxu0 0.0
        %964 = vmatmul.mubr.f32.gmra.mrb[0].mxu0 %v897
        %v965 = vpop.f32.mrb[0].mxu0
        %v966 = vadd.f32 0.0, %v965
        %v967 = vpop.f32.mrb[0].mxu0
        %v968 = vadd.f32 0.0, %v967
        %969 = vdwg.mxu0
        %970 = vmatprep.subr.mxu0 0.0
        %971 = vmatpush1.msra.mxu0 %v892
        %972 = vmatprep.subr.mxu0 0.0
        %973 = vmatpush1.msra.mxu0 0.0
        %974 = vmatprep.subr.mxu0 0.0
        %975 = vmatpush1.msra.mxu0 0.0
        %976 = vmatprep.subr.mxu0 0.0
        %977 = vmatpush1.msra.mxu0 0.0
        %978 = vmatprep.subr.mxu0 0.0
        %979 = vmatpush1.msra.mxu0 0.0
        %980 = vmatprep.subr.mxu0 0.0
        %981 = vmatpush1.msra.mxu0 0.0
        %982 = vmatprep.subr.mxu0 0.0
        %983 = vmatpush1.msra.mxu0 0.0
        %984 = vmatprep.subr.mxu0 0.0
        %985 = vmatpush1.msra.mxu0 0.0
        %986 = vmatprep.subr.mxu0 0.0
        %987 = vmatpush1.msra.mxu0 0.0
        %988 = vmatprep.subr.mxu0 0.0
        %989 = vmatpush1.msra.mxu0 0.0
        %990 = vmatprep.subr.mxu0 0.0
        %991 = vmatpush1.msra.mxu0 0.0
        %992 = vmatprep.subr.mxu0 0.0
        %993 = vmatpush1.msra.mxu0 0.0
        %994 = vmatprep.subr.mxu0 0.0
        %995 = vmatpush1.msra.mxu0 0.0
        %996 = vmatprep.subr.mxu0 0.0
        %997 = vmatpush1.msra.mxu0 0.0
        %998 = vmatprep.subr.mxu0 0.0
        %999 = vmatpush1.msra.mxu0 0.0
        %1000 = vmatprep.subr.mxu0 0.0
        %1001 = vmatpush1.msra.mxu0 0.0
        %1002 = vmatprep.subr.mxu0 0.0
        %1003 = vmatpush1.msra.mxu0 0.0
        %1004 = vmatprep.subr.mxu0 0.0
        %1005 = vmatpush1.msra.mxu0 0.0
        %1006 = vmatprep.subr.mxu0 0.0
        %1007 = vmatpush1.msra.mxu0 0.0
        %1008 = vmatprep.subr.mxu0 0.0
        %1009 = vmatpush1.msra.mxu0 0.0
        %1010 = vmatprep.subr.mxu0 0.0
        %1011 = vmatpush1.msra.mxu0 0.0
        %1012 = vmatprep.subr.mxu0 0.0
        %1013 = vmatpush1.msra.mxu0 0.0
        %1014 = vmatprep.subr.mxu0 0.0
        %1015 = vmatpush1.msra.mxu0 0.0
        %1016 = vmatprep.subr.mxu0 0.0
        %1017 = vmatpush1.msra.mxu0 0.0
        %1018 = vmatprep.subr.mxu0 0.0
        %1019 = vmatpush1.msra.mxu0 0.0
        %1020 = vmatprep.subr.mxu0 0.0
        %1021 = vmatpush1.msra.mxu0 0.0
        %1022 = vmatprep.subr.mxu0 0.0
        %1023 = vmatpush1.msra.mxu0 0.0
        %1024 = vmatprep.subr.mxu0 0.0
        %1025 = vmatpush1.msra.mxu0 0.0
        %1026 = vmatprep.subr.mxu0 0.0
        %1027 = vmatpush1.msra.mxu0 0.0
        %1028 = vmatprep.subr.mxu0 0.0
        %1029 = vmatpush1.msra.mxu0 0.0
        %1030 = vmatprep.subr.mxu0 0.0
        %1031 = vmatpush1.msra.mxu0 0.0
        %1032 = vmatprep.subr.mxu0 0.0
        %1033 = vmatpush1.msra.mxu0 0.0
        %1034 = vmatprep.mubr.f32.mxu0 0.0
        %1035 = vmatmul.mubr.f32.gmra.mrb[0].mxu0 %v897
        %v1036 = vpop.f32.mrb[0].mxu0
        %v1037 = vadd.f32 0.0, %v1036
        %v1038 = vpop.f32.mrb[0].mxu0
        %1039 = vdwg.mxu0
        %v1040 = vadd.f32 %v855, %v966
        %v1041 = vadd.f32 %v856, %v968
        %v1042 = vadd.f32 %v857, %v1037
        %s1043 = scalar_lea.vmem %s2, 32
        %v1044 = vld [vmem:[%s1043] sm:$0xff]
        %v1046 = vsel %vm340, %v1044, 0
        %1048 = vmatprep.subr.mxu0 %v317
        %1049 = vmatpush1.msra.mxu0 %v316
        %1050 = vmatprep.subr.mxu0 0.0
        %1051 = vmatpush1.msra.mxu0 0.0
        %1052 = vmatprep.subr.mxu0 0.0
        %1053 = vmatpush1.msra.mxu0 0.0
        %1054 = vmatprep.subr.mxu0 0.0
        %1055 = vmatpush1.msra.mxu0 0.0
        %1056 = vmatprep.subr.mxu0 0.0
        %1057 = vmatpush1.msra.mxu0 0.0
        %1058 = vmatprep.subr.mxu0 0.0
        %1059 = vmatpush1.msra.mxu0 0.0
        %1060 = vmatprep.subr.mxu0 0.0
        %1061 = vmatpush1.msra.mxu0 0.0
        %1062 = vmatprep.subr.mxu0 0.0
        %1063 = vmatpush1.msra.mxu0 0.0
        %1064 = vmatprep.subr.mxu0 0.0
        %1065 = vmatpush1.msra.mxu0 0.0
        %1066 = vmatprep.subr.mxu0 0.0
        %1067 = vmatpush1.msra.mxu0 0.0
        %1068 = vmatprep.subr.mxu0 0.0
        %1069 = vmatpush1.msra.mxu0 0.0
        %1070 = vmatprep.subr.mxu0 0.0
        %1071 = vmatpush1.msra.mxu0 0.0
        %1072 = vmatprep.subr.mxu0 0.0
        %1073 = vmatpush1.msra.mxu0 0.0
        %1074 = vmatprep.subr.mxu0 0.0
        %1075 = vmatpush1.msra.mxu0 0.0
        %1076 = vmatprep.subr.mxu0 0.0
        %1077 = vmatpush1.msra.mxu0 0.0
        %1078 = vmatprep.subr.mxu0 0.0
        %1079 = vmatpush1.msra.mxu0 0.0
        %1080 = vmatprep.subr.mxu0 0.0
        %1081 = vmatpush1.msra.mxu0 0.0
        %1082 = vmatprep.subr.mxu0 0.0
        %1083 = vmatpush1.msra.mxu0 0.0
        %1084 = vmatprep.subr.mxu0 0.0
        %1085 = vmatpush1.msra.mxu0 0.0
        %1086 = vmatprep.subr.mxu0 0.0
        %1087 = vmatpush1.msra.mxu0 0.0
        %1088 = vmatprep.subr.mxu0 0.0
        %1089 = vmatpush1.msra.mxu0 0.0
        %1090 = vmatprep.subr.mxu0 0.0
        %1091 = vmatpush1.msra.mxu0 0.0
        %1092 = vmatprep.subr.mxu0 0.0
        %1093 = vmatpush1.msra.mxu0 0.0
        %1094 = vmatprep.subr.mxu0 0.0
        %1095 = vmatpush1.msra.mxu0 0.0
        %1096 = vmatprep.subr.mxu0 0.0
        %1097 = vmatpush1.msra.mxu0 0.0
        %1098 = vmatprep.subr.mxu0 0.0
        %1099 = vmatpush1.msra.mxu0 0.0
        %1100 = vmatprep.subr.mxu0 0.0
        %1101 = vmatpush1.msra.mxu0 0.0
        %1102 = vmatprep.subr.mxu0 0.0
        %1103 = vmatpush1.msra.mxu0 0.0
        %1104 = vmatprep.subr.mxu0 0.0
        %1105 = vmatpush1.msra.mxu0 0.0
        %1106 = vmatprep.subr.mxu0 0.0
        %1107 = vmatpush1.msra.mxu0 0.0
        %1108 = vmatprep.subr.mxu0 0.0
        %1109 = vmatpush1.msra.mxu0 0.0
        %1110 = vmatprep.subr.mxu0 0.0
        %1111 = vmatpush1.msra.mxu0 0.0
        %1112 = vmatprep.mubr.f32.mxu0 0.0
        %1113 = vmatmul.mubr.f32.gmra.mrb[0].mxu0 %v1046
        %v1114 = vpop.f32.mrb[0].mxu0
        %v1115 = vadd.f32 0.0, %v1114
        %v1116 = vpop.f32.mrb[0].mxu0
        %v1117 = vadd.f32 0.0, %v1116
        %1118 = vdwg.mxu0
        %1119 = vmatprep.subr.mxu0 0.0
        %1120 = vmatpush1.msra.mxu0 %v318
        %1121 = vmatprep.subr.mxu0 0.0
        %1122 = vmatpush1.msra.mxu0 0.0
        %1123 = vmatprep.subr.mxu0 0.0
        %1124 = vmatpush1.msra.mxu0 0.0
        %1125 = vmatprep.subr.mxu0 0.0
        %1126 = vmatpush1.msra.mxu0 0.0
        %1127 = vmatprep.subr.mxu0 0.0
        %1128 = vmatpush1.msra.mxu0 0.0
        %1129 = vmatprep.subr.mxu0 0.0
        %1130 = vmatpush1.msra.mxu0 0.0
        %1131 = vmatprep.subr.mxu0 0.0
        %1132 = vmatpush1.msra.mxu0 0.0
        %1133 = vmatprep.subr.mxu0 0.0
        %1134 = vmatpush1.msra.mxu0 0.0
        %1135 = vmatprep.subr.mxu0 0.0
        %1136 = vmatpush1.msra.mxu0 0.0
        %1137 = vmatprep.subr.mxu0 0.0
        %1138 = vmatpush1.msra.mxu0 0.0
        %1139 = vmatprep.subr.mxu0 0.0
        %1140 = vmatpush1.msra.mxu0 0.0
        %1141 = vmatprep.subr.mxu0 0.0
        %1142 = vmatpush1.msra.mxu0 0.0
        %1143 = vmatprep.subr.mxu0 0.0
        %1144 = vmatpush1.msra.mxu0 0.0
        %1145 = vmatprep.subr.mxu0 0.0
        %1146 = vmatpush1.msra.mxu0 0.0
        %1147 = vmatprep.subr.mxu0 0.0
        %1148 = vmatpush1.msra.mxu0 0.0
        %1149 = vmatprep.subr.mxu0 0.0
        %1150 = vmatpush1.msra.mxu0 0.0
        %1151 = vmatprep.subr.mxu0 0.0
        %1152 = vmatpush1.msra.mxu0 0.0
        %1153 = vmatprep.subr.mxu0 0.0
        %1154 = vmatpush1.msra.mxu0 0.0
        %1155 = vmatprep.subr.mxu0 0.0
        %1156 = vmatpush1.msra.mxu0 0.0
        %1157 = vmatprep.subr.mxu0 0.0
        %1158 = vmatpush1.msra.mxu0 0.0
        %1159 = vmatprep.subr.mxu0 0.0
        %1160 = vmatpush1.msra.mxu0 0.0
        %1161 = vmatprep.subr.mxu0 0.0
        %1162 = vmatpush1.msra.mxu0 0.0
        %1163 = vmatprep.subr.mxu0 0.0
        %1164 = vmatpush1.msra.mxu0 0.0
        %1165 = vmatprep.subr.mxu0 0.0
        %1166 = vmatpush1.msra.mxu0 0.0
        %1167 = vmatprep.subr.mxu0 0.0
        %1168 = vmatpush1.msra.mxu0 0.0
        %1169 = vmatprep.subr.mxu0 0.0
        %1170 = vmatpush1.msra.mxu0 0.0
        %1171 = vmatprep.subr.mxu0 0.0
        %1172 = vmatpush1.msra.mxu0 0.0
        %1173 = vmatprep.subr.mxu0 0.0
        %1174 = vmatpush1.msra.mxu0 0.0
        %1175 = vmatprep.subr.mxu0 0.0
        %1176 = vmatpush1.msra.mxu0 0.0
        %1177 = vmatprep.subr.mxu0 0.0
        %1178 = vmatpush1.msra.mxu0 0.0
        %1179 = vmatprep.subr.mxu0 0.0
        %1180 = vmatpush1.msra.mxu0 0.0
        %1181 = vmatprep.subr.mxu0 0.0
        %1182 = vmatpush1.msra.mxu0 0.0
        %1183 = vmatprep.mubr.f32.mxu0 0.0
        %1184 = vmatmul.mubr.f32.gmra.mrb[0].mxu0 %v1046
        %v1185 = vpop.f32.mrb[0].mxu0
        %v1186 = vadd.f32 0.0, %v1185
        %v1187 = vpop.f32.mrb[0].mxu0
        %1188 = vdwg.mxu0
        %v1189 = vadd.f32 %v1040, %v1115
        %v1190 = vadd.f32 %v1041, %v1117
        %v1191 = vadd.f32 %v1042, %v1186
        %1192 = vrot.lane.b32.xlu0 %v661, 1
        %v1193 = vpop.permute.xlu0 %1192
        %1194 = vrot.lane.b32.xlu0 %v665, 1
        %v1195 = vpop.permute.xlu0 %1194
        %1196 = vrot.lane.b32.xlu0 %v669, 1
        %v1197 = vpop.permute.xlu0 %1196
        %v1198 = vsel %vm889, %v1193, %v1195
        %v1199 = vsel %vm889, %v1195, %v1197
        %v1203 = vmul.f32 %v316, %v1193
        %v1204 = vmul.f32 %v317, %v1198
        %v1205 = vmul.f32 %v318, %v1199
        %s1206 = scalar_lea.vmem %s2, 40
        %v1207 = vld [vmem:[%s1206] sm:$0xff]
        %1211 = vrot.lane.b32.xlu0 %v1203, 127
        %v1212 = vpop.permute.xlu0 %1211
        %1213 = vrot.lane.b32.xlu0 %v1204, 127
        %v1214 = vpop.permute.xlu0 %1213
        %1215 = vrot.lane.b32.xlu0 %v1205, 127
        %v1216 = vpop.permute.xlu0 %1215
        %v1217 = vsel %vm864, %v1212, %v1214
        %v1218 = vsel %vm864, %v1214, %v1216
        %v1223 = vsel %vm340, %v1207, 0
        %1225 = vmatprep.subr.mxu0 %v1218
        %1226 = vmatpush1.msra.mxu0 %v1217
        %1227 = vmatprep.subr.mxu0 0.0
        %1228 = vmatpush1.msra.mxu0 0.0
        %1229 = vmatprep.subr.mxu0 0.0
        %1230 = vmatpush1.msra.mxu0 0.0
        %1231 = vmatprep.subr.mxu0 0.0
        %1232 = vmatpush1.msra.mxu0 0.0
        %1233 = vmatprep.subr.mxu0 0.0
        %1234 = vmatpush1.msra.mxu0 0.0
        %1235 = vmatprep.subr.mxu0 0.0
        %1236 = vmatpush1.msra.mxu0 0.0
        %1237 = vmatprep.subr.mxu0 0.0
        %1238 = vmatpush1.msra.mxu0 0.0
        %1239 = vmatprep.subr.mxu0 0.0
        %1240 = vmatpush1.msra.mxu0 0.0
        %1241 = vmatprep.subr.mxu0 0.0
        %1242 = vmatpush1.msra.mxu0 0.0
        %1243 = vmatprep.subr.mxu0 0.0
        %1244 = vmatpush1.msra.mxu0 0.0
        %1245 = vmatprep.subr.mxu0 0.0
        %1246 = vmatpush1.msra.mxu0 0.0
        %1247 = vmatprep.subr.mxu0 0.0
        %1248 = vmatpush1.msra.mxu0 0.0
        %1249 = vmatprep.subr.mxu0 0.0
        %1250 = vmatpush1.msra.mxu0 0.0
        %1251 = vmatprep.subr.mxu0 0.0
        %1252 = vmatpush1.msra.mxu0 0.0
        %1253 = vmatprep.subr.mxu0 0.0
        %1254 = vmatpush1.msra.mxu0 0.0
        %1255 = vmatprep.subr.mxu0 0.0
        %1256 = vmatpush1.msra.mxu0 0.0
        %1257 = vmatprep.subr.mxu0 0.0
        %1258 = vmatpush1.msra.mxu0 0.0
        %1259 = vmatprep.subr.mxu0 0.0
        %1260 = vmatpush1.msra.mxu0 0.0
        %1261 = vmatprep.subr.mxu0 0.0
        %1262 = vmatpush1.msra.mxu0 0.0
        %1263 = vmatprep.subr.mxu0 0.0
        %1264 = vmatpush1.msra.mxu0 0.0
        %1265 = vmatprep.subr.mxu0 0.0
        %1266 = vmatpush1.msra.mxu0 0.0
        %1267 = vmatprep.subr.mxu0 0.0
        %1268 = vmatpush1.msra.mxu0 0.0
        %1269 = vmatprep.subr.mxu0 0.0
        %1270 = vmatpush1.msra.mxu0 0.0
        %1271 = vmatprep.subr.mxu0 0.0
        %1272 = vmatpush1.msra.mxu0 0.0
        %1273 = vmatprep.subr.mxu0 0.0
        %1274 = vmatpush1.msra.mxu0 0.0
        %1275 = vmatprep.subr.mxu0 0.0
        %1276 = vmatpush1.msra.mxu0 0.0
        %1277 = vmatprep.subr.mxu0 0.0
        %1278 = vmatpush1.msra.mxu0 0.0
        %1279 = vmatprep.subr.mxu0 0.0
        %1280 = vmatpush1.msra.mxu0 0.0
        %1281 = vmatprep.subr.mxu0 0.0
        %1282 = vmatpush1.msra.mxu0 0.0
        %1283 = vmatprep.subr.mxu0 0.0
        %1284 = vmatpush1.msra.mxu0 0.0
        %1285 = vmatprep.subr.mxu0 0.0
        %1286 = vmatpush1.msra.mxu0 0.0
        %1287 = vmatprep.subr.mxu0 0.0
        %1288 = vmatpush1.msra.mxu0 0.0
        %1289 = vmatprep.mubr.f32.mxu0 0.0
        %1290 = vmatmul.mubr.f32.gmra.mrb[0].mxu0 %v1223
        %v1291 = vpop.f32.mrb[0].mxu0
        %v1292 = vadd.f32 0.0, %v1291
        %v1293 = vpop.f32.mrb[0].mxu0
        %v1294 = vadd.f32 0.0, %v1293
        %1295 = vdwg.mxu0
        %1296 = vmatprep.subr.mxu0 0.0
        %1297 = vmatpush1.msra.mxu0 %v1216
        %1298 = vmatprep.subr.mxu0 0.0
        %1299 = vmatpush1.msra.mxu0 0.0
        %1300 = vmatprep.subr.mxu0 0.0
        %1301 = vmatpush1.msra.mxu0 0.0
        %1302 = vmatprep.subr.mxu0 0.0
        %1303 = vmatpush1.msra.mxu0 0.0
        %1304 = vmatprep.subr.mxu0 0.0
        %1305 = vmatpush1.msra.mxu0 0.0
        %1306 = vmatprep.subr.mxu0 0.0
        %1307 = vmatpush1.msra.mxu0 0.0
        %1308 = vmatprep.subr.mxu0 0.0
        %1309 = vmatpush1.msra.mxu0 0.0
        %1310 = vmatprep.subr.mxu0 0.0
        %1311 = vmatpush1.msra.mxu0 0.0
        %1312 = vmatprep.subr.mxu0 0.0
        %1313 = vmatpush1.msra.mxu0 0.0
        %1314 = vmatprep.subr.mxu0 0.0
        %1315 = vmatpush1.msra.mxu0 0.0
        %1316 = vmatprep.subr.mxu0 0.0
        %1317 = vmatpush1.msra.mxu0 0.0
        %1318 = vmatprep.subr.mxu0 0.0
        %1319 = vmatpush1.msra.mxu0 0.0
        %1320 = vmatprep.subr.mxu0 0.0
        %1321 = vmatpush1.msra.mxu0 0.0
        %1322 = vmatprep.subr.mxu0 0.0
        %1323 = vmatpush1.msra.mxu0 0.0
        %1324 = vmatprep.subr.mxu0 0.0
        %1325 = vmatpush1.msra.mxu0 0.0
        %1326 = vmatprep.subr.mxu0 0.0
        %1327 = vmatpush1.msra.mxu0 0.0
        %1328 = vmatprep.subr.mxu0 0.0
        %1329 = vmatpush1.msra.mxu0 0.0
        %1330 = vmatprep.subr.mxu0 0.0
        %1331 = vmatpush1.msra.mxu0 0.0
        %1332 = vmatprep.subr.mxu0 0.0
        %1333 = vmatpush1.msra.mxu0 0.0
        %1334 = vmatprep.subr.mxu0 0.0
        %1335 = vmatpush1.msra.mxu0 0.0
        %1336 = vmatprep.subr.mxu0 0.0
        %1337 = vmatpush1.msra.mxu0 0.0
        %1338 = vmatprep.subr.mxu0 0.0
        %1339 = vmatpush1.msra.mxu0 0.0
        %1340 = vmatprep.subr.mxu0 0.0
        %1341 = vmatpush1.msra.mxu0 0.0
        %1342 = vmatprep.subr.mxu0 0.0
        %1343 = vmatpush1.msra.mxu0 0.0
        %1344 = vmatprep.subr.mxu0 0.0
        %1345 = vmatpush1.msra.mxu0 0.0
        %1346 = vmatprep.subr.mxu0 0.0
        %1347 = vmatpush1.msra.mxu0 0.0
        %1348 = vmatprep.subr.mxu0 0.0
        %1349 = vmatpush1.msra.mxu0 0.0
        %1350 = vmatprep.subr.mxu0 0.0
        %1351 = vmatpush1.msra.mxu0 0.0
        %1352 = vmatprep.subr.mxu0 0.0
        %1353 = vmatpush1.msra.mxu0 0.0
        %1354 = vmatprep.subr.mxu0 0.0
        %1355 = vmatpush1.msra.mxu0 0.0
        %1356 = vmatprep.subr.mxu0 0.0
        %1357 = vmatpush1.msra.mxu0 0.0
        %1358 = vmatprep.subr.mxu0 0.0
        %1359 = vmatpush1.msra.mxu0 0.0
        %1360 = vmatprep.mubr.f32.mxu0 0.0
        %1361 = vmatmul.mubr.f32.gmra.mrb[0].mxu0 %v1223
        %v1362 = vpop.f32.mrb[0].mxu0
        %v1363 = vadd.f32 0.0, %v1362
        %v1364 = vpop.f32.mrb[0].mxu0
        %1365 = vdwg.mxu0
        %v1366 = vadd.f32 %v1189, %v1292
        %v1367 = vadd.f32 %v1190, %v1294
        %v1368 = vadd.f32 %v1191, %v1363
        %1369 = vrot.lane.b32.xlu0 %v287, 15
        %v1370 = vpop.permute.xlu0 %1369
        %1371 = vrot.lane.b32.xlu0 %v291, 15
        %v1372 = vpop.permute.xlu0 %1371
        %1373 = vrot.lane.b32.xlu0 %v295, 15
        %v1374 = vpop.permute.xlu0 %1373
        %v1375 = vsel %vm704, %v1370, %v1372
        %v1376 = vsel %vm704, %v1372, %v1374
        %v1380 = vmul.f32 %v316, %v1370
        %v1381 = vmul.f32 %v317, %v1375
        %v1382 = vmul.f32 %v318, %v1376
        %s1383 = scalar_lea.vmem %s2, 48
        %v1384 = vld [vmem:[%s1383] sm:$0xff]
        %1388 = vrot.lane.b32.xlu0 %v1380, 113
        %v1389 = vpop.permute.xlu0 %1388
        %1390 = vrot.lane.b32.xlu0 %v1381, 113
        %v1391 = vpop.permute.xlu0 %1390
        %1392 = vrot.lane.b32.xlu0 %v1382, 113
        %v1393 = vpop.permute.xlu0 %1392
        %v1394 = vsel %vm679, %v1389, %v1391
        %v1395 = vsel %vm679, %v1391, %v1393
        %v1400 = vsel %vm340, %v1384, 0
        %1402 = vmatprep.subr.mxu0 %v1395
        %1403 = vmatpush1.msra.mxu0 %v1394
        %1404 = vmatprep.subr.mxu0 0.0
        %1405 = vmatpush1.msra.mxu0 0.0
        %1406 = vmatprep.subr.mxu0 0.0
        %1407 = vmatpush1.msra.mxu0 0.0
        %1408 = vmatprep.subr.mxu0 0.0
        %1409 = vmatpush1.msra.mxu0 0.0
        %1410 = vmatprep.subr.mxu0 0.0
        %1411 = vmatpush1.msra.mxu0 0.0
        %1412 = vmatprep.subr.mxu0 0.0
        %1413 = vmatpush1.msra.mxu0 0.0
        %1414 = vmatprep.subr.mxu0 0.0
        %1415 = vmatpush1.msra.mxu0 0.0
        %1416 = vmatprep.subr.mxu0 0.0
        %1417 = vmatpush1.msra.mxu0 0.0
        %1418 = vmatprep.subr.mxu0 0.0
        %1419 = vmatpush1.msra.mxu0 0.0
        %1420 = vmatprep.subr.mxu0 0.0
        %1421 = vmatpush1.msra.mxu0 0.0
        %1422 = vmatprep.subr.mxu0 0.0
        %1423 = vmatpush1.msra.mxu0 0.0
        %1424 = vmatprep.subr.mxu0 0.0
        %1425 = vmatpush1.msra.mxu0 0.0
        %1426 = vmatprep.subr.mxu0 0.0
        %1427 = vmatpush1.msra.mxu0 0.0
        %1428 = vmatprep.subr.mxu0 0.0
        %1429 = vmatpush1.msra.mxu0 0.0
        %1430 = vmatprep.subr.mxu0 0.0
        %1431 = vmatpush1.msra.mxu0 0.0
        %1432 = vmatprep.subr.mxu0 0.0
        %1433 = vmatpush1.msra.mxu0 0.0
        %1434 = vmatprep.subr.mxu0 0.0
        %1435 = vmatpush1.msra.mxu0 0.0
        %1436 = vmatprep.subr.mxu0 0.0
        %1437 = vmatpush1.msra.mxu0 0.0
        %1438 = vmatprep.subr.mxu0 0.0
        %1439 = vmatpush1.msra.mxu0 0.0
        %1440 = vmatprep.subr.mxu0 0.0
        %1441 = vmatpush1.msra.mxu0 0.0
        %1442 = vmatprep.subr.mxu0 0.0
        %1443 = vmatpush1.msra.mxu0 0.0
        %1444 = vmatprep.subr.mxu0 0.0
        %1445 = vmatpush1.msra.mxu0 0.0
        %1446 = vmatprep.subr.mxu0 0.0
        %1447 = vmatpush1.msra.mxu0 0.0
        %1448 = vmatprep.subr.mxu0 0.0
        %1449 = vmatpush1.msra.mxu0 0.0
        %1450 = vmatprep.subr.mxu0 0.0
        %1451 = vmatpush1.msra.mxu0 0.0
        %1452 = vmatprep.subr.mxu0 0.0
        %1453 = vmatpush1.msra.mxu0 0.0
        %1454 = vmatprep.subr.mxu0 0.0
        %1455 = vmatpush1.msra.mxu0 0.0
        %1456 = vmatprep.subr.mxu0 0.0
        %1457 = vmatpush1.msra.mxu0 0.0
        %1458 = vmatprep.subr.mxu0 0.0
        %1459 = vmatpush1.msra.mxu0 0.0
        %1460 = vmatprep.subr.mxu0 0.0
        %1461 = vmatpush1.msra.mxu0 0.0
        %1462 = vmatprep.subr.mxu0 0.0
        %1463 = vmatpush1.msra.mxu0 0.0
        %1464 = vmatprep.subr.mxu0 0.0
        %1465 = vmatpush1.msra.mxu0 0.0
        %1466 = vmatprep.mubr.f32.mxu0 0.0
        %1467 = vmatmul.mubr.f32.gmra.mrb[0].mxu0 %v1400
        %v1468 = vpop.f32.mrb[0].mxu0
        %v1469 = vadd.f32 0.0, %v1468
        %v1470 = vpop.f32.mrb[0].mxu0
        %v1471 = vadd.f32 0.0, %v1470
        %1472 = vdwg.mxu0
        %1473 = vmatprep.subr.mxu0 0.0
        %1474 = vmatpush1.msra.mxu0 %v1393
        %1475 = vmatprep.subr.mxu0 0.0
        %1476 = vmatpush1.msra.mxu0 0.0
        %1477 = vmatprep.subr.mxu0 0.0
        %1478 = vmatpush1.msra.mxu0 0.0
        %1479 = vmatprep.subr.mxu0 0.0
        %1480 = vmatpush1.msra.mxu0 0.0
        %1481 = vmatprep.subr.mxu0 0.0
        %1482 = vmatpush1.msra.mxu0 0.0
        %1483 = vmatprep.subr.mxu0 0.0
        %1484 = vmatpush1.msra.mxu0 0.0
        %1485 = vmatprep.subr.mxu0 0.0
        %1486 = vmatpush1.msra.mxu0 0.0
        %1487 = vmatprep.subr.mxu0 0.0
        %1488 = vmatpush1.msra.mxu0 0.0
        %1489 = vmatprep.subr.mxu0 0.0
        %1490 = vmatpush1.msra.mxu0 0.0
        %1491 = vmatprep.subr.mxu0 0.0
        %1492 = vmatpush1.msra.mxu0 0.0
        %1493 = vmatprep.subr.mxu0 0.0
        %1494 = vmatpush1.msra.mxu0 0.0
        %1495 = vmatprep.subr.mxu0 0.0
        %1496 = vmatpush1.msra.mxu0 0.0
        %1497 = vmatprep.subr.mxu0 0.0
        %1498 = vmatpush1.msra.mxu0 0.0
        %1499 = vmatprep.subr.mxu0 0.0
        %1500 = vmatpush1.msra.mxu0 0.0
        %1501 = vmatprep.subr.mxu0 0.0
        %1502 = vmatpush1.msra.mxu0 0.0
        %1503 = vmatprep.subr.mxu0 0.0
        %1504 = vmatpush1.msra.mxu0 0.0
        %1505 = vmatprep.subr.mxu0 0.0
        %1506 = vmatpush1.msra.mxu0 0.0
        %1507 = vmatprep.subr.mxu0 0.0
        %1508 = vmatpush1.msra.mxu0 0.0
        %1509 = vmatprep.subr.mxu0 0.0
        %1510 = vmatpush1.msra.mxu0 0.0
        %1511 = vmatprep.subr.mxu0 0.0
        %1512 = vmatpush1.msra.mxu0 0.0
        %1513 = vmatprep.subr.mxu0 0.0
        %1514 = vmatpush1.msra.mxu0 0.0
        %1515 = vmatprep.subr.mxu0 0.0
        %1516 = vmatpush1.msra.mxu0 0.0
        %1517 = vmatprep.subr.mxu0 0.0
        %1518 = vmatpush1.msra.mxu0 0.0
        %1519 = vmatprep.subr.mxu0 0.0
        %1520 = vmatpush1.msra.mxu0 0.0
        %1521 = vmatprep.subr.mxu0 0.0
        %1522 = vmatpush1.msra.mxu0 0.0
        %1523 = vmatprep.subr.mxu0 0.0
        %1524 = vmatpush1.msra.mxu0 0.0
        %1525 = vmatprep.subr.mxu0 0.0
        %1526 = vmatpush1.msra.mxu0 0.0
        %1527 = vmatprep.subr.mxu0 0.0
        %1528 = vmatpush1.msra.mxu0 0.0
        %1529 = vmatprep.subr.mxu0 0.0
        %1530 = vmatpush1.msra.mxu0 0.0
        %1531 = vmatprep.subr.mxu0 0.0
        %1532 = vmatpush1.msra.mxu0 0.0
        %1533 = vmatprep.subr.mxu0 0.0
        %1534 = vmatpush1.msra.mxu0 0.0
        %1535 = vmatprep.subr.mxu0 0.0
        %1536 = vmatpush1.msra.mxu0 0.0
        %1537 = vmatprep.mubr.f32.mxu0 0.0
        %1538 = vmatmul.mubr.f32.gmra.mrb[0].mxu0 %v1400
        %v1539 = vpop.f32.mrb[0].mxu0
        %v1540 = vadd.f32 0.0, %v1539
        %v1541 = vpop.f32.mrb[0].mxu0
        %1542 = vdwg.mxu0
        %v1543 = vadd.f32 %v1366, %v1469
        %v1544 = vadd.f32 %v1367, %v1471
        %v1545 = vadd.f32 %v1368, %v1540
        %s1546 = scalar_lea.vmem %s2, 56
        %v1547 = vld [vmem:[%s1546] sm:$0xff]
        %1548 = vrot.lane.b32.xlu0 %v316, 112
        %v1549 = vpop.permute.xlu0 %1548
        %1550 = vrot.lane.b32.xlu0 %v317, 112
        %v1551 = vpop.permute.xlu0 %1550
        %1552 = vrot.lane.b32.xlu0 %v318, 112
        %v1553 = vpop.permute.xlu0 %1552
        %vm1554 = vcmask 916480
        %v1555 = vsel %vm1554, %v1549, %v1551
        %v1556 = vsel %vm1554, %v1551, %v1553
        %v1561 = vsel %vm340, %v1547, 0
        %1563 = vmatprep.subr.mxu0 %v1556
        %1564 = vmatpush1.msra.mxu0 %v1555
        %1565 = vmatprep.subr.mxu0 0.0
        %1566 = vmatpush1.msra.mxu0 0.0
        %1567 = vmatprep.subr.mxu0 0.0
        %1568 = vmatpush1.msra.mxu0 0.0
        %1569 = vmatprep.subr.mxu0 0.0
        %1570 = vmatpush1.msra.mxu0 0.0
        %1571 = vmatprep.subr.mxu0 0.0
        %1572 = vmatpush1.msra.mxu0 0.0
        %1573 = vmatprep.subr.mxu0 0.0
        %1574 = vmatpush1.msra.mxu0 0.0
        %1575 = vmatprep.subr.mxu0 0.0
        %1576 = vmatpush1.msra.mxu0 0.0
        %1577 = vmatprep.subr.mxu0 0.0
        %1578 = vmatpush1.msra.mxu0 0.0
        %1579 = vmatprep.subr.mxu0 0.0
        %1580 = vmatpush1.msra.mxu0 0.0
        %1581 = vmatprep.subr.mxu0 0.0
        %1582 = vmatpush1.msra.mxu0 0.0
        %1583 = vmatprep.subr.mxu0 0.0
        %1584 = vmatpush1.msra.mxu0 0.0
        %1585 = vmatprep.subr.mxu0 0.0
        %1586 = vmatpush1.msra.mxu0 0.0
        %1587 = vmatprep.subr.mxu0 0.0
        %1588 = vmatpush1.msra.mxu0 0.0
        %1589 = vmatprep.subr.mxu0 0.0
        %1590 = vmatpush1.msra.mxu0 0.0
        %1591 = vmatprep.subr.mxu0 0.0
        %1592 = vmatpush1.msra.mxu0 0.0
        %1593 = vmatprep.subr.mxu0 0.0
        %1594 = vmatpush1.msra.mxu0 0.0
        %1595 = vmatprep.subr.mxu0 0.0
        %1596 = vmatpush1.msra.mxu0 0.0
        %1597 = vmatprep.subr.mxu0 0.0
        %1598 = vmatpush1.msra.mxu0 0.0
        %1599 = vmatprep.subr.mxu0 0.0
        %1600 = vmatpush1.msra.mxu0 0.0
        %1601 = vmatprep.subr.mxu0 0.0
        %1602 = vmatpush1.msra.mxu0 0.0
        %1603 = vmatprep.subr.mxu0 0.0
        %1604 = vmatpush1.msra.mxu0 0.0
        %1605 = vmatprep.subr.mxu0 0.0
        %1606 = vmatpush1.msra.mxu0 0.0
        %1607 = vmatprep.subr.mxu0 0.0
        %1608 = vmatpush1.msra.mxu0 0.0
        %1609 = vmatprep.subr.mxu0 0.0
        %1610 = vmatpush1.msra.mxu0 0.0
        %1611 = vmatprep.subr.mxu0 0.0
        %1612 = vmatpush1.msra.mxu0 0.0
        %1613 = vmatprep.subr.mxu0 0.0
        %1614 = vmatpush1.msra.mxu0 0.0
        %1615 = vmatprep.subr.mxu0 0.0
        %1616 = vmatpush1.msra.mxu0 0.0
        %1617 = vmatprep.subr.mxu0 0.0
        %1618 = vmatpush1.msra.mxu0 0.0
        %1619 = vmatprep.subr.mxu0 0.0
        %1620 = vmatpush1.msra.mxu0 0.0
        %1621 = vmatprep.subr.mxu0 0.0
        %1622 = vmatpush1.msra.mxu0 0.0
        %1623 = vmatprep.subr.mxu0 0.0
        %1624 = vmatpush1.msra.mxu0 0.0
        %1625 = vmatprep.subr.mxu0 0.0
        %1626 = vmatpush1.msra.mxu0 0.0
        %1627 = vmatprep.mubr.f32.mxu0 0.0
        %1628 = vmatmul.mubr.f32.gmra.mrb[0].mxu0 %v1561
        %v1629 = vpop.f32.mrb[0].mxu0
        %v1630 = vadd.f32 0.0, %v1629
        %v1631 = vpop.f32.mrb[0].mxu0
        %v1632 = vadd.f32 0.0, %v1631
        %1633 = vdwg.mxu0
        %1634 = vmatprep.subr.mxu0 0.0
        %1635 = vmatpush1.msra.mxu0 %v1553
        %1636 = vmatprep.subr.mxu0 0.0
        %1637 = vmatpush1.msra.mxu0 0.0
        %1638 = vmatprep.subr.mxu0 0.0
        %1639 = vmatpush1.msra.mxu0 0.0
        %1640 = vmatprep.subr.mxu0 0.0
        %1641 = vmatpush1.msra.mxu0 0.0
        %1642 = vmatprep.subr.mxu0 0.0
        %1643 = vmatpush1.msra.mxu0 0.0
        %1644 = vmatprep.subr.mxu0 0.0
        %1645 = vmatpush1.msra.mxu0 0.0
        %1646 = vmatprep.subr.mxu0 0.0
        %1647 = vmatpush1.msra.mxu0 0.0
        %1648 = vmatprep.subr.mxu0 0.0
        %1649 = vmatpush1.msra.mxu0 0.0
        %1650 = vmatprep.subr.mxu0 0.0
        %1651 = vmatpush1.msra.mxu0 0.0
        %1652 = vmatprep.subr.mxu0 0.0
        %1653 = vmatpush1.msra.mxu0 0.0
        %1654 = vmatprep.subr.mxu0 0.0
        %1655 = vmatpush1.msra.mxu0 0.0
        %1656 = vmatprep.subr.mxu0 0.0
        %1657 = vmatpush1.msra.mxu0 0.0
        %1658 = vmatprep.subr.mxu0 0.0
        %1659 = vmatpush1.msra.mxu0 0.0
        %1660 = vmatprep.subr.mxu0 0.0
        %1661 = vmatpush1.msra.mxu0 0.0
        %1662 = vmatprep.subr.mxu0 0.0
        %1663 = vmatpush1.msra.mxu0 0.0
        %1664 = vmatprep.subr.mxu0 0.0
        %1665 = vmatpush1.msra.mxu0 0.0
        %1666 = vmatprep.subr.mxu0 0.0
        %1667 = vmatpush1.msra.mxu0 0.0
        %1668 = vmatprep.subr.mxu0 0.0
        %1669 = vmatpush1.msra.mxu0 0.0
        %1670 = vmatprep.subr.mxu0 0.0
        %1671 = vmatpush1.msra.mxu0 0.0
        %1672 = vmatprep.subr.mxu0 0.0
        %1673 = vmatpush1.msra.mxu0 0.0
        %1674 = vmatprep.subr.mxu0 0.0
        %1675 = vmatpush1.msra.mxu0 0.0
        %1676 = vmatprep.subr.mxu0 0.0
        %1677 = vmatpush1.msra.mxu0 0.0
        %1678 = vmatprep.subr.mxu0 0.0
        %1679 = vmatpush1.msra.mxu0 0.0
        %1680 = vmatprep.subr.mxu0 0.0
        %1681 = vmatpush1.msra.mxu0 0.0
        %1682 = vmatprep.subr.mxu0 0.0
        %1683 = vmatpush1.msra.mxu0 0.0
        %1684 = vmatprep.subr.mxu0 0.0
        %1685 = vmatpush1.msra.mxu0 0.0
        %1686 = vmatprep.subr.mxu0 0.0
        %1687 = vmatpush1.msra.mxu0 0.0
        %1688 = vmatprep.subr.mxu0 0.0
        %1689 = vmatpush1.msra.mxu0 0.0
        %1690 = vmatprep.subr.mxu0 0.0
        %1691 = vmatpush1.msra.mxu0 0.0
        %1692 = vmatprep.subr.mxu0 0.0
        %1693 = vmatpush1.msra.mxu0 0.0
        %1694 = vmatprep.subr.mxu0 0.0
        %1695 = vmatpush1.msra.mxu0 0.0
        %1696 = vmatprep.subr.mxu0 0.0
        %1697 = vmatpush1.msra.mxu0 0.0
        %1698 = vmatprep.mubr.f32.mxu0 0.0
        %1699 = vmatmul.mubr.f32.gmra.mrb[0].mxu0 %v1561
        %v1700 = vpop.f32.mrb[0].mxu0
        %v1701 = vadd.f32 0.0, %v1700
        %v1702 = vpop.f32.mrb[0].mxu0
        %1703 = vdwg.mxu0
        %v1704 = vadd.f32 %v1543, %v1630
        %v1705 = vadd.f32 %v1544, %v1632
        %v1706 = vadd.f32 %v1545, %v1701
        %1707 = vrot.lane.b32.xlu0 %v661, 17
        %v1708 = vpop.permute.xlu0 %1707
        %1709 = vrot.lane.b32.xlu0 %v665, 17
        %v1710 = vpop.permute.xlu0 %1709
        %1711 = vrot.lane.b32.xlu0 %v669, 17
        %v1712 = vpop.permute.xlu0 %1711
        %v1713 = vsel %vm256, %v1708, %v1710
        %v1714 = vsel %vm256, %v1710, %v1712
        %v1718 = vmul.f32 %v316, %v1708
        %v1719 = vmul.f32 %v317, %v1713
        %v1720 = vmul.f32 %v318, %v1714
        %s1721 = scalar_lea.vmem %s2, 64
        %v1722 = vld [vmem:[%s1721] sm:$0xff]
        %1726 = vrot.lane.b32.xlu0 %v1718, 111
        %v1727 = vpop.permute.xlu0 %1726
        %1728 = vrot.lane.b32.xlu0 %v1719, 111
        %v1729 = vpop.permute.xlu0 %1728
        %1730 = vrot.lane.b32.xlu0 %v1720, 111
        %v1731 = vpop.permute.xlu0 %1730
        %v1732 = vsel %vm305, %v1727, %v1729
        %v1733 = vsel %vm305, %v1729, %v1731
        %v1738 = vsel %vm340, %v1722, 0
        %1740 = vmatprep.subr.mxu0 %v1733
        %1741 = vmatpush1.msra.mxu0 %v1732
        %1742 = vmatprep.subr.mxu0 0.0
        %1743 = vmatpush1.msra.mxu0 0.0
        %1744 = vmatprep.subr.mxu0 0.0
        %1745 = vmatpush1.msra.mxu0 0.0
        %1746 = vmatprep.subr.mxu0 0.0
        %1747 = vmatpush1.msra.mxu0 0.0
        %1748 = vmatprep.subr.mxu0 0.0
        %1749 = vmatpush1.msra.mxu0 0.0
        %1750 = vmatprep.subr.mxu0 0.0
        %1751 = vmatpush1.msra.mxu0 0.0
        %1752 = vmatprep.subr.mxu0 0.0
        %1753 = vmatpush1.msra.mxu0 0.0
        %1754 = vmatprep.subr.mxu0 0.0
        %1755 = vmatpush1.msra.mxu0 0.0
        %1756 = vmatprep.subr.mxu0 0.0
        %1757 = vmatpush1.msra.mxu0 0.0
        %1758 = vmatprep.subr.mxu0 0.0
        %1759 = vmatpush1.msra.mxu0 0.0
        %1760 = vmatprep.subr.mxu0 0.0
        %1761 = vmatpush1.msra.mxu0 0.0
        %1762 = vmatprep.subr.mxu0 0.0
        %1763 = vmatpush1.msra.mxu0 0.0
        %1764 = vmatprep.subr.mxu0 0.0
        %1765 = vmatpush1.msra.mxu0 0.0
        %1766 = vmatprep.subr.mxu0 0.0
        %1767 = vmatpush1.msra.mxu0 0.0
        %1768 = vmatprep.subr.mxu0 0.0
        %1769 = vmatpush1.msra.mxu0 0.0
        %1770 = vmatprep.subr.mxu0 0.0
        %1771 = vmatpush1.msra.mxu0 0.0
        %1772 = vmatprep.subr.mxu0 0.0
        %1773 = vmatpush1.msra.mxu0 0.0
        %1774 = vmatprep.subr.mxu0 0.0
        %1775 = vmatpush1.msra.mxu0 0.0
        %1776 = vmatprep.subr.mxu0 0.0
        %1777 = vmatpush1.msra.mxu0 0.0
        %1778 = vmatprep.subr.mxu0 0.0
        %1779 = vmatpush1.msra.mxu0 0.0
        %1780 = vmatprep.subr.mxu0 0.0
        %1781 = vmatpush1.msra.mxu0 0.0
        %1782 = vmatprep.subr.mxu0 0.0
        %1783 = vmatpush1.msra.mxu0 0.0
        %1784 = vmatprep.subr.mxu0 0.0
        %1785 = vmatpush1.msra.mxu0 0.0
        %1786 = vmatprep.subr.mxu0 0.0
        %1787 = vmatpush1.msra.mxu0 0.0
        %1788 = vmatprep.subr.mxu0 0.0
        %1789 = vmatpush1.msra.mxu0 0.0
        %1790 = vmatprep.subr.mxu0 0.0
        %1791 = vmatpush1.msra.mxu0 0.0
        %1792 = vmatprep.subr.mxu0 0.0
        %1793 = vmatpush1.msra.mxu0 0.0
        %1794 = vmatprep.subr.mxu0 0.0
        %1795 = vmatpush1.msra.mxu0 0.0
        %1796 = vmatprep.subr.mxu0 0.0
        %1797 = vmatpush1.msra.mxu0 0.0
        %1798 = vmatprep.subr.mxu0 0.0
        %1799 = vmatpush1.msra.mxu0 0.0
        %1800 = vmatprep.subr.mxu0 0.0
        %1801 = vmatpush1.msra.mxu0 0.0
        %1802 = vmatprep.subr.mxu0 0.0
        %1803 = vmatpush1.msra.mxu0 0.0
        %1804 = vmatprep.mubr.f32.mxu0 0.0
        %1805 = vmatmul.mubr.f32.gmra.mrb[0].mxu0 %v1738
        %v1806 = vpop.f32.mrb[0].mxu0
        %v1807 = vadd.f32 0.0, %v1806
        %v1808 = vpop.f32.mrb[0].mxu0
        %v1809 = vadd.f32 0.0, %v1808
        %1810 = vdwg.mxu0
        %1811 = vmatprep.subr.mxu0 0.0
        %1812 = vmatpush1.msra.mxu0 %v1731
        %1813 = vmatprep.subr.mxu0 0.0
        %1814 = vmatpush1.msra.mxu0 0.0
        %1815 = vmatprep.subr.mxu0 0.0
        %1816 = vmatpush1.msra.mxu0 0.0
        %1817 = vmatprep.subr.mxu0 0.0
        %1818 = vmatpush1.msra.mxu0 0.0
        %1819 = vmatprep.subr.mxu0 0.0
        %1820 = vmatpush1.msra.mxu0 0.0
        %1821 = vmatprep.subr.mxu0 0.0
        %1822 = vmatpush1.msra.mxu0 0.0
        %1823 = vmatprep.subr.mxu0 0.0
        %1824 = vmatpush1.msra.mxu0 0.0
        %1825 = vmatprep.subr.mxu0 0.0
        %1826 = vmatpush1.msra.mxu0 0.0
        %1827 = vmatprep.subr.mxu0 0.0
        %1828 = vmatpush1.msra.mxu0 0.0
        %1829 = vmatprep.subr.mxu0 0.0
        %1830 = vmatpush1.msra.mxu0 0.0
        %1831 = vmatprep.subr.mxu0 0.0
        %1832 = vmatpush1.msra.mxu0 0.0
        %1833 = vmatprep.subr.mxu0 0.0
        %1834 = vmatpush1.msra.mxu0 0.0
        %1835 = vmatprep.subr.mxu0 0.0
        %1836 = vmatpush1.msra.mxu0 0.0
        %1837 = vmatprep.subr.mxu0 0.0
        %1838 = vmatpush1.msra.mxu0 0.0
        %1839 = vmatprep.subr.mxu0 0.0
        %1840 = vmatpush1.msra.mxu0 0.0
        %1841 = vmatprep.subr.mxu0 0.0
        %1842 = vmatpush1.msra.mxu0 0.0
        %1843 = vmatprep.subr.mxu0 0.0
        %1844 = vmatpush1.msra.mxu0 0.0
        %1845 = vmatprep.subr.mxu0 0.0
        %1846 = vmatpush1.msra.mxu0 0.0
        %1847 = vmatprep.subr.mxu0 0.0
        %1848 = vmatpush1.msra.mxu0 0.0
        %1849 = vmatprep.subr.mxu0 0.0
        %1850 = vmatpush1.msra.mxu0 0.0
        %1851 = vmatprep.subr.mxu0 0.0
        %1852 = vmatpush1.msra.mxu0 0.0
        %1853 = vmatprep.subr.mxu0 0.0
        %1854 = vmatpush1.msra.mxu0 0.0
        %1855 = vmatprep.subr.mxu0 0.0
        %1856 = vmatpush1.msra.mxu0 0.0
        %1857 = vmatprep.subr.mxu0 0.0
        %1858 = vmatpush1.msra.mxu0 0.0
        %1859 = vmatprep.subr.mxu0 0.0
        %1860 = vmatpush1.msra.mxu0 0.0
        %1861 = vmatprep.subr.mxu0 0.0
        %1862 = vmatpush1.msra.mxu0 0.0
        %1863 = vmatprep.subr.mxu0 0.0
        %1864 = vmatpush1.msra.mxu0 0.0
        %1865 = vmatprep.subr.mxu0 0.0
        %1866 = vmatpush1.msra.mxu0 0.0
        %1867 = vmatprep.subr.mxu0 0.0
        %1868 = vmatpush1.msra.mxu0 0.0
        %1869 = vmatprep.subr.mxu0 0.0
        %1870 = vmatpush1.msra.mxu0 0.0
        %1871 = vmatprep.subr.mxu0 0.0
        %1872 = vmatpush1.msra.mxu0 0.0
        %1873 = vmatprep.subr.mxu0 0.0
        %1874 = vmatpush1.msra.mxu0 0.0
        %1875 = vmatprep.mubr.f32.mxu0 0.0
        %1876 = vmatmul.mubr.f32.gmra.mrb[0].mxu0 %v1738
        %v1877 = vpop.f32.mrb[0].mxu0
        %v1878 = vadd.f32 0.0, %v1877
        %v1879 = vpop.f32.mrb[0].mxu0
        %1880 = vdwg.mxu0
        %v1881 = vadd.f32 %v1704, %v1807
        %v1882 = vadd.f32 %v1705, %v1809
        %v1883 = vadd.f32 %v1706, %v1878
        %v1884 = vld [vmem:[%s3] sm:$0xff]
        %1886 = vset.pattern.permute.xlu0 0
        %1887 = vperm.xlu0 %1886, %v1884
        %v1888 = vpop.permute.xlu0 %1887
        %v1890 = vadd.f32 %v1881, %v1888
        %v1891 = vadd.f32 %v1882, %v1888
        %v1892 = vadd.f32 %v1883, %v1888
        %v1893 = vmax.f32 %v1890, 0.0
        %v1894 = vmax.f32 %v1891, 0.0
        %v1895 = vmax.f32 %v1892, 0.0
        %v1896 = vlaneseq
        %v1897 = vshrl.u32 %v1896, 7
        %v1898 = vsub.s32 2, %v1897
        %v1899 = vrot.slane %v262, %v1898
        %v1900 = vlaneseq
        %v1901 = vshrl.u32 %v1900, 7
        %v1902 = vsub.s32 6, %v1901
        %v1903 = vrot.slane %v262, %v1902
        %v1904 = vlaneseq
        %v1905 = vshrl.u32 %v1904, 7
        %v1906 = vsub.s32 2, %v1905
        %v1907 = vrot.slane %v263, %v1906
        %v1911 = vlaneseq
        %v1912 = vshrl.u32 %v1911, 7
        %v1913 = vsub.s32 2, %v1912
        %v1914 = vrot.slane %v1899, %v1913
        %v1915 = vlaneseq
        %v1916 = vshrl.u32 %v1915, 7
        %v1917 = vsub.s32 2, %v1916
        %v1918 = vrot.slane %v1903, %v1917
        %v1919 = vlaneseq
        %v1920 = vshrl.u32 %v1919, 7
        %v1921 = vsub.s32 2, %v1920
        %v1922 = vrot.slane %v1907, %v1921
        %v1923 = vmul.f32 %v1893, %v1914
        %v1924 = vmul.f32 %v1894, %v1918
        %v1925 = vmul.f32 %v1895, %v1922
        %1926 = vst [vmem:[#allocation3 + $0x8] sm:$0xff] %v1923
        %1927 = vst [vmem:[#allocation3 + $0x10] sm:$0xff] %v1924
        %1928 = vst.msk [vmem:[#allocation3 + $0x18] sm:$0xff] %vm256, %v1925
        %v1929 = vld [vmem:[#allocation3] sm:$0xff]
        %v1930 = vld [vmem:[#allocation3 + $0x8] sm:$0xff]
        %v1931 = vld [vmem:[#allocation3 + $0x10] sm:$0xff]
        %v1932 = vmul.f32 %v1929, %v300
        %v1933 = vmul.f32 %v1930, %v306
        %v1934 = vmul.f32 %v1931, %v307
        %v1935 = vld [vmem:[%s4] sm:$0xff]
        %v1936 = vld [vmem:[#allocation3] sm:$0xff]
        %v1937 = vld [vmem:[#allocation3 + $0x8] sm:$0xff]
        %v1938 = vld [vmem:[#allocation3 + $0x10] sm:$0xff]
        %s1939 = scalar_lea.vmem %s4, 8
        %v1940 = vld [vmem:[%s1939] sm:$0xff]
        %1944 = vrot.lane.b32.xlu0 %v1936, 16
        %v1945 = vpop.permute.xlu0 %1944
        %1946 = vrot.lane.b32.xlu0 %v1937, 16
        %v1947 = vpop.permute.xlu0 %1946
        %1948 = vrot.lane.b32.xlu0 %v1938, 16
        %v1949 = vpop.permute.xlu0 %1948
        %v1950 = vsel %vm333, %v1945, %v1947
        %v1951 = vsel %vm333, %v1947, %v1949
        %v1955 = vsel %vm340, %v1940, 0
        %1957 = vmatprep.subr.mxu0 %v1951
        %1958 = vmatpush1.msra.mxu0 %v1950
        %1959 = vmatprep.subr.mxu0 0.0
        %1960 = vmatpush1.msra.mxu0 0.0
        %1961 = vmatprep.subr.mxu0 0.0
        %1962 = vmatpush1.msra.mxu0 0.0
        %1963 = vmatprep.subr.mxu0 0.0
        %1964 = vmatpush1.msra.mxu0 0.0
        %1965 = vmatprep.subr.mxu0 0.0
        %1966 = vmatpush1.msra.mxu0 0.0
        %1967 = vmatprep.subr.mxu0 0.0
        %1968 = vmatpush1.msra.mxu0 0.0
        %1969 = vmatprep.subr.mxu0 0.0
        %1970 = vmatpush1.msra.mxu0 0.0
        %1971 = vmatprep.subr.mxu0 0.0
        %1972 = vmatpush1.msra.mxu0 0.0
        %1973 = vmatprep.subr.mxu0 0.0
        %1974 = vmatpush1.msra.mxu0 0.0
        %1975 = vmatprep.subr.mxu0 0.0
        %1976 = vmatpush1.msra.mxu0 0.0
        %1977 = vmatprep.subr.mxu0 0.0
        %1978 = vmatpush1.msra.mxu0 0.0
        %1979 = vmatprep.subr.mxu0 0.0
        %1980 = vmatpush1.msra.mxu0 0.0
        %1981 = vmatprep.subr.mxu0 0.0
        %1982 = vmatpush1.msra.mxu0 0.0
        %1983 = vmatprep.subr.mxu0 0.0
        %1984 = vmatpush1.msra.mxu0 0.0
        %1985 = vmatprep.subr.mxu0 0.0
        %1986 = vmatpush1.msra.mxu0 0.0
        %1987 = vmatprep.subr.mxu0 0.0
        %1988 = vmatpush1.msra.mxu0 0.0
        %1989 = vmatprep.subr.mxu0 0.0
        %1990 = vmatpush1.msra.mxu0 0.0
        %1991 = vmatprep.subr.mxu0 0.0
        %1992 = vmatpush1.msra.mxu0 0.0
        %1993 = vmatprep.subr.mxu0 0.0
        %1994 = vmatpush1.msra.mxu0 0.0
        %1995 = vmatprep.subr.mxu0 0.0
        %1996 = vmatpush1.msra.mxu0 0.0
        %1997 = vmatprep.subr.mxu0 0.0
        %1998 = vmatpush1.msra.mxu0 0.0
        %1999 = vmatprep.subr.mxu0 0.0
        %2000 = vmatpush1.msra.mxu0 0.0
        %2001 = vmatprep.subr.mxu0 0.0
        %2002 = vmatpush1.msra.mxu0 0.0
        %2003 = vmatprep.subr.mxu0 0.0
        %2004 = vmatpush1.msra.mxu0 0.0
        %2005 = vmatprep.subr.mxu0 0.0
        %2006 = vmatpush1.msra.mxu0 0.0
        %2007 = vmatprep.subr.mxu0 0.0
        %2008 = vmatpush1.msra.mxu0 0.0
        %2009 = vmatprep.subr.mxu0 0.0
        %2010 = vmatpush1.msra.mxu0 0.0
        %2011 = vmatprep.subr.mxu0 0.0
        %2012 = vmatpush1.msra.mxu0 0.0
        %2013 = vmatprep.subr.mxu0 0.0
        %2014 = vmatpush1.msra.mxu0 0.0
        %2015 = vmatprep.subr.mxu0 0.0
        %2016 = vmatpush1.msra.mxu0 0.0
        %2017 = vmatprep.subr.mxu0 0.0
        %2018 = vmatpush1.msra.mxu0 0.0
        %2019 = vmatprep.subr.mxu0 0.0
        %2020 = vmatpush1.msra.mxu0 0.0
        %2021 = vmatprep.mubr.f32.mxu0 0.0
        %2022 = vmatmul.mubr.f32.gmra.mrb[0].mxu0 %v1955
        %v2023 = vpop.f32.mrb[0].mxu0
        %v2024 = vadd.f32 0.0, %v2023
        %v2025 = vpop.f32.mrb[0].mxu0
        %v2026 = vadd.f32 0.0, %v2025
        %2027 = vdwg.mxu0
        %2031 = vrot.lane.b32.xlu0 %v1932, 17
        %v2032 = vpop.permute.xlu0 %2031
        %2033 = vrot.lane.b32.xlu0 %v1933, 17
        %v2034 = vpop.permute.xlu0 %2033
        %2035 = vrot.lane.b32.xlu0 %v1934, 17
        %v2036 = vpop.permute.xlu0 %2035
        %v2037 = vsel %vm256, %v2032, %v2034
        %v2038 = vsel %vm256, %v2034, %v2036
        %v2042 = vsel %vm340, %v1935, 0
        %2044 = vmatprep.subr.mxu0 %v2038
        %2045 = vmatpush1.msra.mxu0 %v2037
        %2046 = vmatprep.subr.mxu0 0.0
        %2047 = vmatpush1.msra.mxu0 0.0
        %2048 = vmatprep.subr.mxu0 0.0
        %2049 = vmatpush1.msra.mxu0 0.0
        %2050 = vmatprep.subr.mxu0 0.0
        %2051 = vmatpush1.msra.mxu0 0.0
        %2052 = vmatprep.subr.mxu0 0.0
        %2053 = vmatpush1.msra.mxu0 0.0
        %2054 = vmatprep.subr.mxu0 0.0
        %2055 = vmatpush1.msra.mxu0 0.0
        %2056 = vmatprep.subr.mxu0 0.0
        %2057 = vmatpush1.msra.mxu0 0.0
        %2058 = vmatprep.subr.mxu0 0.0
        %2059 = vmatpush1.msra.mxu0 0.0
        %2060 = vmatprep.subr.mxu0 0.0
        %2061 = vmatpush1.msra.mxu0 0.0
        %2062 = vmatprep.subr.mxu0 0.0
        %2063 = vmatpush1.msra.mxu0 0.0
        %2064 = vmatprep.subr.mxu0 0.0
        %2065 = vmatpush1.msra.mxu0 0.0
        %2066 = vmatprep.subr.mxu0 0.0
        %2067 = vmatpush1.msra.mxu0 0.0
        %2068 = vmatprep.subr.mxu0 0.0
        %2069 = vmatpush1.msra.mxu0 0.0
        %2070 = vmatprep.subr.mxu0 0.0
        %2071 = vmatpush1.msra.mxu0 0.0
        %2072 = vmatprep.subr.mxu0 0.0
        %2073 = vmatpush1.msra.mxu0 0.0
        %2074 = vmatprep.subr.mxu0 0.0
        %2075 = vmatpush1.msra.mxu0 0.0
        %2076 = vmatprep.subr.mxu0 0.0
        %2077 = vmatpush1.msra.mxu0 0.0
        %2078 = vmatprep.subr.mxu0 0.0
        %2079 = vmatpush1.msra.mxu0 0.0
        %2080 = vmatprep.subr.mxu0 0.0
        %2081 = vmatpush1.msra.mxu0 0.0
        %2082 = vmatprep.subr.mxu0 0.0
        %2083 = vmatpush1.msra.mxu0 0.0
        %2084 = vmatprep.subr.mxu0 0.0
        %2085 = vmatpush1.msra.mxu0 0.0
        %2086 = vmatprep.subr.mxu0 0.0
        %2087 = vmatpush1.msra.mxu0 0.0
        %2088 = vmatprep.subr.mxu0 0.0
        %2089 = vmatpush1.msra.mxu0 0.0
        %2090 = vmatprep.subr.mxu0 0.0
        %2091 = vmatpush1.msra.mxu0 0.0
        %2092 = vmatprep.subr.mxu0 0.0
        %2093 = vmatpush1.msra.mxu0 0.0
        %2094 = vmatprep.subr.mxu0 0.0
        %2095 = vmatpush1.msra.mxu0 0.0
        %2096 = vmatprep.subr.mxu0 0.0
        %2097 = vmatpush1.msra.mxu0 0.0
        %2098 = vmatprep.subr.mxu0 0.0
        %2099 = vmatpush1.msra.mxu0 0.0
        %2100 = vmatprep.subr.mxu0 0.0
        %2101 = vmatpush1.msra.mxu0 0.0
        %2102 = vmatprep.subr.mxu0 0.0
        %2103 = vmatpush1.msra.mxu0 0.0
        %2104 = vmatprep.subr.mxu0 0.0
        %2105 = vmatpush1.msra.mxu0 0.0
        %2106 = vmatprep.subr.mxu0 0.0
        %2107 = vmatpush1.msra.mxu0 0.0
        %2108 = vmatprep.mubr.f32.mxu0 0.0
        %2109 = vmatmul.mubr.f32.gmra.mrb[0].mxu0 %v2042
        %v2110 = vpop.f32.mrb[0].mxu0
        %v2111 = vadd.f32 %v2024, %v2110
        %v2112 = vpop.f32.mrb[0].mxu0
        %v2113 = vadd.f32 %v2026, %v2112
        %2114 = vdwg.mxu0
        %v2115 = vmul.f32 %v1936, %v674
        %v2116 = vmul.f32 %v1937, %v680
        %v2117 = vmul.f32 %v1938, %v681
        %s2118 = scalar_lea.vmem %s4, 16
        %v2119 = vld [vmem:[%s2118] sm:$0xff]
        %2123 = vrot.lane.b32.xlu0 %v2115, 15
        %v2124 = vpop.permute.xlu0 %2123
        %2125 = vrot.lane.b32.xlu0 %v2116, 15
        %v2126 = vpop.permute.xlu0 %2125
        %2127 = vrot.lane.b32.xlu0 %v2117, 15
        %v2128 = vpop.permute.xlu0 %2127
        %v2129 = vsel %vm704, %v2124, %v2126
        %v2130 = vsel %vm704, %v2126, %v2128
        %v2134 = vsel %vm340, %v2119, 0
        %2136 = vmatprep.subr.mxu0 %v2130
        %2137 = vmatpush1.msra.mxu0 %v2129
        %2138 = vmatprep.subr.mxu0 0.0
        %2139 = vmatpush1.msra.mxu0 0.0
        %2140 = vmatprep.subr.mxu0 0.0
        %2141 = vmatpush1.msra.mxu0 0.0
        %2142 = vmatprep.subr.mxu0 0.0
        %2143 = vmatpush1.msra.mxu0 0.0
        %2144 = vmatprep.subr.mxu0 0.0
        %2145 = vmatpush1.msra.mxu0 0.0
        %2146 = vmatprep.subr.mxu0 0.0
        %2147 = vmatpush1.msra.mxu0 0.0
        %2148 = vmatprep.subr.mxu0 0.0
        %2149 = vmatpush1.msra.mxu0 0.0
        %2150 = vmatprep.subr.mxu0 0.0
        %2151 = vmatpush1.msra.mxu0 0.0
        %2152 = vmatprep.subr.mxu0 0.0
        %2153 = vmatpush1.msra.mxu0 0.0
        %2154 = vmatprep.subr.mxu0 0.0
        %2155 = vmatpush1.msra.mxu0 0.0
        %2156 = vmatprep.subr.mxu0 0.0
        %2157 = vmatpush1.msra.mxu0 0.0
        %2158 = vmatprep.subr.mxu0 0.0
        %2159 = vmatpush1.msra.mxu0 0.0
        %2160 = vmatprep.subr.mxu0 0.0
        %2161 = vmatpush1.msra.mxu0 0.0
        %2162 = vmatprep.subr.mxu0 0.0
        %2163 = vmatpush1.msra.mxu0 0.0
        %2164 = vmatprep.subr.mxu0 0.0
        %2165 = vmatpush1.msra.mxu0 0.0
        %2166 = vmatprep.subr.mxu0 0.0
        %2167 = vmatpush1.msra.mxu0 0.0
        %2168 = vmatprep.subr.mxu0 0.0
        %2169 = vmatpush1.msra.mxu0 0.0
        %2170 = vmatprep.subr.mxu0 0.0
        %2171 = vmatpush1.msra.mxu0 0.0
        %2172 = vmatprep.subr.mxu0 0.0
        %2173 = vmatpush1.msra.mxu0 0.0
        %2174 = vmatprep.subr.mxu0 0.0
        %2175 = vmatpush1.msra.mxu0 0.0
        %2176 = vmatprep.subr.mxu0 0.0
        %2177 = vmatpush1.msra.mxu0 0.0
        %2178 = vmatprep.subr.mxu0 0.0
        %2179 = vmatpush1.msra.mxu0 0.0
        %2180 = vmatprep.subr.mxu0 0.0
        %2181 = vmatpush1.msra.mxu0 0.0
        %2182 = vmatprep.subr.mxu0 0.0
        %2183 = vmatpush1.msra.mxu0 0.0
        %2184 = vmatprep.subr.mxu0 0.0
        %2185 = vmatpush1.msra.mxu0 0.0
        %2186 = vmatprep.subr.mxu0 0.0
        %2187 = vmatpush1.msra.mxu0 0.0
        %2188 = vmatprep.subr.mxu0 0.0
        %2189 = vmatpush1.msra.mxu0 0.0
        %2190 = vmatprep.subr.mxu0 0.0
        %2191 = vmatpush1.msra.mxu0 0.0
        %2192 = vmatprep.subr.mxu0 0.0
        %2193 = vmatpush1.msra.mxu0 0.0
        %2194 = vmatprep.subr.mxu0 0.0
        %2195 = vmatpush1.msra.mxu0 0.0
        %2196 = vmatprep.subr.mxu0 0.0
        %2197 = vmatpush1.msra.mxu0 0.0
        %2198 = vmatprep.subr.mxu0 0.0
        %2199 = vmatpush1.msra.mxu0 0.0
        %2200 = vmatprep.mubr.f32.mxu0 0.0
        %2201 = vmatmul.mubr.f32.gmra.mrb[0].mxu0 %v2134
        %v2202 = vpop.f32.mrb[0].mxu0
        %v2203 = vadd.f32 0.0, %v2202
        %v2204 = vpop.f32.mrb[0].mxu0
        %v2205 = vadd.f32 0.0, %v2204
        %2206 = vdwg.mxu0
        %v2207 = vadd.f32 %v2111, %v2203
        %v2208 = vadd.f32 %v2113, %v2205
        %v2209 = vmul.f32 %v1936, %v859
        %v2210 = vmul.f32 %v1937, %v865
        %v2211 = vmul.f32 %v1938, %v866
        %s2212 = scalar_lea.vmem %s4, 24
        %v2213 = vld [vmem:[%s2212] sm:$0xff]
        %2217 = vrot.lane.b32.xlu0 %v2209, 1
        %v2218 = vpop.permute.xlu0 %2217
        %2219 = vrot.lane.b32.xlu0 %v2210, 1
        %v2220 = vpop.permute.xlu0 %2219
        %2221 = vrot.lane.b32.xlu0 %v2211, 1
        %v2222 = vpop.permute.xlu0 %2221
        %v2223 = vsel %vm889, %v2218, %v2220
        %v2224 = vsel %vm889, %v2220, %v2222
        %v2228 = vsel %vm340, %v2213, 0
        %2230 = vmatprep.subr.mxu0 %v2224
        %2231 = vmatpush1.msra.mxu0 %v2223
        %2232 = vmatprep.subr.mxu0 0.0
        %2233 = vmatpush1.msra.mxu0 0.0
        %2234 = vmatprep.subr.mxu0 0.0
        %2235 = vmatpush1.msra.mxu0 0.0
        %2236 = vmatprep.subr.mxu0 0.0
        %2237 = vmatpush1.msra.mxu0 0.0
        %2238 = vmatprep.subr.mxu0 0.0
        %2239 = vmatpush1.msra.mxu0 0.0
        %2240 = vmatprep.subr.mxu0 0.0
        %2241 = vmatpush1.msra.mxu0 0.0
        %2242 = vmatprep.subr.mxu0 0.0
        %2243 = vmatpush1.msra.mxu0 0.0
        %2244 = vmatprep.subr.mxu0 0.0
        %2245 = vmatpush1.msra.mxu0 0.0
        %2246 = vmatprep.subr.mxu0 0.0
        %2247 = vmatpush1.msra.mxu0 0.0
        %2248 = vmatprep.subr.mxu0 0.0
        %2249 = vmatpush1.msra.mxu0 0.0
        %2250 = vmatprep.subr.mxu0 0.0
        %2251 = vmatpush1.msra.mxu0 0.0
        %2252 = vmatprep.subr.mxu0 0.0
        %2253 = vmatpush1.msra.mxu0 0.0
        %2254 = vmatprep.subr.mxu0 0.0
        %2255 = vmatpush1.msra.mxu0 0.0
        %2256 = vmatprep.subr.mxu0 0.0
        %2257 = vmatpush1.msra.mxu0 0.0
        %2258 = vmatprep.subr.mxu0 0.0
        %2259 = vmatpush1.msra.mxu0 0.0
        %2260 = vmatprep.subr.mxu0 0.0
        %2261 = vmatpush1.msra.mxu0 0.0
        %2262 = vmatprep.subr.mxu0 0.0
        %2263 = vmatpush1.msra.mxu0 0.0
        %2264 = vmatprep.subr.mxu0 0.0
        %2265 = vmatpush1.msra.mxu0 0.0
        %2266 = vmatprep.subr.mxu0 0.0
        %2267 = vmatpush1.msra.mxu0 0.0
        %2268 = vmatprep.subr.mxu0 0.0
        %2269 = vmatpush1.msra.mxu0 0.0
        %2270 = vmatprep.subr.mxu0 0.0
        %2271 = vmatpush1.msra.mxu0 0.0
        %2272 = vmatprep.subr.mxu0 0.0
        %2273 = vmatpush1.msra.mxu0 0.0
        %2274 = vmatprep.subr.mxu0 0.0
        %2275 = vmatpush1.msra.mxu0 0.0
        %2276 = vmatprep.subr.mxu0 0.0
        %2277 = vmatpush1.msra.mxu0 0.0
        %2278 = vmatprep.subr.mxu0 0.0
        %2279 = vmatpush1.msra.mxu0 0.0
        %2280 = vmatprep.subr.mxu0 0.0
        %2281 = vmatpush1.msra.mxu0 0.0
        %2282 = vmatprep.subr.mxu0 0.0
        %2283 = vmatpush1.msra.mxu0 0.0
        %2284 = vmatprep.subr.mxu0 0.0
        %2285 = vmatpush1.msra.mxu0 0.0
        %2286 = vmatprep.subr.mxu0 0.0
        %2287 = vmatpush1.msra.mxu0 0.0
        %2288 = vmatprep.subr.mxu0 0.0
        %2289 = vmatpush1.msra.mxu0 0.0
        %2290 = vmatprep.subr.mxu0 0.0
        %2291 = vmatpush1.msra.mxu0 0.0
        %2292 = vmatprep.subr.mxu0 0.0
        %2293 = vmatpush1.msra.mxu0 0.0
        %2294 = vmatprep.mubr.f32.mxu0 0.0
        %2295 = vmatmul.mubr.f32.gmra.mrb[0].mxu0 %v2228
        %v2296 = vpop.f32.mrb[0].mxu0
        %v2297 = vadd.f32 0.0, %v2296
        %v2298 = vpop.f32.mrb[0].mxu0
        %v2299 = vadd.f32 0.0, %v2298
        %2300 = vdwg.mxu0
        %v2301 = vadd.f32 %v2207, %v2297
        %v2302 = vadd.f32 %v2208, %v2299
        %s2303 = scalar_lea.vmem %s4, 32
        %v2304 = vld [vmem:[%s2303] sm:$0xff]
        %v2306 = vsel %vm340, %v2304, 0
        %2308 = vmatprep.subr.mxu0 %v1938
        %2309 = vmatpush1.msra.mxu0 %v1937
        %2310 = vmatprep.subr.mxu0 0.0
        %2311 = vmatpush1.msra.mxu0 0.0
        %2312 = vmatprep.subr.mxu0 0.0
        %2313 = vmatpush1.msra.mxu0 0.0
        %2314 = vmatprep.subr.mxu0 0.0
        %2315 = vmatpush1.msra.mxu0 0.0
        %2316 = vmatprep.subr.mxu0 0.0
        %2317 = vmatpush1.msra.mxu0 0.0
        %2318 = vmatprep.subr.mxu0 0.0
        %2319 = vmatpush1.msra.mxu0 0.0
        %2320 = vmatprep.subr.mxu0 0.0
        %2321 = vmatpush1.msra.mxu0 0.0
        %2322 = vmatprep.subr.mxu0 0.0
        %2323 = vmatpush1.msra.mxu0 0.0
        %2324 = vmatprep.subr.mxu0 0.0
        %2325 = vmatpush1.msra.mxu0 0.0
        %2326 = vmatprep.subr.mxu0 0.0
        %2327 = vmatpush1.msra.mxu0 0.0
        %2328 = vmatprep.subr.mxu0 0.0
        %2329 = vmatpush1.msra.mxu0 0.0
        %2330 = vmatprep.subr.mxu0 0.0
        %2331 = vmatpush1.msra.mxu0 0.0
        %2332 = vmatprep.subr.mxu0 0.0
        %2333 = vmatpush1.msra.mxu0 0.0
        %2334 = vmatprep.subr.mxu0 0.0
        %2335 = vmatpush1.msra.mxu0 0.0
        %2336 = vmatprep.subr.mxu0 0.0
        %2337 = vmatpush1.msra.mxu0 0.0
        %2338 = vmatprep.subr.mxu0 0.0
        %2339 = vmatpush1.msra.mxu0 0.0
        %2340 = vmatprep.subr.mxu0 0.0
        %2341 = vmatpush1.msra.mxu0 0.0
        %2342 = vmatprep.subr.mxu0 0.0
        %2343 = vmatpush1.msra.mxu0 0.0
        %2344 = vmatprep.subr.mxu0 0.0
        %2345 = vmatpush1.msra.mxu0 0.0
        %2346 = vmatprep.subr.mxu0 0.0
        %2347 = vmatpush1.msra.mxu0 0.0
        %2348 = vmatprep.subr.mxu0 0.0
        %2349 = vmatpush1.msra.mxu0 0.0
        %2350 = vmatprep.subr.mxu0 0.0
        %2351 = vmatpush1.msra.mxu0 0.0
        %2352 = vmatprep.subr.mxu0 0.0
        %2353 = vmatpush1.msra.mxu0 0.0
        %2354 = vmatprep.subr.mxu0 0.0
        %2355 = vmatpush1.msra.mxu0 0.0
        %2356 = vmatprep.subr.mxu0 0.0
        %2357 = vmatpush1.msra.mxu0 0.0
        %2358 = vmatprep.subr.mxu0 0.0
        %2359 = vmatpush1.msra.mxu0 0.0
        %2360 = vmatprep.subr.mxu0 0.0
        %2361 = vmatpush1.msra.mxu0 0.0
        %2362 = vmatprep.subr.mxu0 0.0
        %2363 = vmatpush1.msra.mxu0 0.0
        %2364 = vmatprep.subr.mxu0 0.0
        %2365 = vmatpush1.msra.mxu0 0.0
        %2366 = vmatprep.subr.mxu0 0.0
        %2367 = vmatpush1.msra.mxu0 0.0
        %2368 = vmatprep.subr.mxu0 0.0
        %2369 = vmatpush1.msra.mxu0 0.0
        %2370 = vmatprep.subr.mxu0 0.0
        %2371 = vmatpush1.msra.mxu0 0.0
        %2372 = vmatprep.mubr.f32.mxu0 0.0
        %2373 = vmatmul.mubr.f32.gmra.mrb[0].mxu0 %v2306
        %v2374 = vpop.f32.mrb[0].mxu0
        %v2375 = vadd.f32 0.0, %v2374
        %v2376 = vpop.f32.mrb[0].mxu0
        %v2377 = vadd.f32 0.0, %v2376
        %2378 = vdwg.mxu0
        %v2379 = vadd.f32 %v2301, %v2375
        %v2380 = vadd.f32 %v2302, %v2377
        %v2381 = vld [vmem:[#allocation3 + $0x18] sm:$0xff]
        %v2382 = vmul.f32 %v1937, %v1193
        %v2383 = vmul.f32 %v1938, %v1198
        %v2384 = vmul.f32 %v2381, %v1199
        %s2385 = scalar_lea.vmem %s4, 40
        %v2386 = vld [vmem:[%s2385] sm:$0xff]
        %2390 = vrot.lane.b32.xlu0 %v2382, 127
        %v2391 = vpop.permute.xlu0 %2390
        %2392 = vrot.lane.b32.xlu0 %v2383, 127
        %v2393 = vpop.permute.xlu0 %2392
        %2394 = vrot.lane.b32.xlu0 %v2384, 127
        %v2395 = vpop.permute.xlu0 %2394
        %v2396 = vsel %vm864, %v2391, %v2393
        %v2397 = vsel %vm864, %v2393, %v2395
        %v2401 = vsel %vm340, %v2386, 0
        %2403 = vmatprep.subr.mxu0 %v2397
        %2404 = vmatpush1.msra.mxu0 %v2396
        %2405 = vmatprep.subr.mxu0 0.0
        %2406 = vmatpush1.msra.mxu0 0.0
        %2407 = vmatprep.subr.mxu0 0.0
        %2408 = vmatpush1.msra.mxu0 0.0
        %2409 = vmatprep.subr.mxu0 0.0
        %2410 = vmatpush1.msra.mxu0 0.0
        %2411 = vmatprep.subr.mxu0 0.0
        %2412 = vmatpush1.msra.mxu0 0.0
        %2413 = vmatprep.subr.mxu0 0.0
        %2414 = vmatpush1.msra.mxu0 0.0
        %2415 = vmatprep.subr.mxu0 0.0
        %2416 = vmatpush1.msra.mxu0 0.0
        %2417 = vmatprep.subr.mxu0 0.0
        %2418 = vmatpush1.msra.mxu0 0.0
        %2419 = vmatprep.subr.mxu0 0.0
        %2420 = vmatpush1.msra.mxu0 0.0
        %2421 = vmatprep.subr.mxu0 0.0
        %2422 = vmatpush1.msra.mxu0 0.0
        %2423 = vmatprep.subr.mxu0 0.0
        %2424 = vmatpush1.msra.mxu0 0.0
        %2425 = vmatprep.subr.mxu0 0.0
        %2426 = vmatpush1.msra.mxu0 0.0
        %2427 = vmatprep.subr.mxu0 0.0
        %2428 = vmatpush1.msra.mxu0 0.0
        %2429 = vmatprep.subr.mxu0 0.0
        %2430 = vmatpush1.msra.mxu0 0.0
        %2431 = vmatprep.subr.mxu0 0.0
        %2432 = vmatpush1.msra.mxu0 0.0
        %2433 = vmatprep.subr.mxu0 0.0
        %2434 = vmatpush1.msra.mxu0 0.0
        %2435 = vmatprep.subr.mxu0 0.0
        %2436 = vmatpush1.msra.mxu0 0.0
        %2437 = vmatprep.subr.mxu0 0.0
        %2438 = vmatpush1.msra.mxu0 0.0
        %2439 = vmatprep.subr.mxu0 0.0
        %2440 = vmatpush1.msra.mxu0 0.0
        %2441 = vmatprep.subr.mxu0 0.0
        %2442 = vmatpush1.msra.mxu0 0.0
        %2443 = vmatprep.subr.mxu0 0.0
        %2444 = vmatpush1.msra.mxu0 0.0
        %2445 = vmatprep.subr.mxu0 0.0
        %2446 = vmatpush1.msra.mxu0 0.0
        %2447 = vmatprep.subr.mxu0 0.0
        %2448 = vmatpush1.msra.mxu0 0.0
        %2449 = vmatprep.subr.mxu0 0.0
        %2450 = vmatpush1.msra.mxu0 0.0
        %2451 = vmatprep.subr.mxu0 0.0
        %2452 = vmatpush1.msra.mxu0 0.0
        %2453 = vmatprep.subr.mxu0 0.0
        %2454 = vmatpush1.msra.mxu0 0.0
        %2455 = vmatprep.subr.mxu0 0.0
        %2456 = vmatpush1.msra.mxu0 0.0
        %2457 = vmatprep.subr.mxu0 0.0
        %2458 = vmatpush1.msra.mxu0 0.0
        %2459 = vmatprep.subr.mxu0 0.0
        %2460 = vmatpush1.msra.mxu0 0.0
        %2461 = vmatprep.subr.mxu0 0.0
        %2462 = vmatpush1.msra.mxu0 0.0
        %2463 = vmatprep.subr.mxu0 0.0
        %2464 = vmatpush1.msra.mxu0 0.0
        %2465 = vmatprep.subr.mxu0 0.0
        %2466 = vmatpush1.msra.mxu0 0.0
        %2467 = vmatprep.mubr.f32.mxu0 0.0
        %2468 = vmatmul.mubr.f32.gmra.mrb[0].mxu0 %v2401
        %v2469 = vpop.f32.mrb[0].mxu0
        %v2470 = vadd.f32 0.0, %v2469
        %v2471 = vpop.f32.mrb[0].mxu0
        %v2472 = vadd.f32 0.0, %v2471
        %2473 = vdwg.mxu0
        %v2474 = vadd.f32 %v2379, %v2470
        %v2475 = vadd.f32 %v2380, %v2472
        %v2476 = vmul.f32 %v1937, %v1370
        %v2477 = vmul.f32 %v1938, %v1375
        %v2478 = vmul.f32 %v2381, %v1376
        %s2479 = scalar_lea.vmem %s4, 48
        %v2480 = vld [vmem:[%s2479] sm:$0xff]
        %2484 = vrot.lane.b32.xlu0 %v2476, 113
        %v2485 = vpop.permute.xlu0 %2484
        %2486 = vrot.lane.b32.xlu0 %v2477, 113
        %v2487 = vpop.permute.xlu0 %2486
        %2488 = vrot.lane.b32.xlu0 %v2478, 113
        %v2489 = vpop.permute.xlu0 %2488
        %v2490 = vsel %vm679, %v2485, %v2487
        %v2491 = vsel %vm679, %v2487, %v2489
        %v2495 = vsel %vm340, %v2480, 0
        %2497 = vmatprep.subr.mxu0 %v2491
        %2498 = vmatpush1.msra.mxu0 %v2490
        %2499 = vmatprep.subr.mxu0 0.0
        %2500 = vmatpush1.msra.mxu0 0.0
        %2501 = vmatprep.subr.mxu0 0.0
        %2502 = vmatpush1.msra.mxu0 0.0
        %2503 = vmatprep.subr.mxu0 0.0
        %2504 = vmatpush1.msra.mxu0 0.0
        %2505 = vmatprep.subr.mxu0 0.0
        %2506 = vmatpush1.msra.mxu0 0.0
        %2507 = vmatprep.subr.mxu0 0.0
        %2508 = vmatpush1.msra.mxu0 0.0
        %2509 = vmatprep.subr.mxu0 0.0
        %2510 = vmatpush1.msra.mxu0 0.0
        %2511 = vmatprep.subr.mxu0 0.0
        %2512 = vmatpush1.msra.mxu0 0.0
        %2513 = vmatprep.subr.mxu0 0.0
        %2514 = vmatpush1.msra.mxu0 0.0
        %2515 = vmatprep.subr.mxu0 0.0
        %2516 = vmatpush1.msra.mxu0 0.0
        %2517 = vmatprep.subr.mxu0 0.0
        %2518 = vmatpush1.msra.mxu0 0.0
        %2519 = vmatprep.subr.mxu0 0.0
        %2520 = vmatpush1.msra.mxu0 0.0
        %2521 = vmatprep.subr.mxu0 0.0
        %2522 = vmatpush1.msra.mxu0 0.0
        %2523 = vmatprep.subr.mxu0 0.0
        %2524 = vmatpush1.msra.mxu0 0.0
        %2525 = vmatprep.subr.mxu0 0.0
        %2526 = vmatpush1.msra.mxu0 0.0
        %2527 = vmatprep.subr.mxu0 0.0
        %2528 = vmatpush1.msra.mxu0 0.0
        %2529 = vmatprep.subr.mxu0 0.0
        %2530 = vmatpush1.msra.mxu0 0.0
        %2531 = vmatprep.subr.mxu0 0.0
        %2532 = vmatpush1.msra.mxu0 0.0
        %2533 = vmatprep.subr.mxu0 0.0
        %2534 = vmatpush1.msra.mxu0 0.0
        %2535 = vmatprep.subr.mxu0 0.0
        %2536 = vmatpush1.msra.mxu0 0.0
        %2537 = vmatprep.subr.mxu0 0.0
        %2538 = vmatpush1.msra.mxu0 0.0
        %2539 = vmatprep.subr.mxu0 0.0
        %2540 = vmatpush1.msra.mxu0 0.0
        %2541 = vmatprep.subr.mxu0 0.0
        %2542 = vmatpush1.msra.mxu0 0.0
        %2543 = vmatprep.subr.mxu0 0.0
        %2544 = vmatpush1.msra.mxu0 0.0
        %2545 = vmatprep.subr.mxu0 0.0
        %2546 = vmatpush1.msra.mxu0 0.0
        %2547 = vmatprep.subr.mxu0 0.0
        %2548 = vmatpush1.msra.mxu0 0.0
        %2549 = vmatprep.subr.mxu0 0.0
        %2550 = vmatpush1.msra.mxu0 0.0
        %2551 = vmatprep.subr.mxu0 0.0
        %2552 = vmatpush1.msra.mxu0 0.0
        %2553 = vmatprep.subr.mxu0 0.0
        %2554 = vmatpush1.msra.mxu0 0.0
        %2555 = vmatprep.subr.mxu0 0.0
        %2556 = vmatpush1.msra.mxu0 0.0
        %2557 = vmatprep.subr.mxu0 0.0
        %2558 = vmatpush1.msra.mxu0 0.0
        %2559 = vmatprep.subr.mxu0 0.0
        %2560 = vmatpush1.msra.mxu0 0.0
        %2561 = vmatprep.mubr.f32.mxu0 0.0
        %2562 = vmatmul.mubr.f32.gmra.mrb[0].mxu0 %v2495
        %v2563 = vpop.f32.mrb[0].mxu0
        %v2564 = vadd.f32 0.0, %v2563
        %v2565 = vpop.f32.mrb[0].mxu0
        %v2566 = vadd.f32 0.0, %v2565
        %2567 = vdwg.mxu0
        %v2568 = vadd.f32 %v2474, %v2564
        %v2569 = vadd.f32 %v2475, %v2566
        %s2570 = scalar_lea.vmem %s4, 56
        %v2571 = vld [vmem:[%s2570] sm:$0xff]
        %2573 = vrot.lane.b32.xlu0 %v1937, 112
        %v2574 = vpop.permute.xlu0 %2573
        %2575 = vrot.lane.b32.xlu0 %v1938, 112
        %v2576 = vpop.permute.xlu0 %2575
        %2577 = vrot.lane.b32.xlu0 %v2381, 112
        %v2578 = vpop.permute.xlu0 %2577
        %v2579 = vsel %vm1554, %v2574, %v2576
        %v2580 = vsel %vm1554, %v2576, %v2578
        %v2584 = vsel %vm340, %v2571, 0
        %2586 = vmatprep.subr.mxu0 %v2580
        %2587 = vmatpush1.msra.mxu0 %v2579
        %2588 = vmatprep.subr.mxu0 0.0
        %2589 = vmatpush1.msra.mxu0 0.0
        %2590 = vmatprep.subr.mxu0 0.0
        %2591 = vmatpush1.msra.mxu0 0.0
        %2592 = vmatprep.subr.mxu0 0.0
        %2593 = vmatpush1.msra.mxu0 0.0
        %2594 = vmatprep.subr.mxu0 0.0
        %2595 = vmatpush1.msra.mxu0 0.0
        %2596 = vmatprep.subr.mxu0 0.0
        %2597 = vmatpush1.msra.mxu0 0.0
        %2598 = vmatprep.subr.mxu0 0.0
        %2599 = vmatpush1.msra.mxu0 0.0
        %2600 = vmatprep.subr.mxu0 0.0
        %2601 = vmatpush1.msra.mxu0 0.0
        %2602 = vmatprep.subr.mxu0 0.0
        %2603 = vmatpush1.msra.mxu0 0.0
        %2604 = vmatprep.subr.mxu0 0.0
        %2605 = vmatpush1.msra.mxu0 0.0
        %2606 = vmatprep.subr.mxu0 0.0
        %2607 = vmatpush1.msra.mxu0 0.0
        %2608 = vmatprep.subr.mxu0 0.0
        %2609 = vmatpush1.msra.mxu0 0.0
        %2610 = vmatprep.subr.mxu0 0.0
        %2611 = vmatpush1.msra.mxu0 0.0
        %2612 = vmatprep.subr.mxu0 0.0
        %2613 = vmatpush1.msra.mxu0 0.0
        %2614 = vmatprep.subr.mxu0 0.0
        %2615 = vmatpush1.msra.mxu0 0.0
        %2616 = vmatprep.subr.mxu0 0.0
        %2617 = vmatpush1.msra.mxu0 0.0
        %2618 = vmatprep.subr.mxu0 0.0
        %2619 = vmatpush1.msra.mxu0 0.0
        %2620 = vmatprep.subr.mxu0 0.0
        %2621 = vmatpush1.msra.mxu0 0.0
        %2622 = vmatprep.subr.mxu0 0.0
        %2623 = vmatpush1.msra.mxu0 0.0
        %2624 = vmatprep.subr.mxu0 0.0
        %2625 = vmatpush1.msra.mxu0 0.0
        %2626 = vmatprep.subr.mxu0 0.0
        %2627 = vmatpush1.msra.mxu0 0.0
        %2628 = vmatprep.subr.mxu0 0.0
        %2629 = vmatpush1.msra.mxu0 0.0
        %2630 = vmatprep.subr.mxu0 0.0
        %2631 = vmatpush1.msra.mxu0 0.0
        %2632 = vmatprep.subr.mxu0 0.0
        %2633 = vmatpush1.msra.mxu0 0.0
        %2634 = vmatprep.subr.mxu0 0.0
        %2635 = vmatpush1.msra.mxu0 0.0
        %2636 = vmatprep.subr.mxu0 0.0
        %2637 = vmatpush1.msra.mxu0 0.0
        %2638 = vmatprep.subr.mxu0 0.0
        %2639 = vmatpush1.msra.mxu0 0.0
        %2640 = vmatprep.subr.mxu0 0.0
        %2641 = vmatpush1.msra.mxu0 0.0
        %2642 = vmatprep.subr.mxu0 0.0
        %2643 = vmatpush1.msra.mxu0 0.0
        %2644 = vmatprep.subr.mxu0 0.0
        %2645 = vmatpush1.msra.mxu0 0.0
        %2646 = vmatprep.subr.mxu0 0.0
        %2647 = vmatpush1.msra.mxu0 0.0
        %2648 = vmatprep.subr.mxu0 0.0
        %2649 = vmatpush1.msra.mxu0 0.0
        %2650 = vmatprep.mubr.f32.mxu0 0.0
        %2651 = vmatmul.mubr.f32.gmra.mrb[0].mxu0 %v2584
        %v2652 = vpop.f32.mrb[0].mxu0
        %v2653 = vadd.f32 0.0, %v2652
        %v2654 = vpop.f32.mrb[0].mxu0
        %v2655 = vadd.f32 0.0, %v2654
        %2656 = vdwg.mxu0
        %v2657 = vadd.f32 %v2568, %v2653
        %v2658 = vadd.f32 %v2569, %v2655
        %v2659 = vmul.f32 %v1937, %v1708
        %v2660 = vmul.f32 %v1938, %v1713
        %v2661 = vmul.f32 %v2381, %v1714
        %s2662 = scalar_lea.vmem %s4, 64
        %v2663 = vld [vmem:[%s2662] sm:$0xff]
        %2667 = vrot.lane.b32.xlu0 %v2659, 111
        %v2668 = vpop.permute.xlu0 %2667
        %2669 = vrot.lane.b32.xlu0 %v2660, 111
        %v2670 = vpop.permute.xlu0 %2669
        %2671 = vrot.lane.b32.xlu0 %v2661, 111
        %v2672 = vpop.permute.xlu0 %2671
        %v2673 = vsel %vm305, %v2668, %v2670
        %v2674 = vsel %vm305, %v2670, %v2672
        %v2678 = vsel %vm340, %v2663, 0
        %2680 = vmatprep.subr.mxu0 %v2674
        %2681 = vmatpush1.msra.mxu0 %v2673
        %2682 = vmatprep.subr.mxu0 0.0
        %2683 = vmatpush1.msra.mxu0 0.0
        %2684 = vmatprep.subr.mxu0 0.0
        %2685 = vmatpush1.msra.mxu0 0.0
        %2686 = vmatprep.subr.mxu0 0.0
        %2687 = vmatpush1.msra.mxu0 0.0
        %2688 = vmatprep.subr.mxu0 0.0
        %2689 = vmatpush1.msra.mxu0 0.0
        %2690 = vmatprep.subr.mxu0 0.0
        %2691 = vmatpush1.msra.mxu0 0.0
        %2692 = vmatprep.subr.mxu0 0.0
        %2693 = vmatpush1.msra.mxu0 0.0
        %2694 = vmatprep.subr.mxu0 0.0
        %2695 = vmatpush1.msra.mxu0 0.0
        %2696 = vmatprep.subr.mxu0 0.0
        %2697 = vmatpush1.msra.mxu0 0.0
        %2698 = vmatprep.subr.mxu0 0.0
        %2699 = vmatpush1.msra.mxu0 0.0
        %2700 = vmatprep.subr.mxu0 0.0
        %2701 = vmatpush1.msra.mxu0 0.0
        %2702 = vmatprep.subr.mxu0 0.0
        %2703 = vmatpush1.msra.mxu0 0.0
        %2704 = vmatprep.subr.mxu0 0.0
        %2705 = vmatpush1.msra.mxu0 0.0
        %2706 = vmatprep.subr.mxu0 0.0
        %2707 = vmatpush1.msra.mxu0 0.0
        %2708 = vmatprep.subr.mxu0 0.0
        %2709 = vmatpush1.msra.mxu0 0.0
        %2710 = vmatprep.subr.mxu0 0.0
        %2711 = vmatpush1.msra.mxu0 0.0
        %2712 = vmatprep.subr.mxu0 0.0
        %2713 = vmatpush1.msra.mxu0 0.0
        %2714 = vmatprep.subr.mxu0 0.0
        %2715 = vmatpush1.msra.mxu0 0.0
        %2716 = vmatprep.subr.mxu0 0.0
        %2717 = vmatpush1.msra.mxu0 0.0
        %2718 = vmatprep.subr.mxu0 0.0
        %2719 = vmatpush1.msra.mxu0 0.0
        %2720 = vmatprep.subr.mxu0 0.0
        %2721 = vmatpush1.msra.mxu0 0.0
        %2722 = vmatprep.subr.mxu0 0.0
        %2723 = vmatpush1.msra.mxu0 0.0
        %2724 = vmatprep.subr.mxu0 0.0
        %2725 = vmatpush1.msra.mxu0 0.0
        %2726 = vmatprep.subr.mxu0 0.0
        %2727 = vmatpush1.msra.mxu0 0.0
        %2728 = vmatprep.subr.mxu0 0.0
        %2729 = vmatpush1.msra.mxu0 0.0
        %2730 = vmatprep.subr.mxu0 0.0
        %2731 = vmatpush1.msra.mxu0 0.0
        %2732 = vmatprep.subr.mxu0 0.0
        %2733 = vmatpush1.msra.mxu0 0.0
        %2734 = vmatprep.subr.mxu0 0.0
        %2735 = vmatpush1.msra.mxu0 0.0
        %2736 = vmatprep.subr.mxu0 0.0
        %2737 = vmatpush1.msra.mxu0 0.0
        %2738 = vmatprep.subr.mxu0 0.0
        %2739 = vmatpush1.msra.mxu0 0.0
        %2740 = vmatprep.subr.mxu0 0.0
        %2741 = vmatpush1.msra.mxu0 0.0
        %2742 = vmatprep.subr.mxu0 0.0
        %2743 = vmatpush1.msra.mxu0 0.0
        %2744 = vmatprep.mubr.f32.mxu0 0.0
        %2745 = vmatmul.mubr.f32.gmra.mrb[0].mxu0 %v2678
        %v2746 = vpop.f32.mrb[0].mxu0
        %v2747 = vadd.f32 0.0, %v2746
        %v2748 = vpop.f32.mrb[0].mxu0
        %v2749 = vadd.f32 0.0, %v2748
        %2750 = vdwg.mxu0
        %v2751 = vadd.f32 %v2657, %v2747
        %v2752 = vadd.f32 %v2658, %v2749
        %v2753 = vld [vmem:[%s5] sm:$0xff]
        %2755 = vset.pattern.permute.xlu0 0
        %2756 = vperm.xlu0 %2755, %v2753
        %v2757 = vpop.permute.xlu0 %2756
        %v2759 = vadd.f32 %v2751, %v2757
        %v2760 = vadd.f32 %v2752, %v2757
        %v2761 = vld [vmem:[%s249] sm:$0xff]
        %v2762 = vld [vmem:[%s249 + $0x8] sm:$0xff]
        %v2763 = vadd.f32 %v2759, %v2761
        %v2764 = vadd.f32 %v2760, %v2762
        %v2765 = vmax.f32 %v2763, 0.0
        %v2766 = vmax.f32 %v2764, 0.0
        %2767 = vst [vmem:[%s244] sm:$0xff] %v2765
        %2768 = vst [vmem:[%s244 + $0x8] sm:$0xff] %v2766
        %s2769 = sand.u32 %s159, 1
        %s2770 = scalar_lea.sflag [#allocation5], %s2769
        %s2771 = sand.u32 %s159, 1
        %s2772 = smul.addr %s2771, 16
        %s2773 = scalar_lea.vmem [#allocation4], %s2772
        // Predicated region
        $region45: #{tpu_custom_call.1} parent=43 // pred_check
          %p2774 = pneg %p169
        $region46: #{tpu_custom_call.1} parent=43 // pred_check_branch
          %2776 = sbr.rel (%p2774) target = $region48
        $region47: #{tpu_custom_call.1} parent=43 // pred_region
          %s2778 = ssub.s32 256, 256
          %2779 = vsyncadd %s2770, %s2778
          %s2780 = smul.addr %s20, 2
          %s2781 = smul.addr %s2780, 128
          %s2782 = scalar_lea.hbm %s6, %s2781
          %s2784 = sshll.u32 %s2773, 4
          %s2785 = int_to_ptr.vmem [resolvable:$true] %s2784
          %2787 = dma.vmem_to_hbm [thread:$0]  %s2785, 256, %s2782, %s2770
        $region48: #{tpu_custom_call.1} parent=43 // pred_fallthru
          _
      $region44: #{tpu_custom_call.1} parent=5 // pred_fallthru
        _
      %p2788 = scmp.le.s32.totalorder 2, %s15
      // Predicated region
      $region49: #{tpu_custom_call.1} parent=5 // pred_check
        %p2789 = pneg %p2788
      $region50: #{tpu_custom_call.1} parent=5 // pred_check_branch
        %2791 = sbr.rel (%p2789) target = $region52
      $region51: #{tpu_custom_call.1} parent=5 // pred_region
        %s2792 = ssub.s32 %s15, 2
        // Predicated region
        $region53: #{tpu_custom_call.1} parent=51 // pred_check
          %p2793 = pneg %p175
        $region54: #{tpu_custom_call.1} parent=51 // pred_check_branch
          %2795 = sbr.rel (%p2793) target = $region56
        $region55: #{tpu_custom_call.1} parent=51 // pred_region
          %s2796 = sand.u32 %s160, 1
          %s2797 = scalar_lea.sflag [#allocation5], %s2796
          %s2798 = sand.u32 %s160, 1
          %s2799 = smul.addr %s2798, 16
          %s2800 = scalar_lea.vmem [#allocation4], %s2799
          %2801 = dma.done %s2797, 256
        $region56: #{tpu_custom_call.1} parent=51 // pred_fallthru
          _
      $region52: #{tpu_custom_call.1} parent=5 // pred_fallthru
        _
    $region6: #{tpu_custom_call.1} parent=1 // loop_footer
      %s19 = sadd.s32 1, %s15
    $region7: #{tpu_custom_call.1} parent=1 // loop_footer_branch
      %14 = sbr.rel target = $region3
    $region8: #{tpu_custom_call.1} parent=1 // loop_exit
      _
    %2802 = vsyncpa [#allocation5], 1
    %s2803 = scalar_lea.sflag [#allocation5], 1
    %2804 = vsyncpa %s2803, 1

</llo_original>
